<compile_context>
chip_gen: v7x
topology: tpu7x:2x2x1
jax: 0.10.0
libtpu: 0.0.40
codegen_flags: <defaults>
</compile_context>

<pallas_src>
import jax
import jax.numpy as jnp
import numpy as np
from jax.experimental import pallas as pl
from jax.experimental.pallas import tpu as pltpu

_MIB = 1024 * 1024


# --------------------------------------------------------------------------
# Kernel
# --------------------------------------------------------------------------
def _upsample_iter_kernel(x_ref, halo_ref, m_ref, res_ref,
                          wc_ref, wm_ref, b_ref, out_ref):
    """One (batch, seq-tile) block of: ConvTranspose1d(k=4,s=2,p=1) -> ReLU ->
    masked_fill -> Linear(concat([y, residual])), in the paired (TT, 2C)
    layout (lane cols [0:C] = even output rows 2m, [C:2C] = odd rows 2m+1).

    wc_ref : (4, C, C)  [W1, W3, W2, W0]   (conv taps, compute dtype)
    wm_ref : (2, C, C)  [Wmx, Wmr]         (merge weights, compute dtype)
    b_ref  : (2, C) f32 [conv bias, merge bias]
    """
    x = x_ref[0]                               # (TT, C), compute dtype (no f32 round trip)
    TT, C = x.shape
    halo = halo_ref[0, 0]                      # (2, C): [x[start-1], x[end]]
    f32 = jnp.float32

    b = b_ref[...]                             # (2, C) f32
    b_conv = b[0:1, :]
    b_merge = b[1:2, :]

    # ---- zero-free transposed conv (f32 accumulation on the MXU) ----------
    zx_e = jnp.dot(x, wc_ref[0], preferred_element_type=f32)        # x[m] @ W1
    zx_o = jnp.dot(x, wc_ref[2], preferred_element_type=f32)        # x[m] @ W2
    p = jnp.dot(x, wc_ref[1], preferred_element_type=f32)           # x[m] @ W3
    n = jnp.dot(x, wc_ref[3], preferred_element_type=f32)           # x[m] @ W0
    # Boundary (halo) contributions: tiny 1-row dots.
    hp = jnp.dot(halo[0:1, :], wc_ref[1], preferred_element_type=f32)   # x[start-1] @ W3
    hn = jnp.dot(halo[1:2, :], wc_ref[3], preferred_element_type=f32)   # x[end]     @ W0

    # Neighbour shifts via XLU roll of the f32 dot results + one-row patch
    # (no concat copies, no bf16 shuffles on the LHS path).
    row = jax.lax.broadcasted_iota(jnp.int32, (TT, 1), 0)
    prev_c = jnp.where(row == 0, jnp.broadcast_to(hp, (TT, C)),
                       pltpu.roll(p, shift=1, axis=0))               # x[m-1] @ W3
    next_c = jnp.where(row == TT - 1, jnp.broadcast_to(hn, (TT, C)),
                       pltpu.roll(n, shift=TT - 1, axis=0))           # x[m+1] @ W0

    z_e = zx_e + prev_c + b_conv                                      # (TT, C) f32
    z_o = zx_o + next_c + b_conv

    # ---- ReLU + masked_fill (exact select; robust to non-finite z) --------
    mf = m_ref[0].astype(jnp.float32)                                 # (TT, 2), 0/1
    y_e = jnp.where(mf[:, 0:1] < 0.5, jnp.maximum(z_e, 0.0), 0.0).astype(x.dtype)
    y_o = jnp.where(mf[:, 1:2] < 0.5, jnp.maximum(z_o, 0.0), 0.0).astype(x.dtype)

    # ---- residual-merge Linear, zero-free per-half dots --------------------
    res = res_ref[0]                                                  # (TT, 2C)
    wm_x = wm_ref[0]
    wm_r = wm_ref[1]
    out_e = (jnp.dot(y_e, wm_x, preferred_element_type=f32)
             + jnp.dot(res[:, 0:C], wm_r, preferred_element_type=f32) + b_merge)
    out_o = (jnp.dot(y_o, wm_x, preferred_element_type=f32)
             + jnp.dot(res[:, C:2 * C], wm_r, preferred_element_type=f32) + b_merge)

    out_ref[0, :, 0:C] = out_e.astype(out_ref.dtype)
    out_ref[0, :, C:2 * C] = out_o.astype(out_ref.dtype)
    # TODO(synk): for very small channel counts (2*C < 128) these stores are
    # masked partial-lane stores; packing several time-steps into the lane dim
    # would make them lane-dense but needs an in-kernel relayout, so it is
    # deliberately left out (production C >= 128 is already lane-dense).


# --------------------------------------------------------------------------
# Host-side planning / parameter packing
# --------------------------------------------------------------------------
def _vmem_capacity_bytes():
    try:
        info = pltpu.get_tpu_info()
        cap = getattr(info, "vmem_capacity_bytes", None)
        if cap:
            return int(cap)
    except Exception:
        pass
    return 64 * _MIB  # conservative: v7x has 64 MiB per TensorCore


def _plan_tiles(T, C, itemsize, max_tile, batch):
    """Pick (TT, T_pad, nT, vmem_limit) per TPU generation / VMEM budget."""
    cap = _vmem_capacity_bytes()
    # ~96 MiB on 128-MiB parts (v5e/v6e), ~48 MiB on 64-MiB parts (v7x).
    vmem_limit = int(min((cap * 3) // 4, 100 * _MIB))

    weight_bytes = 6 * C * C * itemsize + 2 * C * 4
    # per-row VMEM: double-buffered x/res/out/mask blocks + f32 temporaries.
    per_row = 2 * ((C + 2 * C + 2 * C) * itemsize + 2) + 10 * C * 4
    budget = max(8 * per_row, (vmem_limit * 3) // 5 - 2 * weight_bytes)
    tt = budget // per_row

    if max_tile is None:
        max_tile = 1024                       # big tiles amortize per-step overhead
    tt = min(tt, max_tile)
    if batch == 1 and T > 8:
        # v7x has 2 TensorCores: make sure there are >= 2 parallel seq tiles.
        tt = min(tt, max(8, (T // 16) * 8))
    tt = min(tt, pl.cdiv(T, 8) * 8)           # never larger than padded T
    tt = max(8, (tt // 8) * 8)
    T_pad = pl.cdiv(T, tt) * tt
    return tt, T_pad, T_pad // tt, vmem_limit


def prepare_upsample_params(wconv, bconv, wmerge, bmerge, *,
                            compute_dtype=jnp.float32):
    """Pack module parameters into the per-half layouts the kernel consumes.

    wconv : (C_in, C_out, 4)  ConvTranspose1d weight (C_in == C_out required).
    bconv : (C_out,)
    wmerge: (C_out, 2*C_out)  Linear(2C -> C) weight (PyTorch (out, in) layout).
    bmerge: (C_out,)
    """
    C = wconv.shape[1]
    w0, w1, w2, w3 = (wconv[:, :, kk] for kk in range(4))
    # Order: [even-from-x (W1), even-from-prev (W3), odd-from-x (W2), odd-from-next (W0)]
    wconv_k = jnp.stack([w1, w3, w2, w0], axis=0).astype(compute_dtype)   # (4, C, C)
    wm_t = wmerge.T                                                       # (2C, C)
    wmerge_k = jnp.stack([wm_t[:C, :], wm_t[C:, :]], axis=0).astype(compute_dtype)  # (2, C, C)
    bias_k = jnp.stack([bconv, bmerge], axis=0).astype(jnp.float32)       # (2, C)
    return wconv_k, wmerge_k, bias_k


def _const_spec(shape):
    """BlockSpec for a grid-invariant operand; single-buffered if supported."""
    index_map = lambda b, t, _n=len(shape): (0,) * _n
    try:
        return pl.BlockSpec(shape, index_map, pipeline_mode=pl.Buffered(1))
    except Exception:
        return pl.BlockSpec(shape, index_map)


# --------------------------------------------------------------------------
# One repeat: conv_transpose -> ReLU -> (crop) -> mask -> residual merge
# --------------------------------------------------------------------------
def upsample_iteration(x, mask, residual, kparams, pad_n, *, max_tile=None):
    wconv_k, wmerge_k, bias_k = kparams
    B, T, C = x.shape
    cdt = x.dtype
    isz = jnp.dtype(cdt).itemsize
    T_out = 2 * T - pad_n

    TT, T_pad, nT, vmem_limit = _plan_tiles(T, C, isz, max_tile, B)

    # Pad the time axis to a multiple of TT with zero rows: zero rows preserve
    # the conv boundary semantics and their outputs are cropped below.
    x_p = x if T_pad == T else jnp.pad(x, ((0, 0), (0, T_pad - T), (0, 0)))

    # Mask as int8 (4x fewer DMA bytes than f32); pad tail, free reshape to (B,T_pad,2).
    m8 = jnp.pad(mask.astype(jnp.int8), ((0, 0), (0, 2 * T_pad - T_out)))
    m8 = m8.reshape(B, T_pad, 2)

    res = jnp.pad(residual.astype(cdt), ((0, 0), (0, 2 * T_pad - T_out), (0, 0)))
    res2 = res.reshape(B, T_pad, 2 * C)                 # free row-major reshape

    # Per-tile halo rows x[t*TT - 1] and x[(t+1)*TT] (zeros at sequence edges).
    zrow = jnp.zeros((B, 1, C), cdt)
    prev_rows = jnp.concatenate([zrow, x_p[:, TT - 1:T_pad - 1:TT, :]], axis=1)  # (B, nT, C)
    next_rows = jnp.concatenate([x_p[:, TT:T_pad:TT, :], zrow], axis=1)          # (B, nT, C)
    halo = jnp.stack([prev_rows, next_rows], axis=2)                             # (B, nT, 2, C)

    flops = 16 * C * C * B * T_pad
    bytes_accessed = (B * T_pad * (3 * C * isz + 2)       # x + res + mask in
                      + B * T_pad * 2 * C * isz           # paired output
                      + B * nT * 2 * C * isz              # halo rows
                      + 6 * C * C * isz + 2 * C * 4)      # weights + biases

    out2 = pl.pallas_call(
        _upsample_iter_kernel,
        out_shape=jax.ShapeDtypeStruct((B, T_pad, 2 * C), cdt),
        grid=(B, nT),
        in_specs=[
            pl.BlockSpec((1, TT, C), lambda b, t: (b, t, 0)),          # x
            pl.BlockSpec((1, 1, 2, C), lambda b, t: (b, t, 0, 0)),     # halo rows
            pl.BlockSpec((1, TT, 2), lambda b, t: (b, t, 0)),          # int8 mask
            pl.BlockSpec((1, TT, 2 * C), lambda b, t: (b, t, 0)),      # residual
            _const_spec((4, C, C)),                                    # conv taps
            _const_spec((2, C, C)),                                    # merge weights
            _const_spec((2, C)),                                       # biases (f32)
        ],
        out_specs=pl.BlockSpec((1, TT, 2 * C), lambda b, t: (b, t, 0)),
        compiler_params=pltpu.CompilerParams(
            dimension_semantics=("parallel", "parallel"),
            vmem_limit_bytes=vmem_limit,
        ),
        cost_estimate=pl.CostEstimate(flops=flops, transcendentals=0,
                                      bytes_accessed=bytes_accessed),
    )(x_p, halo, m8, res2, wconv_k, wmerge_k, bias_k)

    # Free row-major reshape (B, T_pad, 2C) -> (B, 2*T_pad, C) interleaves the
    # even/odd streams; crop pad rows + the pad_n tail.
    y = out2.reshape(B, 2 * T_pad, C)[:, :T_out, :]
    return y


def upsample_forward(x, masks, residuals, *, pad_n, params, num_repeats=3,
                     compute_dtype=jnp.float32, max_tile=None):
    kparams = prepare_upsample_params(*params, compute_dtype=compute_dtype)
    x = x.astype(compute_dtype)
    for i in range(num_repeats):
        p = pad_n if i == num_repeats - 1 else 0
        x = upsample_iteration(x, masks[i], residuals[i], kparams, p,
                               max_tile=max_tile)
    return x


# ---------------- pure-JAX reference (mirrors the PyTorch forward) ----------------
def upsample_forward_ref(x, masks, residuals, pad_n, params, num_repeats=3):
    wconv, bconv, wmerge, bmerge = params
    C, K = wconv.shape[1], wconv.shape[-1]
    stride, padding = 2, 1
    wm_t = wmerge.T
    wmx, wmr = wm_t[:C, :], wm_t[C:, :]
    for i in range(num_repeats):
        B, T, _ = x.shape
        L_out = (T - 1) * stride - 2 * padding + K
        y = jnp.zeros((B, L_out + 2 * padding, C), jnp.float32)
        for t in range(T):
            for kk in range(K):
                y = y.at[:, t * stride + kk, :].add(x[:, t, :] @ wconv[:, :, kk])
        y = y[:, padding:padding + L_out, :] + bconv[None, None, :]
        y = jnp.maximum(y, 0.0)
        if i == num_repeats - 1:
            y = y[:, :y.shape[1] - pad_n, :]
        y = jnp.where(masks[i][..., None], 0.0, y)
        y = y @ wmx + residuals[i] @ wmr + bmerge[None, None, :]
        x = y
    return x


if __name__ == "__main__":
    key = jax.random.PRNGKey(0)
    B, C, T0 = 2, 32, 8
    num_repeats, pad_n = 3, 3

    k = jax.random.split(key, 16)
    x = jax.random.normal(k[0], (B, T0, C), jnp.float32)
    # ConvTranspose1d(C, C, kernel=4): weight (C_in, C_out, K), bias (C,)
    wconv = jax.random.normal(k[1], (C, C, 4), jnp.float32) * 0.2
    bconv = jax.random.normal(k[2], (C,), jnp.float32) * 0.1
    # Linear(2C -> C): weight (C, 2C) (PyTorch (out, in) layout), bias (C,)
    wmerge = jax.random.normal(k[3], (C, 2 * C), jnp.float32) * 0.2
    bmerge = jax.random.normal(k[4], (C,), jnp.float32) * 0.1
    params = (wconv, bconv, wmerge, bmerge)

    masks, residuals = [], []
    T = T0
    for i in range(num_repeats):
        T = 2 * T
        Ti = T - pad_n if i == num_repeats - 1 else T
        masks.append(jax.random.bernoulli(k[5 + i], 0.2, (B, Ti)))
        residuals.append(jax.random.normal(k[8 + i], (B, Ti, C), jnp.float32))

    T_final = (2 ** num_repeats) * T0 - pad_n
    ref_np = np.asarray(
        upsample_forward_ref(x, masks, residuals, pad_n, params, num_repeats))

    fwd = jax.jit(upsample_forward,
                  static_argnames=("pad_n", "num_repeats", "compute_dtype",
                                   "max_tile"))

    # float32, auto-planned tiles (single tile per repeat at these sizes).
    out_f32 = jax.block_until_ready(
        fwd(x, masks, residuals, pad_n=pad_n, params=params,
            num_repeats=num_repeats, compute_dtype=jnp.float32))
    assert out_f32.shape == (B, T_final, C)
    np.testing.assert_allclose(np.asarray(out_f32), ref_np, rtol=2e-3, atol=2e-3)

    # float32 with forced sequence tiling (exercises halo / multi-tile grid).
    out_tiled = jax.block_until_ready(
        fwd(x, masks, residuals, pad_n=pad_n, params=params,
            num_repeats=num_repeats, compute_dtype=jnp.float32, max_tile=8))
    np.testing.assert_allclose(np.asarray(out_tiled), ref_np, rtol=2e-3, atol=2e-3)

    # float32 with a tile that does not divide T (exercises the T-padding path).
    out_pad = jax.block_until_ready(
        fwd(x, masks, residuals, pad_n=pad_n, params=params,
            num_repeats=num_repeats, compute_dtype=jnp.float32, max_tile=24))
    np.testing.assert_allclose(np.asarray(out_pad), ref_np, rtol=2e-3, atol=2e-3)

    # bfloat16 compute/storage (production configuration): loose numeric check.
    out_bf16 = jax.block_until_ready(
        fwd(x, masks, residuals, pad_n=pad_n, params=params,
            num_repeats=num_repeats, compute_dtype=jnp.bfloat16))
    assert out_bf16.shape == (B, T_final, C) and out_bf16.dtype == jnp.bfloat16
    out_bf16_np = np.asarray(out_bf16.astype(jnp.float32))
    assert np.isfinite(out_bf16_np).all()
    assert float(np.mean(np.abs(out_bf16_np - ref_np))) < 0.3

    print("KERNEL_OK")
</pallas_src>

<mosaic_0001>
module attributes {stable_mosaic.version = 11 : i64} {
  func.func @_upsample_iter_kernel(%arg0: i32, %arg1: i32, %arg2: memref<1x8x32xf32, #tpu.memory_space<vmem>>, %arg3: memref<1x1x2x32xf32, #tpu.memory_space<vmem>>, %arg4: memref<1x8x2xi8, #tpu.memory_space<vmem>>, %arg5: memref<1x8x64xf32, #tpu.memory_space<vmem>>, %arg6: memref<4x32x32xf32, #tpu.memory_space<vmem>>, %arg7: memref<2x32x32xf32, #tpu.memory_space<vmem>>, %arg8: memref<2x32xf32, #tpu.memory_space<vmem>>, %arg9: memref<1x8x64xf32, #tpu.memory_space<vmem>>) attributes {dimension_semantics = [#tpu.dimension_semantics<parallel>, #tpu.dimension_semantics<parallel>], iteration_bounds = array<i64: 2, 1>, scalar_prefetch = 0 : i64, scratch_operands = 0 : i64, tpu.core_type = #tpu.core_type<tc>, window_params = [{transform_indices = @transform_0, window_bounds = array<i64: 1, 8, 32>}, {transform_indices = @transform_1, window_bounds = array<i64: 1, 1, 2, 32>}, {transform_indices = @transform_2, window_bounds = array<i64: 1, 8, 2>}, {transform_indices = @transform_3, window_bounds = array<i64: 1, 8, 64>}, {pipeline_mode = #tpu.pipeline_mode<synchronous>, transform_indices = @transform_4, window_bounds = array<i64: 4, 32, 32>}, {pipeline_mode = #tpu.pipeline_mode<synchronous>, transform_indices = @transform_5, window_bounds = array<i64: 2, 32, 32>}, {pipeline_mode = #tpu.pipeline_mode<synchronous>, transform_indices = @transform_6, window_bounds = array<i64: 2, 32>}, {transform_indices = @transform_7, window_bounds = array<i64: 1, 8, 64>}]} {
    %c0 = arith.constant 0 : index
    %c0_0 = arith.constant 0 : index
    %c0_1 = arith.constant 0 : index
    %0 = vector.load %arg2[%c0, %c0_0, %c0_1] : memref<1x8x32xf32, #tpu.memory_space<vmem>>, vector<1x8x32xf32>
    %1 = vector.shape_cast %0 : vector<1x8x32xf32> to vector<8x32xf32>
    %c0_2 = arith.constant 0 : index
    %c0_3 = arith.constant 0 : index
    %c0_4 = arith.constant 0 : index
    %c0_5 = arith.constant 0 : index
    %2 = vector.load %arg3[%c0_2, %c0_3, %c0_4, %c0_5] : memref<1x1x2x32xf32, #tpu.memory_space<vmem>>, vector<1x1x2x32xf32>
    %3 = vector.shape_cast %2 : vector<1x1x2x32xf32> to vector<2x32xf32>
    %c0_6 = arith.constant 0 : index
    %c0_7 = arith.constant 0 : index
    %4 = vector.load %arg8[%c0_6, %c0_7] : memref<2x32xf32, #tpu.memory_space<vmem>>, vector<2x32xf32>
    %5 = vector.extract_strided_slice %4 {offsets = [0, 0], sizes = [1, 32], strides = [1, 1]} : vector<2x32xf32> to vector<1x32xf32>
    %6 = vector.extract_strided_slice %4 {offsets = [1, 0], sizes = [1, 32], strides = [1, 1]} : vector<2x32xf32> to vector<1x32xf32>
    %c0_8 = arith.constant 0 : index
    %c0_9 = arith.constant 0 : index
    %c0_10 = arith.constant 0 : index
    %7 = vector.load %arg6[%c0_8, %c0_9, %c0_10] : memref<4x32x32xf32, #tpu.memory_space<vmem>>, vector<1x32x32xf32>
    %8 = vector.shape_cast %7 : vector<1x32x32xf32> to vector<32x32xf32>
    %cst = arith.constant dense<0.000000e+00> : vector<8x32xf32>
    %9 = tpu.matmul %1, %8, %cst {dimension_numbers = #tpu.dot_dimension_numbers<[1], [0], [0], [1], [0, 0, 1, 1], [], []>} : vector<8x32xf32>, vector<32x32xf32>, vector<8x32xf32> -> vector<8x32xf32>
    %c2 = arith.constant 2 : index
    %c0_11 = arith.constant 0 : index
    %c0_12 = arith.constant 0 : index
    %10 = vector.load %arg6[%c2, %c0_11, %c0_12] : memref<4x32x32xf32, #tpu.memory_space<vmem>>, vector<1x32x32xf32>
    %11 = vector.shape_cast %10 : vector<1x32x32xf32> to vector<32x32xf32>
    %cst_13 = arith.constant dense<0.000000e+00> : vector<8x32xf32>
    %12 = tpu.matmul %1, %11, %cst_13 {dimension_numbers = #tpu.dot_dimension_numbers<[1], [0], [0], [1], [0, 0, 1, 1], [], []>} : vector<8x32xf32>, vector<32x32xf32>, vector<8x32xf32> -> vector<8x32xf32>
    %c1 = arith.constant 1 : index
    %c0_14 = arith.constant 0 : index
    %c0_15 = arith.constant 0 : index
    %13 = vector.load %arg6[%c1, %c0_14, %c0_15] : memref<4x32x32xf32, #tpu.memory_space<vmem>>, vector<1x32x32xf32>
    %14 = vector.shape_cast %13 : vector<1x32x32xf32> to vector<32x32xf32>
    %cst_16 = arith.constant dense<0.000000e+00> : vector<8x32xf32>
    %15 = tpu.matmul %1, %14, %cst_16 {dimension_numbers = #tpu.dot_dimension_numbers<[1], [0], [0], [1], [0, 0, 1, 1], [], []>} : vector<8x32xf32>, vector<32x32xf32>, vector<8x32xf32> -> vector<8x32xf32>
    %c3 = arith.constant 3 : index
    %c0_17 = arith.constant 0 : index
    %c0_18 = arith.constant 0 : index
    %16 = vector.load %arg6[%c3, %c0_17, %c0_18] : memref<4x32x32xf32, #tpu.memory_space<vmem>>, vector<1x32x32xf32>
    %17 = vector.shape_cast %16 : vector<1x32x32xf32> to vector<32x32xf32>
    %cst_19 = arith.constant dense<0.000000e+00> : vector<8x32xf32>
    %18 = tpu.matmul %1, %17, %cst_19 {dimension_numbers = #tpu.dot_dimension_numbers<[1], [0], [0], [1], [0, 0, 1, 1], [], []>} : vector<8x32xf32>, vector<32x32xf32>, vector<8x32xf32> -> vector<8x32xf32>
    %19 = vector.extract_strided_slice %3 {offsets = [0, 0], sizes = [1, 32], strides = [1, 1]} : vector<2x32xf32> to vector<1x32xf32>
    %c1_20 = arith.constant 1 : index
    %c0_21 = arith.constant 0 : index
    %c0_22 = arith.constant 0 : index
    %20 = vector.load %arg6[%c1_20, %c0_21, %c0_22] : memref<4x32x32xf32, #tpu.memory_space<vmem>>, vector<1x32x32xf32>
    %21 = vector.shape_cast %20 : vector<1x32x32xf32> to vector<32x32xf32>
    %cst_23 = arith.constant dense<0.000000e+00> : vector<1x32xf32>
    %22 = tpu.matmul %19, %21, %cst_23 {dimension_numbers = #tpu.dot_dimension_numbers<[1], [0], [0], [1], [0, 0, 1, 1], [], []>} : vector<1x32xf32>, vector<32x32xf32>, vector<1x32xf32> -> vector<1x32xf32>
    %23 = vector.extract_strided_slice %3 {offsets = [1, 0], sizes = [1, 32], strides = [1, 1]} : vector<2x32xf32> to vector<1x32xf32>
    %c3_24 = arith.constant 3 : index
    %c0_25 = arith.constant 0 : index
    %c0_26 = arith.constant 0 : index
    %24 = vector.load %arg6[%c3_24, %c0_25, %c0_26] : memref<4x32x32xf32, #tpu.memory_space<vmem>>, vector<1x32x32xf32>
    %25 = vector.shape_cast %24 : vector<1x32x32xf32> to vector<32x32xf32>
    %cst_27 = arith.constant dense<0.000000e+00> : vector<1x32xf32>
    %26 = tpu.matmul %23, %25, %cst_27 {dimension_numbers = #tpu.dot_dimension_numbers<[1], [0], [0], [1], [0, 0, 1, 1], [], []>} : vector<1x32xf32>, vector<32x32xf32>, vector<1x32xf32> -> vector<1x32xf32>
    %27 = tpu.iota {dimensions = array<i32: 0>} : vector<8x1xi32>
    %c0_i32 = arith.constant 0 : i32
    %28 = vector.broadcast %c0_i32 : i32 to vector<8x1xi32>
    %29 = arith.cmpi eq, %27, %28 : vector<8x1xi32>
    %30 = vector.shape_cast %22 : vector<1x32xf32> to vector<1x32xf32>
    %31 = vector.broadcast %30 : vector<1x32xf32> to vector<8x32xf32>
    %c1_i32 = arith.constant 1 : i32
    %32 = tpu.dynamic_rotate %15 by %c1_i32 dim 0 : vector<8x32xf32>, i32 -> vector<8x32xf32>
    %33 = vector.shape_cast %29 : vector<8x1xi1> to vector<8x1xi1>
    %34 = vector.broadcast %33 : vector<8x1xi1> to vector<8x32xi1>
    %35 = arith.select %34, %31, %32 : vector<8x32xi1>, vector<8x32xf32>
    %c7_i32 = arith.constant 7 : i32
    %36 = vector.broadcast %c7_i32 : i32 to vector<8x1xi32>
    %37 = arith.cmpi eq, %27, %36 : vector<8x1xi32>
    %38 = vector.shape_cast %26 : vector<1x32xf32> to vector<1x32xf32>
    %39 = vector.broadcast %38 : vector<1x32xf32> to vector<8x32xf32>
    %c7_i32_28 = arith.constant 7 : i32
    %40 = tpu.dynamic_rotate %18 by %c7_i32_28 dim 0 : vector<8x32xf32>, i32 -> vector<8x32xf32>
    %41 = vector.shape_cast %37 : vector<8x1xi1> to vector<8x1xi1>
    %42 = vector.broadcast %41 : vector<8x1xi1> to vector<8x32xi1>
    %43 = arith.select %42, %39, %40 : vector<8x32xi1>, vector<8x32xf32>
    %44 = arith.addf %9, %35 : vector<8x32xf32>
    %45 = vector.broadcast %5 : vector<1x32xf32> to vector<8x32xf32>
    %46 = arith.addf %44, %45 : vector<8x32xf32>
    %47 = arith.addf %12, %43 : vector<8x32xf32>
    %48 = vector.broadcast %5 : vector<1x32xf32> to vector<8x32xf32>
    %49 = arith.addf %47, %48 : vector<8x32xf32>
    %c0_29 = arith.constant 0 : index
    %c0_30 = arith.constant 0 : index
    %c0_31 = arith.constant 0 : index
    %50 = vector.load %arg4[%c0_29, %c0_30, %c0_31] : memref<1x8x2xi8, #tpu.memory_space<vmem>>, vector<1x8x2xi8>
    %51 = vector.shape_cast %50 : vector<1x8x2xi8> to vector<8x2xi8>
    %52 = arith.sitofp %51 : vector<8x2xi8> to vector<8x2xf32>
    %53 = vector.extract_strided_slice %52 {offsets = [0, 0], sizes = [8, 1], strides = [1, 1]} : vector<8x2xf32> to vector<8x1xf32>
    %cst_32 = arith.constant 5.000000e-01 : f32
    %54 = vector.broadcast %cst_32 : f32 to vector<8x1xf32>
    %55 = arith.cmpf olt, %53, %54 : vector<8x1xf32>
    %cst_33 = arith.constant 0.000000e+00 : f32
    %56 = vector.broadcast %cst_33 : f32 to vector<8x32xf32>
    %57 = arith.maximumf %46, %56 : vector<8x32xf32>
    %cst_34 = arith.constant 0.000000e+00 : f32
    %58 = vector.shape_cast %55 : vector<8x1xi1> to vector<8x1xi1>
    %59 = vector.broadcast %58 : vector<8x1xi1> to vector<8x32xi1>
    %60 = vector.broadcast %cst_34 : f32 to vector<8x32xf32>
    %61 = arith.select %59, %57, %60 : vector<8x32xi1>, vector<8x32xf32>
    %62 = vector.extract_strided_slice %52 {offsets = [0, 1], sizes = [8, 1], strides = [1, 1]} : vector<8x2xf32> to vector<8x1xf32>
    %cst_35 = arith.constant 5.000000e-01 : f32
    %63 = vector.broadcast %cst_35 : f32 to vector<8x1xf32>
    %64 = arith.cmpf olt, %62, %63 : vector<8x1xf32>
    %cst_36 = arith.constant 0.000000e+00 : f32
    %65 = vector.broadcast %cst_36 : f32 to vector<8x32xf32>
    %66 = arith.maximumf %49, %65 : vector<8x32xf32>
    %cst_37 = arith.constant 0.000000e+00 : f32
    %67 = vector.shape_cast %64 : vector<8x1xi1> to vector<8x1xi1>
    %68 = vector.broadcast %67 : vector<8x1xi1> to vector<8x32xi1>
    %69 = vector.broadcast %cst_37 : f32 to vector<8x32xf32>
    %70 = arith.select %68, %66, %69 : vector<8x32xi1>, vector<8x32xf32>
    %c0_38 = arith.constant 0 : index
    %c0_39 = arith.constant 0 : index
    %c0_40 = arith.constant 0 : index
    %71 = vector.load %arg5[%c0_38, %c0_39, %c0_40] : memref<1x8x64xf32, #tpu.memory_space<vmem>>, vector<1x8x64xf32>
    %72 = vector.shape_cast %71 : vector<1x8x64xf32> to vector<8x64xf32>
    %c0_41 = arith.constant 0 : index
    %c0_42 = arith.constant 0 : index
    %c0_43 = arith.constant 0 : index
    %73 = vector.load %arg7[%c0_41, %c0_42, %c0_43] : memref<2x32x32xf32, #tpu.memory_space<vmem>>, vector<1x32x32xf32>
    %74 = vector.shape_cast %73 : vector<1x32x32xf32> to vector<32x32xf32>
    %c1_44 = arith.constant 1 : index
    %c0_45 = arith.constant 0 : index
    %c0_46 = arith.constant 0 : index
    %75 = vector.load %arg7[%c1_44, %c0_45, %c0_46] : memref<2x32x32xf32, #tpu.memory_space<vmem>>, vector<1x32x32xf32>
    %76 = vector.shape_cast %75 : vector<1x32x32xf32> to vector<32x32xf32>
    %cst_47 = arith.constant dense<0.000000e+00> : vector<8x32xf32>
    %77 = tpu.matmul %61, %74, %cst_47 {dimension_numbers = #tpu.dot_dimension_numbers<[1], [0], [0], [1], [0, 0, 1, 1], [], []>} : vector<8x32xf32>, vector<32x32xf32>, vector<8x32xf32> -> vector<8x32xf32>
    %78 = vector.extract_strided_slice %72 {offsets = [0, 0], sizes = [8, 32], strides = [1, 1]} : vector<8x64xf32> to vector<8x32xf32>
    %cst_48 = arith.constant dense<0.000000e+00> : vector<8x32xf32>
    %79 = tpu.matmul %78, %76, %cst_48 {dimension_numbers = #tpu.dot_dimension_numbers<[1], [0], [0], [1], [0, 0, 1, 1], [], []>} : vector<8x32xf32>, vector<32x32xf32>, vector<8x32xf32> -> vector<8x32xf32>
    %80 = arith.addf %77, %79 : vector<8x32xf32>
    %81 = vector.broadcast %6 : vector<1x32xf32> to vector<8x32xf32>
    %82 = arith.addf %80, %81 : vector<8x32xf32>
    %cst_49 = arith.constant dense<0.000000e+00> : vector<8x32xf32>
    %83 = tpu.matmul %70, %74, %cst_49 {dimension_numbers = #tpu.dot_dimension_numbers<[1], [0], [0], [1], [0, 0, 1, 1], [], []>} : vector<8x32xf32>, vector<32x32xf32>, vector<8x32xf32> -> vector<8x32xf32>
    %84 = vector.extract_strided_slice %72 {offsets = [0, 32], sizes = [8, 32], strides = [1, 1]} : vector<8x64xf32> to vector<8x32xf32>
    %cst_50 = arith.constant dense<0.000000e+00> : vector<8x32xf32>
    %85 = tpu.matmul %84, %76, %cst_50 {dimension_numbers = #tpu.dot_dimension_numbers<[1], [0], [0], [1], [0, 0, 1, 1], [], []>} : vector<8x32xf32>, vector<32x32xf32>, vector<8x32xf32> -> vector<8x32xf32>
    %86 = arith.addf %83, %85 : vector<8x32xf32>
    %87 = vector.broadcast %6 : vector<1x32xf32> to vector<8x32xf32>
    %88 = arith.addf %86, %87 : vector<8x32xf32>
    %c0_51 = arith.constant 0 : index
    %c0_52 = arith.constant 0 : index
    %c0_53 = arith.constant 0 : index
    %89 = vector.load %arg9[%c0_51, %c0_52, %c0_53] : memref<1x8x64xf32, #tpu.memory_space<vmem>>, vector<1x8x32xf32>
    %90 = vector.shape_cast %89 : vector<1x8x32xf32> to vector<8x32xf32>
    %91 = vector.shape_cast %82 : vector<8x32xf32> to vector<1x8x32xf32>
    tpu.vector_store %arg9[%c0_51, %c0_52, %c0_53], %91 {strides = array<i32>} : memref<1x8x64xf32, #tpu.memory_space<vmem>>, vector<1x8x32xf32>,
    %c0_54 = arith.constant 0 : index
    %c0_55 = arith.constant 0 : index
    %c32 = arith.constant 32 : index
    %92 = vector.load %arg9[%c0_54, %c0_55, %c32] : memref<1x8x64xf32, #tpu.memory_space<vmem>>, vector<1x8x32xf32>
    %93 = vector.shape_cast %92 : vector<1x8x32xf32> to vector<8x32xf32>
    %94 = vector.shape_cast %88 : vector<8x32xf32> to vector<1x8x32xf32>
    tpu.vector_store %arg9[%c0_54, %c0_55, %c32], %94 {strides = array<i32>} : memref<1x8x64xf32, #tpu.memory_space<vmem>>, vector<1x8x32xf32>,
    return
  }
  func.func @transform_0(%arg0: i32, %arg1: i32) -> (i32, i32, i32) {
    %c0_i32 = arith.constant 0 : i32
    %c0_i32_0 = arith.constant 0 : i32
    return %arg0, %arg1, %c0_i32 : i32, i32, i32
  }
  func.func @transform_1(%arg0: i32, %arg1: i32) -> (i32, i32, i32, i32) {
    %c0_i32 = arith.constant 0 : i32
    %c0_i32_0 = arith.constant 0 : i32
    %c0_i32_1 = arith.constant 0 : i32
    return %arg0, %arg1, %c0_i32, %c0_i32_0 : i32, i32, i32, i32
  }
  func.func @transform_2(%arg0: i32, %arg1: i32) -> (i32, i32, i32) {
    %c0_i32 = arith.constant 0 : i32
    %c0_i32_0 = arith.constant 0 : i32
    return %arg0, %arg1, %c0_i32 : i32, i32, i32
  }
  func.func @transform_3(%arg0: i32, %arg1: i32) -> (i32, i32, i32) {
    %c0_i32 = arith.constant 0 : i32
    %c0_i32_0 = arith.constant 0 : i32
    return %arg0, %arg1, %c0_i32 : i32, i32, i32
  }
  func.func @transform_4(%arg0: i32, %arg1: i32) -> (i32, i32, i32) {
    %c0_i32 = arith.constant 0 : i32
    %c0_i32_0 = arith.constant 0 : i32
    %c0_i32_1 = arith.constant 0 : i32
    %c0_i32_2 = arith.constant 0 : i32
    return %c0_i32, %c0_i32_0, %c0_i32_1 : i32, i32, i32
  }
  func.func @transform_5(%arg0: i32, %arg1: i32) -> (i32, i32, i32) {
    %c0_i32 = arith.constant 0 : i32
    %c0_i32_0 = arith.constant 0 : i32
    %c0_i32_1 = arith.constant 0 : i32
    %c0_i32_2 = arith.constant 0 : i32
    return %c0_i32, %c0_i32_0, %c0_i32_1 : i32, i32, i32
  }
  func.func @transform_6(%arg0: i32, %arg1: i32) -> (i32, i32) {
    %c0_i32 = arith.constant 0 : i32
    %c0_i32_0 = arith.constant 0 : i32
    %c0_i32_1 = arith.constant 0 : i32
    return %c0_i32, %c0_i32_0 : i32, i32
  }
  func.func @transform_7(%arg0: i32, %arg1: i32) -> (i32, i32, i32) {
    %c0_i32 = arith.constant 0 : i32
    %c0_i32_0 = arith.constant 0 : i32
    return %arg0, %arg1, %c0_i32 : i32, i32, i32
  }
}

module attributes {stable_mosaic.version = 11 : i64} {
  func.func @_upsample_iter_kernel(%arg0: i32, %arg1: i32, %arg2: memref<1x16x32xf32, #tpu.memory_space<vmem>>, %arg3: memref<1x1x2x32xf32, #tpu.memory_space<vmem>>, %arg4: memref<1x16x2xi8, #tpu.memory_space<vmem>>, %arg5: memref<1x16x64xf32, #tpu.memory_space<vmem>>, %arg6: memref<4x32x32xf32, #tpu.memory_space<vmem>>, %arg7: memref<2x32x32xf32, #tpu.memory_space<vmem>>, %arg8: memref<2x32xf32, #tpu.memory_space<vmem>>, %arg9: memref<1x16x64xf32, #tpu.memory_space<vmem>>) attributes {dimension_semantics = [#tpu.dimension_semantics<parallel>, #tpu.dimension_semantics<parallel>], iteration_bounds = array<i64: 2, 1>, scalar_prefetch = 0 : i64, scratch_operands = 0 : i64, tpu.core_type = #tpu.core_type<tc>, window_params = [{transform_indices = @transform_0, window_bounds = array<i64: 1, 16, 32>}, {transform_indices = @transform_1, window_bounds = array<i64: 1, 1, 2, 32>}, {transform_indices = @transform_2, window_bounds = array<i64: 1, 16, 2>}, {transform_indices = @transform_3, window_bounds = array<i64: 1, 16, 64>}, {pipeline_mode = #tpu.pipeline_mode<synchronous>, transform_indices = @transform_4, window_bounds = array<i64: 4, 32, 32>}, {pipeline_mode = #tpu.pipeline_mode<synchronous>, transform_indices = @transform_5, window_bounds = array<i64: 2, 32, 32>}, {pipeline_mode = #tpu.pipeline_mode<synchronous>, transform_indices = @transform_6, window_bounds = array<i64: 2, 32>}, {transform_indices = @transform_7, window_bounds = array<i64: 1, 16, 64>}]} {
    %c0 = arith.constant 0 : index
    %c0_0 = arith.constant 0 : index
    %c0_1 = arith.constant 0 : index
    %0 = vector.load %arg2[%c0, %c0_0, %c0_1] : memref<1x16x32xf32, #tpu.memory_space<vmem>>, vector<1x16x32xf32>
    %1 = vector.shape_cast %0 : vector<1x16x32xf32> to vector<16x32xf32>
    %c0_2 = arith.constant 0 : index
    %c0_3 = arith.constant 0 : index
    %c0_4 = arith.constant 0 : index
    %c0_5 = arith.constant 0 : index
    %2 = vector.load %arg3[%c0_2, %c0_3, %c0_4, %c0_5] : memref<1x1x2x32xf32, #tpu.memory_space<vmem>>, vector<1x1x2x32xf32>
    %3 = vector.shape_cast %2 : vector<1x1x2x32xf32> to vector<2x32xf32>
    %c0_6 = arith.constant 0 : index
    %c0_7 = arith.constant 0 : index
    %4 = vector.load %arg8[%c0_6, %c0_7] : memref<2x32xf32, #tpu.memory_space<vmem>>, vector<2x32xf32>
    %5 = vector.extract_strided_slice %4 {offsets = [0, 0], sizes = [1, 32], strides = [1, 1]} : vector<2x32xf32> to vector<1x32xf32>
    %6 = vector.extract_strided_slice %4 {offsets = [1, 0], sizes = [1, 32], strides = [1, 1]} : vector<2x32xf32> to vector<1x32xf32>
    %c0_8 = arith.constant 0 : index
    %c0_9 = arith.constant 0 : index
    %c0_10 = arith.constant 0 : index
    %7 = vector.load %arg6[%c0_8, %c0_9, %c0_10] : memref<4x32x32xf32, #tpu.memory_space<vmem>>, vector<1x32x32xf32>
    %8 = vector.shape_cast %7 : vector<1x32x32xf32> to vector<32x32xf32>
    %cst = arith.constant dense<0.000000e+00> : vector<16x32xf32>
    %9 = tpu.matmul %1, %8, %cst {dimension_numbers = #tpu.dot_dimension_numbers<[1], [0], [0], [1], [0, 0, 1, 1], [], []>} : vector<16x32xf32>, vector<32x32xf32>, vector<16x32xf32> -> vector<16x32xf32>
    %c2 = arith.constant 2 : index
    %c0_11 = arith.constant 0 : index
    %c0_12 = arith.constant 0 : index
    %10 = vector.load %arg6[%c2, %c0_11, %c0_12] : memref<4x32x32xf32, #tpu.memory_space<vmem>>, vector<1x32x32xf32>
    %11 = vector.shape_cast %10 : vector<1x32x32xf32> to vector<32x32xf32>
    %cst_13 = arith.constant dense<0.000000e+00> : vector<16x32xf32>
    %12 = tpu.matmul %1, %11, %cst_13 {dimension_numbers = #tpu.dot_dimension_numbers<[1], [0], [0], [1], [0, 0, 1, 1], [], []>} : vector<16x32xf32>, vector<32x32xf32>, vector<16x32xf32> -> vector<16x32xf32>
    %c1 = arith.constant 1 : index
    %c0_14 = arith.constant 0 : index
    %c0_15 = arith.constant 0 : index
    %13 = vector.load %arg6[%c1, %c0_14, %c0_15] : memref<4x32x32xf32, #tpu.memory_space<vmem>>, vector<1x32x32xf32>
    %14 = vector.shape_cast %13 : vector<1x32x32xf32> to vector<32x32xf32>
    %cst_16 = arith.constant dense<0.000000e+00> : vector<16x32xf32>
    %15 = tpu.matmul %1, %14, %cst_16 {dimension_numbers = #tpu.dot_dimension_numbers<[1], [0], [0], [1], [0, 0, 1, 1], [], []>} : vector<16x32xf32>, vector<32x32xf32>, vector<16x32xf32> -> vector<16x32xf32>
    %c3 = arith.constant 3 : index
    %c0_17 = arith.constant 0 : index
    %c0_18 = arith.constant 0 : index
    %16 = vector.load %arg6[%c3, %c0_17, %c0_18] : memref<4x32x32xf32, #tpu.memory_space<vmem>>, vector<1x32x32xf32>
    %17 = vector.shape_cast %16 : vector<1x32x32xf32> to vector<32x32xf32>
    %cst_19 = arith.constant dense<0.000000e+00> : vector<16x32xf32>
    %18 = tpu.matmul %1, %17, %cst_19 {dimension_numbers = #tpu.dot_dimension_numbers<[1], [0], [0], [1], [0, 0, 1, 1], [], []>} : vector<16x32xf32>, vector<32x32xf32>, vector<16x32xf32> -> vector<16x32xf32>
    %19 = vector.extract_strided_slice %3 {offsets = [0, 0], sizes = [1, 32], strides = [1, 1]} : vector<2x32xf32> to vector<1x32xf32>
    %c1_20 = arith.constant 1 : index
    %c0_21 = arith.constant 0 : index
    %c0_22 = arith.constant 0 : index
    %20 = vector.load %arg6[%c1_20, %c0_21, %c0_22] : memref<4x32x32xf32, #tpu.memory_space<vmem>>, vector<1x32x32xf32>
    %21 = vector.shape_cast %20 : vector<1x32x32xf32> to vector<32x32xf32>
    %cst_23 = arith.constant dense<0.000000e+00> : vector<1x32xf32>
    %22 = tpu.matmul %19, %21, %cst_23 {dimension_numbers = #tpu.dot_dimension_numbers<[1], [0], [0], [1], [0, 0, 1, 1], [], []>} : vector<1x32xf32>, vector<32x32xf32>, vector<1x32xf32> -> vector<1x32xf32>
    %23 = vector.extract_strided_slice %3 {offsets = [1, 0], sizes = [1, 32], strides = [1, 1]} : vector<2x32xf32> to vector<1x32xf32>
    %c3_24 = arith.constant 3 : index
    %c0_25 = arith.constant 0 : index
    %c0_26 = arith.constant 0 : index
    %24 = vector.load %arg6[%c3_24, %c0_25, %c0_26] : memref<4x32x32xf32, #tpu.memory_space<vmem>>, vector<1x32x32xf32>
    %25 = vector.shape_cast %24 : vector<1x32x32xf32> to vector<32x32xf32>
    %cst_27 = arith.constant dense<0.000000e+00> : vector<1x32xf32>
    %26 = tpu.matmul %23, %25, %cst_27 {dimension_numbers = #tpu.dot_dimension_numbers<[1], [0], [0], [1], [0, 0, 1, 1], [], []>} : vector<1x32xf32>, vector<32x32xf32>, vector<1x32xf32> -> vector<1x32xf32>
    %27 = tpu.iota {dimensions = array<i32: 0>} : vector<16x1xi32>
    %c0_i32 = arith.constant 0 : i32
    %28 = vector.broadcast %c0_i32 : i32 to vector<16x1xi32>
    %29 = arith.cmpi eq, %27, %28 : vector<16x1xi32>
    %30 = vector.shape_cast %22 : vector<1x32xf32> to vector<1x32xf32>
    %31 = vector.broadcast %30 : vector<1x32xf32> to vector<16x32xf32>
    %c1_i32 = arith.constant 1 : i32
    %32 = tpu.dynamic_rotate %15 by %c1_i32 dim 0 : vector<16x32xf32>, i32 -> vector<16x32xf32>
    %33 = vector.shape_cast %29 : vector<16x1xi1> to vector<16x1xi1>
    %34 = vector.broadcast %33 : vector<16x1xi1> to vector<16x32xi1>
    %35 = arith.select %34, %31, %32 : vector<16x32xi1>, vector<16x32xf32>
    %c15_i32 = arith.constant 15 : i32
    %36 = vector.broadcast %c15_i32 : i32 to vector<16x1xi32>
    %37 = arith.cmpi eq, %27, %36 : vector<16x1xi32>
    %38 = vector.shape_cast %26 : vector<1x32xf32> to vector<1x32xf32>
    %39 = vector.broadcast %38 : vector<1x32xf32> to vector<16x32xf32>
    %c15_i32_28 = arith.constant 15 : i32
    %40 = tpu.dynamic_rotate %18 by %c15_i32_28 dim 0 : vector<16x32xf32>, i32 -> vector<16x32xf32>
    %41 = vector.shape_cast %37 : vector<16x1xi1> to vector<16x1xi1>
    %42 = vector.broadcast %41 : vector<16x1xi1> to vector<16x32xi1>
    %43 = arith.select %42, %39, %40 : vector<16x32xi1>, vector<16x32xf32>
    %44 = arith.addf %9, %35 : vector<16x32xf32>
    %45 = vector.broadcast %5 : vector<1x32xf32> to vector<16x32xf32>
    %46 = arith.addf %44, %45 : vector<16x32xf32>
    %47 = arith.addf %12, %43 : vector<16x32xf32>
    %48 = vector.broadcast %5 : vector<1x32xf32> to vector<16x32xf32>
    %49 = arith.addf %47, %48 : vector<16x32xf32>
    %c0_29 = arith.constant 0 : index
    %c0_30 = arith.constant 0 : index
    %c0_31 = arith.constant 0 : index
    %50 = vector.load %arg4[%c0_29, %c0_30, %c0_31] : memref<1x16x2xi8, #tpu.memory_space<vmem>>, vector<1x16x2xi8>
    %51 = vector.shape_cast %50 : vector<1x16x2xi8> to vector<16x2xi8>
    %52 = arith.sitofp %51 : vector<16x2xi8> to vector<16x2xf32>
    %53 = vector.extract_strided_slice %52 {offsets = [0, 0], sizes = [16, 1], strides = [1, 1]} : vector<16x2xf32> to vector<16x1xf32>
    %cst_32 = arith.constant 5.000000e-01 : f32
    %54 = vector.broadcast %cst_32 : f32 to vector<16x1xf32>
    %55 = arith.cmpf olt, %53, %54 : vector<16x1xf32>
    %cst_33 = arith.constant 0.000000e+00 : f32
    %56 = vector.broadcast %cst_33 : f32 to vector<16x32xf32>
    %57 = arith.maximumf %46, %56 : vector<16x32xf32>
    %cst_34 = arith.constant 0.000000e+00 : f32
    %58 = vector.shape_cast %55 : vector<16x1xi1> to vector<16x1xi1>
    %59 = vector.broadcast %58 : vector<16x1xi1> to vector<16x32xi1>
    %60 = vector.broadcast %cst_34 : f32 to vector<16x32xf32>
    %61 = arith.select %59, %57, %60 : vector<16x32xi1>, vector<16x32xf32>
    %62 = vector.extract_strided_slice %52 {offsets = [0, 1], sizes = [16, 1], strides = [1, 1]} : vector<16x2xf32> to vector<16x1xf32>
    %cst_35 = arith.constant 5.000000e-01 : f32
    %63 = vector.broadcast %cst_35 : f32 to vector<16x1xf32>
    %64 = arith.cmpf olt, %62, %63 : vector<16x1xf32>
    %cst_36 = arith.constant 0.000000e+00 : f32
    %65 = vector.broadcast %cst_36 : f32 to vector<16x32xf32>
    %66 = arith.maximumf %49, %65 : vector<16x32xf32>
    %cst_37 = arith.constant 0.000000e+00 : f32
    %67 = vector.shape_cast %64 : vector<16x1xi1> to vector<16x1xi1>
    %68 = vector.broadcast %67 : vector<16x1xi1> to vector<16x32xi1>
    %69 = vector.broadcast %cst_37 : f32 to vector<16x32xf32>
    %70 = arith.select %68, %66, %69 : vector<16x32xi1>, vector<16x32xf32>
    %c0_38 = arith.constant 0 : index
    %c0_39 = arith.constant 0 : index
    %c0_40 = arith.constant 0 : index
    %71 = vector.load %arg5[%c0_38, %c0_39, %c0_40] : memref<1x16x64xf32, #tpu.memory_space<vmem>>, vector<1x16x64xf32>
    %72 = vector.shape_cast %71 : vector<1x16x64xf32> to vector<16x64xf32>
    %c0_41 = arith.constant 0 : index
    %c0_42 = arith.constant 0 : index
    %c0_43 = arith.constant 0 : index
    %73 = vector.load %arg7[%c0_41, %c0_42, %c0_43] : memref<2x32x32xf32, #tpu.memory_space<vmem>>, vector<1x32x32xf32>
    %74 = vector.shape_cast %73 : vector<1x32x32xf32> to vector<32x32xf32>
    %c1_44 = arith.constant 1 : index
    %c0_45 = arith.constant 0 : index
    %c0_46 = arith.constant 0 : index
    %75 = vector.load %arg7[%c1_44, %c0_45, %c0_46] : memref<2x32x32xf32, #tpu.memory_space<vmem>>, vector<1x32x32xf32>
    %76 = vector.shape_cast %75 : vector<1x32x32xf32> to vector<32x32xf32>
    %cst_47 = arith.constant dense<0.000000e+00> : vector<16x32xf32>
    %77 = tpu.matmul %61, %74, %cst_47 {dimension_numbers = #tpu.dot_dimension_numbers<[1], [0], [0], [1], [0, 0, 1, 1], [], []>} : vector<16x32xf32>, vector<32x32xf32>, vector<16x32xf32> -> vector<16x32xf32>
    %78 = vector.extract_strided_slice %72 {offsets = [0, 0], sizes = [16, 32], strides = [1, 1]} : vector<16x64xf32> to vector<16x32xf32>
    %cst_48 = arith.constant dense<0.000000e+00> : vector<16x32xf32>
    %79 = tpu.matmul %78, %76, %cst_48 {dimension_numbers = #tpu.dot_dimension_numbers<[1], [0], [0], [1], [0, 0, 1, 1], [], []>} : vector<16x32xf32>, vector<32x32xf32>, vector<16x32xf32> -> vector<16x32xf32>
    %80 = arith.addf %77, %79 : vector<16x32xf32>
    %81 = vector.broadcast %6 : vector<1x32xf32> to vector<16x32xf32>
    %82 = arith.addf %80, %81 : vector<16x32xf32>
    %cst_49 = arith.constant dense<0.000000e+00> : vector<16x32xf32>
    %83 = tpu.matmul %70, %74, %cst_49 {dimension_numbers = #tpu.dot_dimension_numbers<[1], [0], [0], [1], [0, 0, 1, 1], [], []>} : vector<16x32xf32>, vector<32x32xf32>, vector<16x32xf32> -> vector<16x32xf32>
    %84 = vector.extract_strided_slice %72 {offsets = [0, 32], sizes = [16, 32], strides = [1, 1]} : vector<16x64xf32> to vector<16x32xf32>
    %cst_50 = arith.constant dense<0.000000e+00> : vector<16x32xf32>
    %85 = tpu.matmul %84, %76, %cst_50 {dimension_numbers = #tpu.dot_dimension_numbers<[1], [0], [0], [1], [0, 0, 1, 1], [], []>} : vector<16x32xf32>, vector<32x32xf32>, vector<16x32xf32> -> vector<16x32xf32>
    %86 = arith.addf %83, %85 : vector<16x32xf32>
    %87 = vector.broadcast %6 : vector<1x32xf32> to vector<16x32xf32>
    %88 = arith.addf %86, %87 : vector<16x32xf32>
    %c0_51 = arith.constant 0 : index
    %c0_52 = arith.constant 0 : index
    %c0_53 = arith.constant 0 : index
    %89 = vector.load %arg9[%c0_51, %c0_52, %c0_53] : memref<1x16x64xf32, #tpu.memory_space<vmem>>, vector<1x16x32xf32>
    %90 = vector.shape_cast %89 : vector<1x16x32xf32> to vector<16x32xf32>
    %91 = vector.shape_cast %82 : vector<16x32xf32> to vector<1x16x32xf32>
    tpu.vector_store %arg9[%c0_51, %c0_52, %c0_53], %91 {strides = array<i32>} : memref<1x16x64xf32, #tpu.memory_space<vmem>>, vector<1x16x32xf32>,
    %c0_54 = arith.constant 0 : index
    %c0_55 = arith.constant 0 : index
    %c32 = arith.constant 32 : index
    %92 = vector.load %arg9[%c0_54, %c0_55, %c32] : memref<1x16x64xf32, #tpu.memory_space<vmem>>, vector<1x16x32xf32>
    %93 = vector.shape_cast %92 : vector<1x16x32xf32> to vector<16x32xf32>
    %94 = vector.shape_cast %88 : vector<16x32xf32> to vector<1x16x32xf32>
    tpu.vector_store %arg9[%c0_54, %c0_55, %c32], %94 {strides = array<i32>} : memref<1x16x64xf32, #tpu.memory_space<vmem>>, vector<1x16x32xf32>,
    return
  }
  func.func @transform_0(%arg0: i32, %arg1: i32) -> (i32, i32, i32) {
    %c0_i32 = arith.constant 0 : i32
    %c0_i32_0 = arith.constant 0 : i32
    return %arg0, %arg1, %c0_i32 : i32, i32, i32
  }
  func.func @transform_1(%arg0: i32, %arg1: i32) -> (i32, i32, i32, i32) {
    %c0_i32 = arith.constant 0 : i32
    %c0_i32_0 = arith.constant 0 : i32
    %c0_i32_1 = arith.constant 0 : i32
    return %arg0, %arg1, %c0_i32, %c0_i32_0 : i32, i32, i32, i32
  }
  func.func @transform_2(%arg0: i32, %arg1: i32) -> (i32, i32, i32) {
    %c0_i32 = arith.constant 0 : i32
    %c0_i32_0 = arith.constant 0 : i32
    return %arg0, %arg1, %c0_i32 : i32, i32, i32
  }
  func.func @transform_3(%arg0: i32, %arg1: i32) -> (i32, i32, i32) {
    %c0_i32 = arith.constant 0 : i32
    %c0_i32_0 = arith.constant 0 : i32
    return %arg0, %arg1, %c0_i32 : i32, i32, i32
  }
  func.func @transform_4(%arg0: i32, %arg1: i32) -> (i32, i32, i32) {
    %c0_i32 = arith.constant 0 : i32
    %c0_i32_0 = arith.constant 0 : i32
    %c0_i32_1 = arith.constant 0 : i32
    %c0_i32_2 = arith.constant 0 : i32
    return %c0_i32, %c0_i32_0, %c0_i32_1 : i32, i32, i32
  }
  func.func @transform_5(%arg0: i32, %arg1: i32) -> (i32, i32, i32) {
    %c0_i32 = arith.constant 0 : i32
    %c0_i32_0 = arith.constant 0 : i32
    %c0_i32_1 = arith.constant 0 : i32
    %c0_i32_2 = arith.constant 0 : i32
    return %c0_i32, %c0_i32_0, %c0_i32_1 : i32, i32, i32
  }
  func.func @transform_6(%arg0: i32, %arg1: i32) -> (i32, i32) {
    %c0_i32 = arith.constant 0 : i32
    %c0_i32_0 = arith.constant 0 : i32
    %c0_i32_1 = arith.constant 0 : i32
    return %c0_i32, %c0_i32_0 : i32, i32
  }
  func.func @transform_7(%arg0: i32, %arg1: i32) -> (i32, i32, i32) {
    %c0_i32 = arith.constant 0 : i32
    %c0_i32_0 = arith.constant 0 : i32
    return %arg0, %arg1, %c0_i32 : i32, i32, i32
  }
}

module attributes {stable_mosaic.version = 11 : i64} {
  func.func @_upsample_iter_kernel(%arg0: i32, %arg1: i32, %arg2: memref<1x32x32xf32, #tpu.memory_space<vmem>>, %arg3: memref<1x1x2x32xf32, #tpu.memory_space<vmem>>, %arg4: memref<1x32x2xi8, #tpu.memory_space<vmem>>, %arg5: memref<1x32x64xf32, #tpu.memory_space<vmem>>, %arg6: memref<4x32x32xf32, #tpu.memory_space<vmem>>, %arg7: memref<2x32x32xf32, #tpu.memory_space<vmem>>, %arg8: memref<2x32xf32, #tpu.memory_space<vmem>>, %arg9: memref<1x32x64xf32, #tpu.memory_space<vmem>>) attributes {dimension_semantics = [#tpu.dimension_semantics<parallel>, #tpu.dimension_semantics<parallel>], iteration_bounds = array<i64: 2, 1>, scalar_prefetch = 0 : i64, scratch_operands = 0 : i64, tpu.core_type = #tpu.core_type<tc>, window_params = [{transform_indices = @transform_0, window_bounds = array<i64: 1, 32, 32>}, {transform_indices = @transform_1, window_bounds = array<i64: 1, 1, 2, 32>}, {transform_indices = @transform_2, window_bounds = array<i64: 1, 32, 2>}, {transform_indices = @transform_3, window_bounds = array<i64: 1, 32, 64>}, {pipeline_mode = #tpu.pipeline_mode<synchronous>, transform_indices = @transform_4, window_bounds = array<i64: 4, 32, 32>}, {pipeline_mode = #tpu.pipeline_mode<synchronous>, transform_indices = @transform_5, window_bounds = array<i64: 2, 32, 32>}, {pipeline_mode = #tpu.pipeline_mode<synchronous>, transform_indices = @transform_6, window_bounds = array<i64: 2, 32>}, {transform_indices = @transform_7, window_bounds = array<i64: 1, 32, 64>}]} {
    %c0 = arith.constant 0 : index
    %c0_0 = arith.constant 0 : index
    %c0_1 = arith.constant 0 : index
    %0 = vector.load %arg2[%c0, %c0_0, %c0_1] : memref<1x32x32xf32, #tpu.memory_space<vmem>>, vector<1x32x32xf32>
    %1 = vector.shape_cast %0 : vector<1x32x32xf32> to vector<32x32xf32>
    %c0_2 = arith.constant 0 : index
    %c0_3 = arith.constant 0 : index
    %c0_4 = arith.constant 0 : index
    %c0_5 = arith.constant 0 : index
    %2 = vector.load %arg3[%c0_2, %c0_3, %c0_4, %c0_5] : memref<1x1x2x32xf32, #tpu.memory_space<vmem>>, vector<1x1x2x32xf32>
    %3 = vector.shape_cast %2 : vector<1x1x2x32xf32> to vector<2x32xf32>
    %c0_6 = arith.constant 0 : index
    %c0_7 = arith.constant 0 : index
    %4 = vector.load %arg8[%c0_6, %c0_7] : memref<2x32xf32, #tpu.memory_space<vmem>>, vector<2x32xf32>
    %5 = vector.extract_strided_slice %4 {offsets = [0, 0], sizes = [1, 32], strides = [1, 1]} : vector<2x32xf32> to vector<1x32xf32>
    %6 = vector.extract_strided_slice %4 {offsets = [1, 0], sizes = [1, 32], strides = [1, 1]} : vector<2x32xf32> to vector<1x32xf32>
    %c0_8 = arith.constant 0 : index
    %c0_9 = arith.constant 0 : index
    %c0_10 = arith.constant 0 : index
    %7 = vector.load %arg6[%c0_8, %c0_9, %c0_10] : memref<4x32x32xf32, #tpu.memory_space<vmem>>, vector<1x32x32xf32>
    %8 = vector.shape_cast %7 : vector<1x32x32xf32> to vector<32x32xf32>
    %cst = arith.constant dense<0.000000e+00> : vector<32x32xf32>
    %9 = tpu.matmul %1, %8, %cst {dimension_numbers = #tpu.dot_dimension_numbers<[1], [0], [0], [1], [0, 0, 1, 1], [], []>} : vector<32x32xf32>, vector<32x32xf32>, vector<32x32xf32> -> vector<32x32xf32>
    %c2 = arith.constant 2 : index
    %c0_11 = arith.constant 0 : index
    %c0_12 = arith.constant 0 : index
    %10 = vector.load %arg6[%c2, %c0_11, %c0_12] : memref<4x32x32xf32, #tpu.memory_space<vmem>>, vector<1x32x32xf32>
    %11 = vector.shape_cast %10 : vector<1x32x32xf32> to vector<32x32xf32>
    %cst_13 = arith.constant dense<0.000000e+00> : vector<32x32xf32>
    %12 = tpu.matmul %1, %11, %cst_13 {dimension_numbers = #tpu.dot_dimension_numbers<[1], [0], [0], [1], [0, 0, 1, 1], [], []>} : vector<32x32xf32>, vector<32x32xf32>, vector<32x32xf32> -> vector<32x32xf32>
    %c1 = arith.constant 1 : index
    %c0_14 = arith.constant 0 : index
    %c0_15 = arith.constant 0 : index
    %13 = vector.load %arg6[%c1, %c0_14, %c0_15] : memref<4x32x32xf32, #tpu.memory_space<vmem>>, vector<1x32x32xf32>
    %14 = vector.shape_cast %13 : vector<1x32x32xf32> to vector<32x32xf32>
    %cst_16 = arith.constant dense<0.000000e+00> : vector<32x32xf32>
    %15 = tpu.matmul %1, %14, %cst_16 {dimension_numbers = #tpu.dot_dimension_numbers<[1], [0], [0], [1], [0, 0, 1, 1], [], []>} : vector<32x32xf32>, vector<32x32xf32>, vector<32x32xf32> -> vector<32x32xf32>
    %c3 = arith.constant 3 : index
    %c0_17 = arith.constant 0 : index
    %c0_18 = arith.constant 0 : index
    %16 = vector.load %arg6[%c3, %c0_17, %c0_18] : memref<4x32x32xf32, #tpu.memory_space<vmem>>, vector<1x32x32xf32>
    %17 = vector.shape_cast %16 : vector<1x32x32xf32> to vector<32x32xf32>
    %cst_19 = arith.constant dense<0.000000e+00> : vector<32x32xf32>
    %18 = tpu.matmul %1, %17, %cst_19 {dimension_numbers = #tpu.dot_dimension_numbers<[1], [0], [0], [1], [0, 0, 1, 1], [], []>} : vector<32x32xf32>, vector<32x32xf32>, vector<32x32xf32> -> vector<32x32xf32>
    %19 = vector.extract_strided_slice %3 {offsets = [0, 0], sizes = [1, 32], strides = [1, 1]} : vector<2x32xf32> to vector<1x32xf32>
    %c1_20 = arith.constant 1 : index
    %c0_21 = arith.constant 0 : index
    %c0_22 = arith.constant 0 : index
    %20 = vector.load %arg6[%c1_20, %c0_21, %c0_22] : memref<4x32x32xf32, #tpu.memory_space<vmem>>, vector<1x32x32xf32>
    %21 = vector.shape_cast %20 : vector<1x32x32xf32> to vector<32x32xf32>
    %cst_23 = arith.constant dense<0.000000e+00> : vector<1x32xf32>
    %22 = tpu.matmul %19, %21, %cst_23 {dimension_numbers = #tpu.dot_dimension_numbers<[1], [0], [0], [1], [0, 0, 1, 1], [], []>} : vector<1x32xf32>, vector<32x32xf32>, vector<1x32xf32> -> vector<1x32xf32>
    %23 = vector.extract_strided_slice %3 {offsets = [1, 0], sizes = [1, 32], strides = [1, 1]} : vector<2x32xf32> to vector<1x32xf32>
    %c3_24 = arith.constant 3 : index
    %c0_25 = arith.constant 0 : index
    %c0_26 = arith.constant 0 : index
    %24 = vector.load %arg6[%c3_24, %c0_25, %c0_26] : memref<4x32x32xf32, #tpu.memory_space<vmem>>, vector<1x32x32xf32>
    %25 = vector.shape_cast %24 : vector<1x32x32xf32> to vector<32x32xf32>
    %cst_27 = arith.constant dense<0.000000e+00> : vector<1x32xf32>
    %26 = tpu.matmul %23, %25, %cst_27 {dimension_numbers = #tpu.dot_dimension_numbers<[1], [0], [0], [1], [0, 0, 1, 1], [], []>} : vector<1x32xf32>, vector<32x32xf32>, vector<1x32xf32> -> vector<1x32xf32>
    %27 = tpu.iota {dimensions = array<i32: 0>} : vector<32x1xi32>
    %c0_i32 = arith.constant 0 : i32
    %28 = vector.broadcast %c0_i32 : i32 to vector<32x1xi32>
    %29 = arith.cmpi eq, %27, %28 : vector<32x1xi32>
    %30 = vector.shape_cast %22 : vector<1x32xf32> to vector<1x32xf32>
    %31 = vector.broadcast %30 : vector<1x32xf32> to vector<32x32xf32>
    %c1_i32 = arith.constant 1 : i32
    %32 = tpu.dynamic_rotate %15 by %c1_i32 dim 0 : vector<32x32xf32>, i32 -> vector<32x32xf32>
    %33 = vector.shape_cast %29 : vector<32x1xi1> to vector<32x1xi1>
    %34 = vector.broadcast %33 : vector<32x1xi1> to vector<32x32xi1>
    %35 = arith.select %34, %31, %32 : vector<32x32xi1>, vector<32x32xf32>
    %c31_i32 = arith.constant 31 : i32
    %36 = vector.broadcast %c31_i32 : i32 to vector<32x1xi32>
    %37 = arith.cmpi eq, %27, %36 : vector<32x1xi32>
    %38 = vector.shape_cast %26 : vector<1x32xf32> to vector<1x32xf32>
    %39 = vector.broadcast %38 : vector<1x32xf32> to vector<32x32xf32>
    %c31_i32_28 = arith.constant 31 : i32
    %40 = tpu.dynamic_rotate %18 by %c31_i32_28 dim 0 : vector<32x32xf32>, i32 -> vector<32x32xf32>
    %41 = vector.shape_cast %37 : vector<32x1xi1> to vector<32x1xi1>
    %42 = vector.broadcast %41 : vector<32x1xi1> to vector<32x32xi1>
    %43 = arith.select %42, %39, %40 : vector<32x32xi1>, vector<32x32xf32>
    %44 = arith.addf %9, %35 : vector<32x32xf32>
    %45 = vector.broadcast %5 : vector<1x32xf32> to vector<32x32xf32>
    %46 = arith.addf %44, %45 : vector<32x32xf32>
    %47 = arith.addf %12, %43 : vector<32x32xf32>
    %48 = vector.broadcast %5 : vector<1x32xf32> to vector<32x32xf32>
    %49 = arith.addf %47, %48 : vector<32x32xf32>
    %c0_29 = arith.constant 0 : index
    %c0_30 = arith.constant 0 : index
    %c0_31 = arith.constant 0 : index
    %50 = vector.load %arg4[%c0_29, %c0_30, %c0_31] : memref<1x32x2xi8, #tpu.memory_space<vmem>>, vector<1x32x2xi8>
    %51 = vector.shape_cast %50 : vector<1x32x2xi8> to vector<32x2xi8>
    %52 = arith.sitofp %51 : vector<32x2xi8> to vector<32x2xf32>
    %53 = vector.extract_strided_slice %52 {offsets = [0, 0], sizes = [32, 1], strides = [1, 1]} : vector<32x2xf32> to vector<32x1xf32>
    %cst_32 = arith.constant 5.000000e-01 : f32
    %54 = vector.broadcast %cst_32 : f32 to vector<32x1xf32>
    %55 = arith.cmpf olt, %53, %54 : vector<32x1xf32>
    %cst_33 = arith.constant 0.000000e+00 : f32
    %56 = vector.broadcast %cst_33 : f32 to vector<32x32xf32>
    %57 = arith.maximumf %46, %56 : vector<32x32xf32>
    %cst_34 = arith.constant 0.000000e+00 : f32
    %58 = vector.shape_cast %55 : vector<32x1xi1> to vector<32x1xi1>
    %59 = vector.broadcast %58 : vector<32x1xi1> to vector<32x32xi1>
    %60 = vector.broadcast %cst_34 : f32 to vector<32x32xf32>
    %61 = arith.select %59, %57, %60 : vector<32x32xi1>, vector<32x32xf32>
    %62 = vector.extract_strided_slice %52 {offsets = [0, 1], sizes = [32, 1], strides = [1, 1]} : vector<32x2xf32> to vector<32x1xf32>
    %cst_35 = arith.constant 5.000000e-01 : f32
    %63 = vector.broadcast %cst_35 : f32 to vector<32x1xf32>
    %64 = arith.cmpf olt, %62, %63 : vector<32x1xf32>
    %cst_36 = arith.constant 0.000000e+00 : f32
    %65 = vector.broadcast %cst_36 : f32 to vector<32x32xf32>
    %66 = arith.maximumf %49, %65 : vector<32x32xf32>
    %cst_37 = arith.constant 0.000000e+00 : f32
    %67 = vector.shape_cast %64 : vector<32x1xi1> to vector<32x1xi1>
    %68 = vector.broadcast %67 : vector<32x1xi1> to vector<32x32xi1>
    %69 = vector.broadcast %cst_37 : f32 to vector<32x32xf32>
    %70 = arith.select %68, %66, %69 : vector<32x32xi1>, vector<32x32xf32>
    %c0_38 = arith.constant 0 : index
    %c0_39 = arith.constant 0 : index
    %c0_40 = arith.constant 0 : index
    %71 = vector.load %arg5[%c0_38, %c0_39, %c0_40] : memref<1x32x64xf32, #tpu.memory_space<vmem>>, vector<1x32x64xf32>
    %72 = vector.shape_cast %71 : vector<1x32x64xf32> to vector<32x64xf32>
    %c0_41 = arith.constant 0 : index
    %c0_42 = arith.constant 0 : index
    %c0_43 = arith.constant 0 : index
    %73 = vector.load %arg7[%c0_41, %c0_42, %c0_43] : memref<2x32x32xf32, #tpu.memory_space<vmem>>, vector<1x32x32xf32>
    %74 = vector.shape_cast %73 : vector<1x32x32xf32> to vector<32x32xf32>
    %c1_44 = arith.constant 1 : index
    %c0_45 = arith.constant 0 : index
    %c0_46 = arith.constant 0 : index
    %75 = vector.load %arg7[%c1_44, %c0_45, %c0_46] : memref<2x32x32xf32, #tpu.memory_space<vmem>>, vector<1x32x32xf32>
    %76 = vector.shape_cast %75 : vector<1x32x32xf32> to vector<32x32xf32>
    %cst_47 = arith.constant dense<0.000000e+00> : vector<32x32xf32>
    %77 = tpu.matmul %61, %74, %cst_47 {dimension_numbers = #tpu.dot_dimension_numbers<[1], [0], [0], [1], [0, 0, 1, 1], [], []>} : vector<32x32xf32>, vector<32x32xf32>, vector<32x32xf32> -> vector<32x32xf32>
    %78 = vector.extract_strided_slice %72 {offsets = [0, 0], sizes = [32, 32], strides = [1, 1]} : vector<32x64xf32> to vector<32x32xf32>
    %cst_48 = arith.constant dense<0.000000e+00> : vector<32x32xf32>
    %79 = tpu.matmul %78, %76, %cst_48 {dimension_numbers = #tpu.dot_dimension_numbers<[1], [0], [0], [1], [0, 0, 1, 1], [], []>} : vector<32x32xf32>, vector<32x32xf32>, vector<32x32xf32> -> vector<32x32xf32>
    %80 = arith.addf %77, %79 : vector<32x32xf32>
    %81 = vector.broadcast %6 : vector<1x32xf32> to vector<32x32xf32>
    %82 = arith.addf %80, %81 : vector<32x32xf32>
    %cst_49 = arith.constant dense<0.000000e+00> : vector<32x32xf32>
    %83 = tpu.matmul %70, %74, %cst_49 {dimension_numbers = #tpu.dot_dimension_numbers<[1], [0], [0], [1], [0, 0, 1, 1], [], []>} : vector<32x32xf32>, vector<32x32xf32>, vector<32x32xf32> -> vector<32x32xf32>
    %84 = vector.extract_strided_slice %72 {offsets = [0, 32], sizes = [32, 32], strides = [1, 1]} : vector<32x64xf32> to vector<32x32xf32>
    %cst_50 = arith.constant dense<0.000000e+00> : vector<32x32xf32>
    %85 = tpu.matmul %84, %76, %cst_50 {dimension_numbers = #tpu.dot_dimension_numbers<[1], [0], [0], [1], [0, 0, 1, 1], [], []>} : vector<32x32xf32>, vector<32x32xf32>, vector<32x32xf32> -> vector<32x32xf32>
    %86 = arith.addf %83, %85 : vector<32x32xf32>
    %87 = vector.broadcast %6 : vector<1x32xf32> to vector<32x32xf32>
    %88 = arith.addf %86, %87 : vector<32x32xf32>
    %c0_51 = arith.constant 0 : index
    %c0_52 = arith.constant 0 : index
    %c0_53 = arith.constant 0 : index
    %89 = vector.load %arg9[%c0_51, %c0_52, %c0_53] : memref<1x32x64xf32, #tpu.memory_space<vmem>>, vector<1x32x32xf32>
    %90 = vector.shape_cast %89 : vector<1x32x32xf32> to vector<32x32xf32>
    %91 = vector.shape_cast %82 : vector<32x32xf32> to vector<1x32x32xf32>
    tpu.vector_store %arg9[%c0_51, %c0_52, %c0_53], %91 {strides = array<i32>} : memref<1x32x64xf32, #tpu.memory_space<vmem>>, vector<1x32x32xf32>,
    %c0_54 = arith.constant 0 : index
    %c0_55 = arith.constant 0 : index
    %c32 = arith.constant 32 : index
    %92 = vector.load %arg9[%c0_54, %c0_55, %c32] : memref<1x32x64xf32, #tpu.memory_space<vmem>>, vector<1x32x32xf32>
    %93 = vector.shape_cast %92 : vector<1x32x32xf32> to vector<32x32xf32>
    %94 = vector.shape_cast %88 : vector<32x32xf32> to vector<1x32x32xf32>
    tpu.vector_store %arg9[%c0_54, %c0_55, %c32], %94 {strides = array<i32>} : memref<1x32x64xf32, #tpu.memory_space<vmem>>, vector<1x32x32xf32>,
    return
  }
  func.func @transform_0(%arg0: i32, %arg1: i32) -> (i32, i32, i32) {
    %c0_i32 = arith.constant 0 : i32
    %c0_i32_0 = arith.constant 0 : i32
    return %arg0, %arg1, %c0_i32 : i32, i32, i32
  }
  func.func @transform_1(%arg0: i32, %arg1: i32) -> (i32, i32, i32, i32) {
    %c0_i32 = arith.constant 0 : i32
    %c0_i32_0 = arith.constant 0 : i32
    %c0_i32_1 = arith.constant 0 : i32
    return %arg0, %arg1, %c0_i32, %c0_i32_0 : i32, i32, i32, i32
  }
  func.func @transform_2(%arg0: i32, %arg1: i32) -> (i32, i32, i32) {
    %c0_i32 = arith.constant 0 : i32
    %c0_i32_0 = arith.constant 0 : i32
    return %arg0, %arg1, %c0_i32 : i32, i32, i32
  }
  func.func @transform_3(%arg0: i32, %arg1: i32) -> (i32, i32, i32) {
    %c0_i32 = arith.constant 0 : i32
    %c0_i32_0 = arith.constant 0 : i32
    return %arg0, %arg1, %c0_i32 : i32, i32, i32
  }
  func.func @transform_4(%arg0: i32, %arg1: i32) -> (i32, i32, i32) {
    %c0_i32 = arith.constant 0 : i32
    %c0_i32_0 = arith.constant 0 : i32
    %c0_i32_1 = arith.constant 0 : i32
    %c0_i32_2 = arith.constant 0 : i32
    return %c0_i32, %c0_i32_0, %c0_i32_1 : i32, i32, i32
  }
  func.func @transform_5(%arg0: i32, %arg1: i32) -> (i32, i32, i32) {
    %c0_i32 = arith.constant 0 : i32
    %c0_i32_0 = arith.constant 0 : i32
    %c0_i32_1 = arith.constant 0 : i32
    %c0_i32_2 = arith.constant 0 : i32
    return %c0_i32, %c0_i32_0, %c0_i32_1 : i32, i32, i32
  }
  func.func @transform_6(%arg0: i32, %arg1: i32) -> (i32, i32) {
    %c0_i32 = arith.constant 0 : i32
    %c0_i32_0 = arith.constant 0 : i32
    %c0_i32_1 = arith.constant 0 : i32
    return %c0_i32, %c0_i32_0 : i32, i32
  }
  func.func @transform_7(%arg0: i32, %arg1: i32) -> (i32, i32, i32) {
    %c0_i32 = arith.constant 0 : i32
    %c0_i32_0 = arith.constant 0 : i32
    return %arg0, %arg1, %c0_i32 : i32, i32, i32
  }
}

</mosaic_0001>

<llo_original>
// kernel: upsample_forward.3
$region0: #{upsample_forward.3}
  #allocation0 [shape = 'u32[]', space=smem, size = 0x4, offset = 0x4, fixed_abs, tag = 'smem constant byte address 0x4 - core index']
  #allocation1 [shape = 'u32[144,128]{1,0:T(1,128)}', space=vmem, size = 0x12000, scoped, tag = 'internal scratch']
  %s0 = inlined_call_operand.vmem [shape: f32[2,8,32], index: 0, kind: input, shape index: {}]
  %s1 = inlined_call_operand.vmem [shape: f32[2,1,2,32], index: 1, kind: input, shape index: {}]
  %s2 = inlined_call_operand.vmem [shape: s8[2,8,2], index: 2, kind: input, shape index: {}]
  %s3 = inlined_call_operand.vmem [shape: f32[2,8,64], index: 3, kind: input, shape index: {}]
  %s4 = inlined_call_operand.vmem [shape: f32[4,32,32], index: 4, kind: input, shape index: {}]
  %s5 = inlined_call_operand.vmem [shape: f32[2,32,32], index: 5, kind: input, shape index: {}]
  %s6 = inlined_call_operand.vmem [shape: f32[2,32], index: 6, kind: input, shape index: {}]
  %s7 = inlined_call_operand.vmem [shape: f32[2,8,64], index: 7, kind: output, shape index: {}]
  %s8 = sld [smem:[#allocation0]]
  $region61: #{upsample_forward.3} parent=0
    _
  %s10 = ssub.s32 1, %s8
  %s11 = scalar_select 0, %s10, %s8
  loop: start=0, step=1, limit=4
  $region2: #{upsample_forward.3} parent=0 // loop_pre_header
    _
  $region3: #{upsample_forward.3} parent=0 // loop_header
    %s13 = sphi 0, %s17
    %p14 = scmp.ge.s32.totalorder %s13, 4
    %s20 = sphi 0, %s32
    %s21 = sphi 0, %s28
    %s22 = sphi 0, %s20
    %s23 = sphi 0, %s21
    %s24 = sphi 0, %s22
    %s25 = sphi 0, %s23
    %s37 = sphi 0, %s39
    %s40 = sphi 0, %s37
    %s41 = sphi 0, %s40
    %s57 = sphi 0, %s41
    %s65 = sphi 0, %s67
    %s68 = sphi 0, %s65
    %s69 = sphi 0, %s68
    %s85 = sphi 0, %s69
    %s93 = sphi 0, %s95
    %s96 = sphi 0, %s93
    %s97 = sphi 0, %s96
    %s113 = sphi 0, %s97
    %s121 = sphi 0, %s123
    %s124 = sphi 0, %s121
    %s125 = sphi 0, %s124
    %s141 = sphi 0, %s125
    %s145 = sphi 0, %s145
    %s147 = sphi 0, %s145
    %s148 = sphi 0, %s147
    %s162 = sphi 0, %s148
    %s166 = sphi 0, %s166
    %s168 = sphi 0, %s166
    %s169 = sphi 0, %s168
    %s183 = sphi 0, %s169
    %s187 = sphi 0, %s187
    %s189 = sphi 0, %s187
    %s190 = sphi 0, %s189
    %s204 = sphi 0, %s190
    %s212 = sphi 0, %s214
    %s215 = sphi 0, %s212
    %s216 = sphi 0, %s215
    %s232 = sphi 0, %s216
  $region4: #{upsample_forward.3} parent=0 // loop_header_branch
    %16 = sbr.rel (%p14) target = $region8
  $region5: #{upsample_forward.3} parent=0 // loop_body
    %s18 = ssub.s32 %s13, 1
    %s19 = ssub.s32 %s13, 2
    %s26 = sadd.s32 1, %s21
    %p27 = scmp.ge.s32.totalorder %s26, 1
    %s28 = scalar_select %p27, 0, %s26
    %s29 = sadd.s32 1, %s20
    %s30 = scalar_select %p27, %s29, %s20
    %p31 = scmp.ge.s32.totalorder %s30, 2
    %s32 = scalar_select %p31, 0, %s30
    %s33 = ssub.s32 %s20, %s32
    %s34 = ssub.s32 %s21, %s28
    %s35 = sor.u32 %s33, %s34
    %p36 = scmp.eq.s32.totalorder %s35, 0
    %s38 = sadd.s32 %s37, 1
    %s39 = scalar_select %p36, %s37, %s38
    %p42 = pneg %p36
    %p43 = scmp.eq.s32.totalorder %s13, 1
    %p44 = por %p42, %p43
    %p45 = scmp.ne.s32.totalorder %s37, %s40
    %p46 = scmp.eq.s32.totalorder %s13, 0
    %p47 = por %p45, %p46
    %p48 = scmp.ne.s32.totalorder %s37, %s40
    %p49 = scmp.eq.s32.totalorder %s18, 1
    %p50 = por %p48, %p49
    %p51 = scmp.ne.s32.totalorder %s40, %s41
    %p52 = scmp.eq.s32.totalorder %s18, 0
    %p53 = por %p51, %p52
    %p54 = scmp.ne.s32.totalorder %s40, %s41
    %p55 = scmp.eq.s32.totalorder %s19, 1
    %p56 = por %p54, %p55
    %p58 = scmp.ne.s32.totalorder %s41, %s57
    %p59 = scmp.eq.s32.totalorder %s19, 0
    %p60 = por %p58, %p59
    %s61 = ssub.s32 %s20, %s32
    %s62 = ssub.s32 %s21, %s28
    %s63 = sor.u32 %s61, %s62
    %p64 = scmp.eq.s32.totalorder %s63, 0
    %s66 = sadd.s32 %s65, 1
    %s67 = scalar_select %p64, %s65, %s66
    %p70 = pneg %p64
    %p71 = scmp.eq.s32.totalorder %s13, 1
    %p72 = por %p70, %p71
    %p73 = scmp.ne.s32.totalorder %s65, %s68
    %p74 = scmp.eq.s32.totalorder %s13, 0
    %p75 = por %p73, %p74
    %p76 = scmp.ne.s32.totalorder %s65, %s68
    %p77 = scmp.eq.s32.totalorder %s18, 1
    %p78 = por %p76, %p77
    %p79 = scmp.ne.s32.totalorder %s68, %s69
    %p80 = scmp.eq.s32.totalorder %s18, 0
    %p81 = por %p79, %p80
    %p82 = scmp.ne.s32.totalorder %s68, %s69
    %p83 = scmp.eq.s32.totalorder %s19, 1
    %p84 = por %p82, %p83
    %p86 = scmp.ne.s32.totalorder %s69, %s85
    %p87 = scmp.eq.s32.totalorder %s19, 0
    %p88 = por %p86, %p87
    %s89 = ssub.s32 %s20, %s32
    %s90 = ssub.s32 %s21, %s28
    %s91 = sor.u32 %s89, %s90
    %p92 = scmp.eq.s32.totalorder %s91, 0
    %s94 = sadd.s32 %s93, 1
    %s95 = scalar_select %p92, %s93, %s94
    %p98 = pneg %p92
    %p99 = scmp.eq.s32.totalorder %s13, 1
    %p100 = por %p98, %p99
    %p101 = scmp.ne.s32.totalorder %s93, %s96
    %p102 = scmp.eq.s32.totalorder %s13, 0
    %p103 = por %p101, %p102
    %p104 = scmp.ne.s32.totalorder %s93, %s96
    %p105 = scmp.eq.s32.totalorder %s18, 1
    %p106 = por %p104, %p105
    %p107 = scmp.ne.s32.totalorder %s96, %s97
    %p108 = scmp.eq.s32.totalorder %s18, 0
    %p109 = por %p107, %p108
    %p110 = scmp.ne.s32.totalorder %s96, %s97
    %p111 = scmp.eq.s32.totalorder %s19, 1
    %p112 = por %p110, %p111
    %p114 = scmp.ne.s32.totalorder %s97, %s113
    %p115 = scmp.eq.s32.totalorder %s19, 0
    %p116 = por %p114, %p115
    %s117 = ssub.s32 %s20, %s32
    %s118 = ssub.s32 %s21, %s28
    %s119 = sor.u32 %s117, %s118
    %p120 = scmp.eq.s32.totalorder %s119, 0
    %s122 = sadd.s32 %s121, 1
    %s123 = scalar_select %p120, %s121, %s122
    %p126 = pneg %p120
    %p127 = scmp.eq.s32.totalorder %s13, 1
    %p128 = por %p126, %p127
    %p129 = scmp.ne.s32.totalorder %s121, %s124
    %p130 = scmp.eq.s32.totalorder %s13, 0
    %p131 = por %p129, %p130
    %p132 = scmp.ne.s32.totalorder %s121, %s124
    %p133 = scmp.eq.s32.totalorder %s18, 1
    %p134 = por %p132, %p133
    %p135 = scmp.ne.s32.totalorder %s124, %s125
    %p136 = scmp.eq.s32.totalorder %s18, 0
    %p137 = por %p135, %p136
    %p138 = scmp.ne.s32.totalorder %s124, %s125
    %p139 = scmp.eq.s32.totalorder %s19, 1
    %p140 = por %p138, %p139
    %p142 = scmp.ne.s32.totalorder %s125, %s141
    %p143 = scmp.eq.s32.totalorder %s19, 0
    %p144 = por %p142, %p143
    %s146 = sadd.s32 %s145, 1
    %p149 = scmp.eq.s32.totalorder %s13, 1
    %p150 = scmp.ne.s32.totalorder %s145, %s147
    %p151 = scmp.eq.s32.totalorder %s13, 0
    %p152 = por %p150, %p151
    %p153 = scmp.ne.s32.totalorder %s145, %s147
    %p154 = scmp.eq.s32.totalorder %s18, 1
    %p155 = por %p153, %p154
    %p156 = scmp.ne.s32.totalorder %s147, %s148
    %p157 = scmp.eq.s32.totalorder %s18, 0
    %p158 = por %p156, %p157
    %p159 = scmp.ne.s32.totalorder %s147, %s148
    %p160 = scmp.eq.s32.totalorder %s19, 1
    %p161 = por %p159, %p160
    %p163 = scmp.ne.s32.totalorder %s148, %s162
    %p164 = scmp.eq.s32.totalorder %s19, 0
    %p165 = por %p163, %p164
    %s167 = sadd.s32 %s166, 1
    %p170 = scmp.eq.s32.totalorder %s13, 1
    %p171 = scmp.ne.s32.totalorder %s166, %s168
    %p172 = scmp.eq.s32.totalorder %s13, 0
    %p173 = por %p171, %p172
    %p174 = scmp.ne.s32.totalorder %s166, %s168
    %p175 = scmp.eq.s32.totalorder %s18, 1
    %p176 = por %p174, %p175
    %p177 = scmp.ne.s32.totalorder %s168, %s169
    %p178 = scmp.eq.s32.totalorder %s18, 0
    %p179 = por %p177, %p178
    %p180 = scmp.ne.s32.totalorder %s168, %s169
    %p181 = scmp.eq.s32.totalorder %s19, 1
    %p182 = por %p180, %p181
    %p184 = scmp.ne.s32.totalorder %s169, %s183
    %p185 = scmp.eq.s32.totalorder %s19, 0
    %p186 = por %p184, %p185
    %s188 = sadd.s32 %s187, 1
    %p191 = scmp.eq.s32.totalorder %s13, 1
    %p192 = scmp.ne.s32.totalorder %s187, %s189
    %p193 = scmp.eq.s32.totalorder %s13, 0
    %p194 = por %p192, %p193
    %p195 = scmp.ne.s32.totalorder %s187, %s189
    %p196 = scmp.eq.s32.totalorder %s18, 1
    %p197 = por %p195, %p196
    %p198 = scmp.ne.s32.totalorder %s189, %s190
    %p199 = scmp.eq.s32.totalorder %s18, 0
    %p200 = por %p198, %p199
    %p201 = scmp.ne.s32.totalorder %s189, %s190
    %p202 = scmp.eq.s32.totalorder %s19, 1
    %p203 = por %p201, %p202
    %p205 = scmp.ne.s32.totalorder %s190, %s204
    %p206 = scmp.eq.s32.totalorder %s19, 0
    %p207 = por %p205, %p206
    %s208 = ssub.s32 %s20, %s32
    %s209 = ssub.s32 %s21, %s28
    %s210 = sor.u32 %s208, %s209
    %p211 = scmp.eq.s32.totalorder %s210, 0
    %s213 = sadd.s32 %s212, 1
    %s214 = scalar_select %p211, %s212, %s213
    %p217 = pneg %p211
    %p218 = scmp.eq.s32.totalorder %s13, 1
    %p219 = por %p217, %p218
    %p220 = scmp.ne.s32.totalorder %s212, %s215
    %p221 = scmp.eq.s32.totalorder %s13, 0
    %p222 = por %p220, %p221
    %p223 = scmp.ne.s32.totalorder %s212, %s215
    %p224 = scmp.eq.s32.totalorder %s18, 1
    %p225 = por %p223, %p224
    %p226 = scmp.ne.s32.totalorder %s215, %s216
    %p227 = scmp.eq.s32.totalorder %s18, 0
    %p228 = por %p226, %p227
    %p229 = scmp.ne.s32.totalorder %s215, %s216
    %p230 = scmp.eq.s32.totalorder %s19, 1
    %p231 = por %p229, %p230
    %p233 = scmp.ne.s32.totalorder %s216, %s232
    %p234 = scmp.eq.s32.totalorder %s19, 0
    %p235 = por %p233, %p234
    %p236 = scmp.le.s32.totalorder 1, %s13
    %p237 = scmp.lt.s32.totalorder %s13, 3
    %p238 = pnand %p236, %p237
    %p239 = pneg %p238
    // Predicated region
    $region9: #{upsample_forward.3} parent=5 // pred_check
      _
    $region10: #{upsample_forward.3} parent=5 // pred_check_branch
      %241 = sbr.rel (%p238) target = $region12
    $region11: #{upsample_forward.3} parent=5 // pred_region
      %s242 = ssub.s32 %s13, 1
      // Predicated region
      $region13: #{upsample_forward.3} parent=11 // pred_check
        %p243 = pneg %p158
      $region14: #{upsample_forward.3} parent=11 // pred_check_branch
        %245 = sbr.rel (%p243) target = $region16
      $region15: #{upsample_forward.3} parent=11 // pred_region
        _
      $region16: #{upsample_forward.3} parent=11 // pred_fallthru
        _
      // Predicated region
      $region17: #{upsample_forward.3} parent=11 // pred_check
        %p246 = pneg %p179
      $region18: #{upsample_forward.3} parent=11 // pred_check_branch
        %248 = sbr.rel (%p246) target = $region20
      $region19: #{upsample_forward.3} parent=11 // pred_region
        _
      $region20: #{upsample_forward.3} parent=11 // pred_fallthru
        _
      // Predicated region
      $region21: #{upsample_forward.3} parent=11 // pred_check
        %p249 = pneg %p200
      $region22: #{upsample_forward.3} parent=11 // pred_check_branch
        %251 = sbr.rel (%p249) target = $region24
      $region23: #{upsample_forward.3} parent=11 // pred_region
        _
      $region24: #{upsample_forward.3} parent=11 // pred_fallthru
        _
    $region12: #{upsample_forward.3} parent=5 // pred_fallthru
      _
    %p252 = scmp.lt.s32.totalorder %s13, 2
    // Predicated region
    $region25: #{upsample_forward.3} parent=5 // pred_check
      %p253 = pneg %p252
    $region26: #{upsample_forward.3} parent=5 // pred_check_branch
      %255 = sbr.rel (%p253) target = $region28
    $region27: #{upsample_forward.3} parent=5 // pred_region
      // Predicated region
      $region29: #{upsample_forward.3} parent=27 // pred_check
        %p256 = pneg %p47
      $region30: #{upsample_forward.3} parent=27 // pred_check_branch
        %258 = sbr.rel (%p256) target = $region32
      $region31: #{upsample_forward.3} parent=27 // pred_region
        %p259 = scmp.lt.s32.totalorder %s20, 1
        %s260 = scalar_select %p259, %s20, 1
        %p261 = scmp.lt.s32.totalorder %s21, 0
        %s262 = scalar_select %p261, %s21, 0
        %s263 = sadd.s32 %s262, %s260
        %s264 = smul.addr %s263, 8
        %s265 = scalar_lea.vmem %s0, %s264
      $region32: #{upsample_forward.3} parent=27 // pred_fallthru
        _
      // Predicated region
      $region33: #{upsample_forward.3} parent=27 // pred_check
        %p266 = pneg %p75
      $region34: #{upsample_forward.3} parent=27 // pred_check_branch
        %268 = sbr.rel (%p266) target = $region36
      $region35: #{upsample_forward.3} parent=27 // pred_region
        %p269 = scmp.lt.s32.totalorder %s20, 1
        %s270 = scalar_select %p269, %s20, 1
        %p271 = scmp.lt.s32.totalorder %s21, 0
        %s272 = scalar_select %p271, %s21, 0
        %s273 = sadd.s32 %s272, %s270
        %s274 = smul.addr %s273, 2
        %s275 = scalar_lea.vmem %s1, %s274
      $region36: #{upsample_forward.3} parent=27 // pred_fallthru
        _
      // Predicated region
      $region37: #{upsample_forward.3} parent=27 // pred_check
        %p276 = pneg %p103
      $region38: #{upsample_forward.3} parent=27 // pred_check_branch
        %278 = sbr.rel (%p276) target = $region40
      $region39: #{upsample_forward.3} parent=27 // pred_region
        %p279 = scmp.lt.s32.totalorder %s20, 1
        %s280 = scalar_select %p279, %s20, 1
        %p281 = scmp.lt.s32.totalorder %s21, 0
        %s282 = scalar_select %p281, %s21, 0
        %s283 = sadd.s32 %s282, %s280
        %s284 = smul.addr %s283, 2
        %s285 = scalar_lea.vmem %s2, %s284
      $region40: #{upsample_forward.3} parent=27 // pred_fallthru
        _
      // Predicated region
      $region41: #{upsample_forward.3} parent=27 // pred_check
        %p286 = pneg %p131
      $region42: #{upsample_forward.3} parent=27 // pred_check_branch
        %288 = sbr.rel (%p286) target = $region44
      $region43: #{upsample_forward.3} parent=27 // pred_region
        %p289 = scmp.lt.s32.totalorder %s20, 1
        %s290 = scalar_select %p289, %s20, 1
        %p291 = scmp.lt.s32.totalorder %s21, 0
        %s292 = scalar_select %p291, %s21, 0
        %s293 = sadd.s32 %s292, %s290
        %s294 = smul.addr %s293, 8
        %s295 = scalar_lea.vmem %s3, %s294
      $region44: #{upsample_forward.3} parent=27 // pred_fallthru
        _
    $region28: #{upsample_forward.3} parent=5 // pred_fallthru
      _
    %p296 = scmp.le.s32.totalorder 1, %s13
    %p297 = scmp.lt.s32.totalorder %s13, 3
    %p298 = pnand %p296, %p297
    %p299 = pneg %p298
    // Predicated region
    $region45: #{upsample_forward.3} parent=5 // pred_check
      _
    $region46: #{upsample_forward.3} parent=5 // pred_check_branch
      %301 = sbr.rel (%p298) target = $region48
    $region47: #{upsample_forward.3} parent=5 // pred_region
      %s302 = ssub.s32 %s13, 1
      %p303 = scmp.lt.s32.totalorder %s22, 1
      %s304 = scalar_select %p303, %s22, 1
      %p305 = scmp.lt.s32.totalorder %s23, 0
      %s306 = scalar_select %p305, %s23, 0
      %s307 = sadd.s32 %s306, %s304
      %s308 = smul.addr %s307, 8
      %s309 = scalar_lea.vmem %s0, %s308
      %p310 = pneg %p53
      %p311 = pneg %p50
      %p312 = scmp.lt.s32.totalorder %s22, 1
      %s313 = scalar_select %p312, %s22, 1
      %p314 = scmp.lt.s32.totalorder %s23, 0
      %s315 = scalar_select %p314, %s23, 0
      %s316 = sadd.s32 %s315, %s313
      %s317 = smul.addr %s316, 2
      %s318 = scalar_lea.vmem %s1, %s317
      %p319 = pneg %p81
      %p320 = pneg %p78
      %p321 = scmp.lt.s32.totalorder %s22, 1
      %s322 = scalar_select %p321, %s22, 1
      %p323 = scmp.lt.s32.totalorder %s23, 0
      %s324 = scalar_select %p323, %s23, 0
      %s325 = sadd.s32 %s324, %s322
      %s326 = smul.addr %s325, 2
      %s327 = scalar_lea.vmem %s2, %s326
      %p328 = pneg %p109
      %p329 = pneg %p106
      %p330 = scmp.lt.s32.totalorder %s22, 1
      %s331 = scalar_select %p330, %s22, 1
      %p332 = scmp.lt.s32.totalorder %s23, 0
      %s333 = scalar_select %p332, %s23, 0
      %s334 = sadd.s32 %s333, %s331
      %s335 = smul.addr %s334, 8
      %s336 = scalar_lea.vmem %s3, %s335
      %p337 = pneg %p137
      %p338 = pneg %p134
      %p339 = pneg %p158
      %p340 = pneg %p155
      %p341 = pneg %p179
      %p342 = pneg %p176
      %p343 = pneg %p200
      %p344 = pneg %p197
      %p345 = pneg %p228
      %p346 = pneg %p225
      %p347 = scmp.lt.s32.totalorder %s22, 1
      %s348 = scalar_select %p347, %s22, 1
      %p349 = scmp.lt.s32.totalorder %s23, 0
      %s350 = scalar_select %p349, %s23, 0
      %s351 = sadd.s32 %s350, %s348
      %s352 = smul.addr %s351, 8
      %s353 = scalar_lea.vmem %s7, %s352
      %p354 = scmp.lt.s32.totalorder %s22, 1
      %s355 = scalar_select %p354, %s22, 1
      %p356 = scmp.lt.s32.totalorder %s23, 0
      %s357 = scalar_select %p356, %s23, 0
      %s358 = sadd.s32 %s357, %s355
      %s359 = smul.addr %s358, 8
      %s360 = scalar_lea.vmem %s0, %s359
      %p361 = scmp.lt.s32.totalorder %s22, 1
      %s362 = scalar_select %p361, %s22, 1
      %p363 = scmp.lt.s32.totalorder %s23, 0
      %s364 = scalar_select %p363, %s23, 0
      %s365 = sadd.s32 %s364, %s362
      %s366 = smul.addr %s365, 2
      %s367 = scalar_lea.vmem %s1, %s366
      %p368 = scmp.lt.s32.totalorder %s22, 1
      %s369 = scalar_select %p368, %s22, 1
      %p370 = scmp.lt.s32.totalorder %s23, 0
      %s371 = scalar_select %p370, %s23, 0
      %s372 = sadd.s32 %s371, %s369
      %s373 = smul.addr %s372, 2
      %s374 = scalar_lea.vmem %s2, %s373
      %p375 = scmp.lt.s32.totalorder %s22, 1
      %s376 = scalar_select %p375, %s22, 1
      %p377 = scmp.lt.s32.totalorder %s23, 0
      %s378 = scalar_select %p377, %s23, 0
      %s379 = sadd.s32 %s378, %s376
      %s380 = smul.addr %s379, 8
      %s381 = scalar_lea.vmem %s3, %s380
      %p382 = scmp.lt.s32.totalorder %s22, 1
      %s383 = scalar_select %p382, %s22, 1
      %p384 = scmp.lt.s32.totalorder %s23, 0
      %s385 = scalar_select %p384, %s23, 0
      %s386 = sadd.s32 %s385, %s383
      %s387 = smul.addr %s386, 8
      %s388 = scalar_lea.vmem %s7, %s387
      %v389 = vld [vmem:[%s360] sm:$0xff]
      %v390 = vld [vmem:[%s367] sm:$0x3]
      %v391 = vld [vmem:[%s6] sm:$0x3]
      %v392 = vld [vmem:[%s4] sm:$0xff]
      %v393 = vld [vmem:[%s4 + $0x8] sm:$0xff]
      %v394 = vld [vmem:[%s4 + $0x10] sm:$0xff]
      %v395 = vld [vmem:[%s4 + $0x18] sm:$0xff]
      %s396 = scalar_lea.vmem %s4, 64
      %v397 = vld [vmem:[%s396] sm:$0xff]
      %v398 = vld [vmem:[%s396 + $0x8] sm:$0xff]
      %v399 = vld [vmem:[%s396 + $0x10] sm:$0xff]
      %v400 = vld [vmem:[%s396 + $0x18] sm:$0xff]
      %s401 = scalar_lea.vmem %s4, 32
      %v402 = vld [vmem:[%s401] sm:$0xff]
      %v403 = vld [vmem:[%s401 + $0x8] sm:$0xff]
      %v404 = vld [vmem:[%s401 + $0x10] sm:$0xff]
      %v405 = vld [vmem:[%s401 + $0x18] sm:$0xff]
      %vm406 = vcmask 261120
      %v408 = vsel %vm406, %v389, 0
      %410 = vmatprep.subr.mxu0 0.0
      %411 = vmatpush1.msra.mxu0 %v402
      %412 = vmatprep.subr.mxu0 0.0
      %413 = vmatpush1.msra.mxu0 %v403
      %414 = vmatprep.subr.mxu0 0.0
      %415 = vmatpush1.msra.mxu0 %v404
      %416 = vmatprep.subr.mxu0 0.0
      %417 = vmatpush1.msra.mxu0 %v405
      %418 = vmatprep.subr.mxu0 0.0
      %419 = vmatpush1.msra.mxu0 0.0
      %420 = vmatprep.subr.mxu0 0.0
      %421 = vmatpush1.msra.mxu0 0.0
      %422 = vmatprep.subr.mxu0 0.0
      %423 = vmatpush1.msra.mxu0 0.0
      %424 = vmatprep.subr.mxu0 0.0
      %425 = vmatpush1.msra.mxu0 0.0
      %426 = vmatprep.subr.mxu0 0.0
      %427 = vmatpush1.msra.mxu0 0.0
      %428 = vmatprep.subr.mxu0 0.0
      %429 = vmatpush1.msra.mxu0 0.0
      %430 = vmatprep.subr.mxu0 0.0
      %431 = vmatpush1.msra.mxu0 0.0
      %432 = vmatprep.subr.mxu0 0.0
      %433 = vmatpush1.msra.mxu0 0.0
      %434 = vmatprep.subr.mxu0 0.0
      %435 = vmatpush1.msra.mxu0 0.0
      %436 = vmatprep.subr.mxu0 0.0
      %437 = vmatpush1.msra.mxu0 0.0
      %438 = vmatprep.subr.mxu0 0.0
      %439 = vmatpush1.msra.mxu0 0.0
      %440 = vmatprep.subr.mxu0 0.0
      %441 = vmatpush1.msra.mxu0 0.0
      %442 = vmatprep.subr.mxu0 0.0
      %443 = vmatpush1.msra.mxu0 0.0
      %444 = vmatprep.subr.mxu0 0.0
      %445 = vmatpush1.msra.mxu0 0.0
      %446 = vmatprep.subr.mxu0 0.0
      %447 = vmatpush1.msra.mxu0 0.0
      %448 = vmatprep.subr.mxu0 0.0
      %449 = vmatpush1.msra.mxu0 0.0
      %450 = vmatprep.subr.mxu0 0.0
      %451 = vmatpush1.msra.mxu0 0.0
      %452 = vmatprep.subr.mxu0 0.0
      %453 = vmatpush1.msra.mxu0 0.0
      %454 = vmatprep.subr.mxu0 0.0
      %455 = vmatpush1.msra.mxu0 0.0
      %456 = vmatprep.subr.mxu0 0.0
      %457 = vmatpush1.msra.mxu0 0.0
      %458 = vmatprep.subr.mxu0 0.0
      %459 = vmatpush1.msra.mxu0 0.0
      %460 = vmatprep.subr.mxu0 0.0
      %461 = vmatpush1.msra.mxu0 0.0
      %462 = vmatprep.subr.mxu0 0.0
      %463 = vmatpush1.msra.mxu0 0.0
      %464 = vmatprep.subr.mxu0 0.0
      %465 = vmatpush1.msra.mxu0 0.0
      %466 = vmatprep.subr.mxu0 0.0
      %467 = vmatpush1.msra.mxu0 0.0
      %468 = vmatprep.subr.mxu0 0.0
      %469 = vmatpush1.msra.mxu0 0.0
      %470 = vmatprep.subr.mxu0 0.0
      %471 = vmatpush1.msra.mxu0 0.0
      %472 = vmatprep.subr.mxu0 0.0
      %473 = vmatpush1.msra.mxu0 0.0
      %474 = vmatprep.mubr.f32.mxu0 0.0
      %475 = vmatmul.mubr.f32.gmra.mrb[0].mxu0 %v408
      %v476 = vpop.f32.mrb[0].mxu0
      %v477 = vadd.f32 0.0, %v476
      %v478 = vpop.f32.mrb[0].mxu0
      %479 = vdwg.mxu0
      %s480 = scalar_lea.vmem %s4, 96
      %v481 = vld [vmem:[%s480] sm:$0xff]
      %v482 = vld [vmem:[%s480 + $0x8] sm:$0xff]
      %v483 = vld [vmem:[%s480 + $0x10] sm:$0xff]
      %v484 = vld [vmem:[%s480 + $0x18] sm:$0xff]
      %485 = vmatprep.subr.mxu0 0.0
      %486 = vmatpush1.msra.mxu0 %v481
      %487 = vmatprep.subr.mxu0 0.0
      %488 = vmatpush1.msra.mxu0 %v482
      %489 = vmatprep.subr.mxu0 0.0
      %490 = vmatpush1.msra.mxu0 %v483
      %491 = vmatprep.subr.mxu0 0.0
      %492 = vmatpush1.msra.mxu0 %v484
      %493 = vmatprep.subr.mxu0 0.0
      %494 = vmatpush1.msra.mxu0 0.0
      %495 = vmatprep.subr.mxu0 0.0
      %496 = vmatpush1.msra.mxu0 0.0
      %497 = vmatprep.subr.mxu0 0.0
      %498 = vmatpush1.msra.mxu0 0.0
      %499 = vmatprep.subr.mxu0 0.0
      %500 = vmatpush1.msra.mxu0 0.0
      %501 = vmatprep.subr.mxu0 0.0
      %502 = vmatpush1.msra.mxu0 0.0
      %503 = vmatprep.subr.mxu0 0.0
      %504 = vmatpush1.msra.mxu0 0.0
      %505 = vmatprep.subr.mxu0 0.0
      %506 = vmatpush1.msra.mxu0 0.0
      %507 = vmatprep.subr.mxu0 0.0
      %508 = vmatpush1.msra.mxu0 0.0
      %509 = vmatprep.subr.mxu0 0.0
      %510 = vmatpush1.msra.mxu0 0.0
      %511 = vmatprep.subr.mxu0 0.0
      %512 = vmatpush1.msra.mxu0 0.0
      %513 = vmatprep.subr.mxu0 0.0
      %514 = vmatpush1.msra.mxu0 0.0
      %515 = vmatprep.subr.mxu0 0.0
      %516 = vmatpush1.msra.mxu0 0.0
      %517 = vmatprep.subr.mxu0 0.0
      %518 = vmatpush1.msra.mxu0 0.0
      %519 = vmatprep.subr.mxu0 0.0
      %520 = vmatpush1.msra.mxu0 0.0
      %521 = vmatprep.subr.mxu0 0.0
      %522 = vmatpush1.msra.mxu0 0.0
      %523 = vmatprep.subr.mxu0 0.0
      %524 = vmatpush1.msra.mxu0 0.0
      %525 = vmatprep.subr.mxu0 0.0
      %526 = vmatpush1.msra.mxu0 0.0
      %527 = vmatprep.subr.mxu0 0.0
      %528 = vmatpush1.msra.mxu0 0.0
      %529 = vmatprep.subr.mxu0 0.0
      %530 = vmatpush1.msra.mxu0 0.0
      %531 = vmatprep.subr.mxu0 0.0
      %532 = vmatpush1.msra.mxu0 0.0
      %533 = vmatprep.subr.mxu0 0.0
      %534 = vmatpush1.msra.mxu0 0.0
      %535 = vmatprep.subr.mxu0 0.0
      %536 = vmatpush1.msra.mxu0 0.0
      %537 = vmatprep.subr.mxu0 0.0
      %538 = vmatpush1.msra.mxu0 0.0
      %539 = vmatprep.subr.mxu0 0.0
      %540 = vmatpush1.msra.mxu0 0.0
      %541 = vmatprep.subr.mxu0 0.0
      %542 = vmatpush1.msra.mxu0 0.0
      %543 = vmatprep.subr.mxu0 0.0
      %544 = vmatpush1.msra.mxu0 0.0
      %545 = vmatprep.subr.mxu0 0.0
      %546 = vmatpush1.msra.mxu0 0.0
      %547 = vmatprep.subr.mxu0 0.0
      %548 = vmatpush1.msra.mxu0 0.0
      %549 = vmatprep.mubr.f32.mxu0 0.0
      %550 = vmatmul.mubr.f32.gmra.mrb[0].mxu0 %v408
      %v551 = vpop.f32.mrb[0].mxu0
      %v552 = vadd.f32 0.0, %v551
      %v553 = vpop.f32.mrb[0].mxu0
      %554 = vdwg.mxu0
      %v556 = vsel %vm406, %v390, 0
      %558 = vmatprep.subr.mxu0 0.0
      %559 = vmatpush1.msra.mxu0 %v402
      %560 = vmatprep.subr.mxu0 0.0
      %561 = vmatpush1.msra.mxu0 %v403
      %562 = vmatprep.subr.mxu0 0.0
      %563 = vmatpush1.msra.mxu0 %v404
      %564 = vmatprep.subr.mxu0 0.0
      %565 = vmatpush1.msra.mxu0 %v405
      %566 = vmatprep.subr.mxu0 0.0
      %567 = vmatpush1.msra.mxu0 0.0
      %568 = vmatprep.subr.mxu0 0.0
      %569 = vmatpush1.msra.mxu0 0.0
      %570 = vmatprep.subr.mxu0 0.0
      %571 = vmatpush1.msra.mxu0 0.0
      %572 = vmatprep.subr.mxu0 0.0
      %573 = vmatpush1.msra.mxu0 0.0
      %574 = vmatprep.subr.mxu0 0.0
      %575 = vmatpush1.msra.mxu0 0.0
      %576 = vmatprep.subr.mxu0 0.0
      %577 = vmatpush1.msra.mxu0 0.0
      %578 = vmatprep.subr.mxu0 0.0
      %579 = vmatpush1.msra.mxu0 0.0
      %580 = vmatprep.subr.mxu0 0.0
      %581 = vmatpush1.msra.mxu0 0.0
      %582 = vmatprep.subr.mxu0 0.0
      %583 = vmatpush1.msra.mxu0 0.0
      %584 = vmatprep.subr.mxu0 0.0
      %585 = vmatpush1.msra.mxu0 0.0
      %586 = vmatprep.subr.mxu0 0.0
      %587 = vmatpush1.msra.mxu0 0.0
      %588 = vmatprep.subr.mxu0 0.0
      %589 = vmatpush1.msra.mxu0 0.0
      %590 = vmatprep.subr.mxu0 0.0
      %591 = vmatpush1.msra.mxu0 0.0
      %592 = vmatprep.subr.mxu0 0.0
      %593 = vmatpush1.msra.mxu0 0.0
      %594 = vmatprep.subr.mxu0 0.0
      %595 = vmatpush1.msra.mxu0 0.0
      %596 = vmatprep.subr.mxu0 0.0
      %597 = vmatpush1.msra.mxu0 0.0
      %598 = vmatprep.subr.mxu0 0.0
      %599 = vmatpush1.msra.mxu0 0.0
      %600 = vmatprep.subr.mxu0 0.0
      %601 = vmatpush1.msra.mxu0 0.0
      %602 = vmatprep.subr.mxu0 0.0
      %603 = vmatpush1.msra.mxu0 0.0
      %604 = vmatprep.subr.mxu0 0.0
      %605 = vmatpush1.msra.mxu0 0.0
      %606 = vmatprep.subr.mxu0 0.0
      %607 = vmatpush1.msra.mxu0 0.0
      %608 = vmatprep.subr.mxu0 0.0
      %609 = vmatpush1.msra.mxu0 0.0
      %610 = vmatprep.subr.mxu0 0.0
      %611 = vmatpush1.msra.mxu0 0.0
      %612 = vmatprep.subr.mxu0 0.0
      %613 = vmatpush1.msra.mxu0 0.0
      %614 = vmatprep.subr.mxu0 0.0
      %615 = vmatpush1.msra.mxu0 0.0
      %616 = vmatprep.subr.mxu0 0.0
      %617 = vmatpush1.msra.mxu0 0.0
      %618 = vmatprep.subr.mxu0 0.0
      %619 = vmatpush1.msra.mxu0 0.0
      %620 = vmatprep.subr.mxu0 0.0
      %621 = vmatpush1.msra.mxu0 0.0
      %622 = vmatprep.mubr.f32.mxu0 0.0
      %623 = vmatmul.mubr.f32.gmra.mrb[0].mxu0 %v556
      %v624 = vpop.f32.mrb[0].mxu0
      %v625 = vadd.f32 0.0, %v624
      %v626 = vpop.f32.mrb[0].mxu0
      %627 = vdwg.mxu0
      %v628 = vrot.slane %v390, 1
      %v629 = vsel %vm406, %v628, 0
      %631 = vmatprep.subr.mxu0 0.0
      %632 = vmatpush1.msra.mxu0 %v481
      %633 = vmatprep.subr.mxu0 0.0
      %634 = vmatpush1.msra.mxu0 %v482
      %635 = vmatprep.subr.mxu0 0.0
      %636 = vmatpush1.msra.mxu0 %v483
      %637 = vmatprep.subr.mxu0 0.0
      %638 = vmatpush1.msra.mxu0 %v484
      %639 = vmatprep.subr.mxu0 0.0
      %640 = vmatpush1.msra.mxu0 0.0
      %641 = vmatprep.subr.mxu0 0.0
      %642 = vmatpush1.msra.mxu0 0.0
      %643 = vmatprep.subr.mxu0 0.0
      %644 = vmatpush1.msra.mxu0 0.0
      %645 = vmatprep.subr.mxu0 0.0
      %646 = vmatpush1.msra.mxu0 0.0
      %647 = vmatprep.subr.mxu0 0.0
      %648 = vmatpush1.msra.mxu0 0.0
      %649 = vmatprep.subr.mxu0 0.0
      %650 = vmatpush1.msra.mxu0 0.0
      %651 = vmatprep.subr.mxu0 0.0
      %652 = vmatpush1.msra.mxu0 0.0
      %653 = vmatprep.subr.mxu0 0.0
      %654 = vmatpush1.msra.mxu0 0.0
      %655 = vmatprep.subr.mxu0 0.0
      %656 = vmatpush1.msra.mxu0 0.0
      %657 = vmatprep.subr.mxu0 0.0
      %658 = vmatpush1.msra.mxu0 0.0
      %659 = vmatprep.subr.mxu0 0.0
      %660 = vmatpush1.msra.mxu0 0.0
      %661 = vmatprep.subr.mxu0 0.0
      %662 = vmatpush1.msra.mxu0 0.0
      %663 = vmatprep.subr.mxu0 0.0
      %664 = vmatpush1.msra.mxu0 0.0
      %665 = vmatprep.subr.mxu0 0.0
      %666 = vmatpush1.msra.mxu0 0.0
      %667 = vmatprep.subr.mxu0 0.0
      %668 = vmatpush1.msra.mxu0 0.0
      %669 = vmatprep.subr.mxu0 0.0
      %670 = vmatpush1.msra.mxu0 0.0
      %671 = vmatprep.subr.mxu0 0.0
      %672 = vmatpush1.msra.mxu0 0.0
      %673 = vmatprep.subr.mxu0 0.0
      %674 = vmatpush1.msra.mxu0 0.0
      %675 = vmatprep.subr.mxu0 0.0
      %676 = vmatpush1.msra.mxu0 0.0
      %677 = vmatprep.subr.mxu0 0.0
      %678 = vmatpush1.msra.mxu0 0.0
      %679 = vmatprep.subr.mxu0 0.0
      %680 = vmatpush1.msra.mxu0 0.0
      %681 = vmatprep.subr.mxu0 0.0
      %682 = vmatpush1.msra.mxu0 0.0
      %683 = vmatprep.subr.mxu0 0.0
      %684 = vmatpush1.msra.mxu0 0.0
      %685 = vmatprep.subr.mxu0 0.0
      %686 = vmatpush1.msra.mxu0 0.0
      %687 = vmatprep.subr.mxu0 0.0
      %688 = vmatpush1.msra.mxu0 0.0
      %689 = vmatprep.subr.mxu0 0.0
      %690 = vmatpush1.msra.mxu0 0.0
      %691 = vmatprep.subr.mxu0 0.0
      %692 = vmatpush1.msra.mxu0 0.0
      %693 = vmatprep.subr.mxu0 0.0
      %694 = vmatpush1.msra.mxu0 0.0
      %695 = vmatprep.mubr.f32.mxu0 0.0
      %696 = vmatmul.mubr.f32.gmra.mrb[0].mxu0 %v629
      %v697 = vpop.f32.mrb[0].mxu0
      %v698 = vadd.f32 0.0, %v697
      %v699 = vpop.f32.mrb[0].mxu0
      %700 = vdwg.mxu0
      %v701 = vlaneseq
      %v702 = vshrl.u32 %v701, 7
      %vm703 = vcmp.eq.s32.totalorder %v702, 0
      %v704 = vlaneseq
      %v705 = vshrl.u32 %v704, 7
      %v706 = vsub.s32 0, %v705
      %v707 = vrot.slane %v625, %v706
      %v708 = vrot.slane %v477, 7
      %v709 = vsel %vm703, 1, 0
      %vm710 = vcmp.eq.s32.totalorder %v709, 1
      %v711 = vsel %vm710, %v707, %v708
      %vm712 = vcmp.eq.s32.totalorder %v702, 7
      %v713 = vlaneseq
      %v714 = vshrl.u32 %v713, 7
      %v715 = vsub.s32 0, %v714
      %v716 = vrot.slane %v698, %v715
      %v717 = vrot.slane %v552, 1
      %v718 = vsel %vm712, 1, 0
      %vm719 = vcmp.eq.s32.totalorder %v718, 1
      %v720 = vsel %vm719, %v716, %v717
      %721 = vmatprep.subr.mxu0 0.0
      %722 = vmatpush1.msra.mxu0 %v392
      %723 = vmatprep.subr.mxu0 0.0
      %724 = vmatpush1.msra.mxu0 %v393
      %725 = vmatprep.subr.mxu0 0.0
      %726 = vmatpush1.msra.mxu0 %v394
      %727 = vmatprep.subr.mxu0 0.0
      %728 = vmatpush1.msra.mxu0 %v395
      %729 = vmatprep.subr.mxu0 0.0
      %730 = vmatpush1.msra.mxu0 0.0
      %731 = vmatprep.subr.mxu0 0.0
      %732 = vmatpush1.msra.mxu0 0.0
      %733 = vmatprep.subr.mxu0 0.0
      %734 = vmatpush1.msra.mxu0 0.0
      %735 = vmatprep.subr.mxu0 0.0
      %736 = vmatpush1.msra.mxu0 0.0
      %737 = vmatprep.subr.mxu0 0.0
      %738 = vmatpush1.msra.mxu0 0.0
      %739 = vmatprep.subr.mxu0 0.0
      %740 = vmatpush1.msra.mxu0 0.0
      %741 = vmatprep.subr.mxu0 0.0
      %742 = vmatpush1.msra.mxu0 0.0
      %743 = vmatprep.subr.mxu0 0.0
      %744 = vmatpush1.msra.mxu0 0.0
      %745 = vmatprep.subr.mxu0 0.0
      %746 = vmatpush1.msra.mxu0 0.0
      %747 = vmatprep.subr.mxu0 0.0
      %748 = vmatpush1.msra.mxu0 0.0
      %749 = vmatprep.subr.mxu0 0.0
      %750 = vmatpush1.msra.mxu0 0.0
      %751 = vmatprep.subr.mxu0 0.0
      %752 = vmatpush1.msra.mxu0 0.0
      %753 = vmatprep.subr.mxu0 0.0
      %754 = vmatpush1.msra.mxu0 0.0
      %755 = vmatprep.subr.mxu0 0.0
      %756 = vmatpush1.msra.mxu0 0.0
      %757 = vmatprep.subr.mxu0 0.0
      %758 = vmatpush1.msra.mxu0 0.0
      %759 = vmatprep.subr.mxu0 0.0
      %760 = vmatpush1.msra.mxu0 0.0
      %761 = vmatprep.subr.mxu0 0.0
      %762 = vmatpush1.msra.mxu0 0.0
      %763 = vmatprep.subr.mxu0 0.0
      %764 = vmatpush1.msra.mxu0 0.0
      %765 = vmatprep.subr.mxu0 0.0
      %766 = vmatpush1.msra.mxu0 0.0
      %767 = vmatprep.subr.mxu0 0.0
      %768 = vmatpush1.msra.mxu0 0.0
      %769 = vmatprep.subr.mxu0 0.0
      %770 = vmatpush1.msra.mxu0 0.0
      %771 = vmatprep.subr.mxu0 0.0
      %772 = vmatpush1.msra.mxu0 0.0
      %773 = vmatprep.subr.mxu0 0.0
      %774 = vmatpush1.msra.mxu0 0.0
      %775 = vmatprep.subr.mxu0 0.0
      %776 = vmatpush1.msra.mxu0 0.0
      %777 = vmatprep.subr.mxu0 0.0
      %778 = vmatpush1.msra.mxu0 0.0
      %779 = vmatprep.subr.mxu0 0.0
      %780 = vmatpush1.msra.mxu0 0.0
      %781 = vmatprep.subr.mxu0 0.0
      %782 = vmatpush1.msra.mxu0 0.0
      %783 = vmatprep.subr.mxu0 0.0
      %784 = vmatpush1.msra.mxu0 0.0
      %785 = vmatprep.mubr.f32.mxu0 0.0
      %786 = vmatmul.mubr.f32.gmra.mrb[0].mxu0 %v408
      %v787 = vpop.f32.mrb[0].mxu0
      %v788 = vadd.f32 %v711, %v787
      %v789 = vpop.f32.mrb[0].mxu0
      %790 = vdwg.mxu0
      %v791 = vlaneseq
      %v792 = vshrl.u32 %v791, 7
      %v793 = vsub.s32 0, %v792
      %v794 = vrot.slane %v391, %v793
      %v795 = vadd.f32 %v788, %v794
      %796 = vmatprep.subr.mxu0 0.0
      %797 = vmatpush1.msra.mxu0 %v397
      %798 = vmatprep.subr.mxu0 0.0
      %799 = vmatpush1.msra.mxu0 %v398
      %800 = vmatprep.subr.mxu0 0.0
      %801 = vmatpush1.msra.mxu0 %v399
      %802 = vmatprep.subr.mxu0 0.0
      %803 = vmatpush1.msra.mxu0 %v400
      %804 = vmatprep.subr.mxu0 0.0
      %805 = vmatpush1.msra.mxu0 0.0
      %806 = vmatprep.subr.mxu0 0.0
      %807 = vmatpush1.msra.mxu0 0.0
      %808 = vmatprep.subr.mxu0 0.0
      %809 = vmatpush1.msra.mxu0 0.0
      %810 = vmatprep.subr.mxu0 0.0
      %811 = vmatpush1.msra.mxu0 0.0
      %812 = vmatprep.subr.mxu0 0.0
      %813 = vmatpush1.msra.mxu0 0.0
      %814 = vmatprep.subr.mxu0 0.0
      %815 = vmatpush1.msra.mxu0 0.0
      %816 = vmatprep.subr.mxu0 0.0
      %817 = vmatpush1.msra.mxu0 0.0
      %818 = vmatprep.subr.mxu0 0.0
      %819 = vmatpush1.msra.mxu0 0.0
      %820 = vmatprep.subr.mxu0 0.0
      %821 = vmatpush1.msra.mxu0 0.0
      %822 = vmatprep.subr.mxu0 0.0
      %823 = vmatpush1.msra.mxu0 0.0
      %824 = vmatprep.subr.mxu0 0.0
      %825 = vmatpush1.msra.mxu0 0.0
      %826 = vmatprep.subr.mxu0 0.0
      %827 = vmatpush1.msra.mxu0 0.0
      %828 = vmatprep.subr.mxu0 0.0
      %829 = vmatpush1.msra.mxu0 0.0
      %830 = vmatprep.subr.mxu0 0.0
      %831 = vmatpush1.msra.mxu0 0.0
      %832 = vmatprep.subr.mxu0 0.0
      %833 = vmatpush1.msra.mxu0 0.0
      %834 = vmatprep.subr.mxu0 0.0
      %835 = vmatpush1.msra.mxu0 0.0
      %836 = vmatprep.subr.mxu0 0.0
      %837 = vmatpush1.msra.mxu0 0.0
      %838 = vmatprep.subr.mxu0 0.0
      %839 = vmatpush1.msra.mxu0 0.0
      %840 = vmatprep.subr.mxu0 0.0
      %841 = vmatpush1.msra.mxu0 0.0
      %842 = vmatprep.subr.mxu0 0.0
      %843 = vmatpush1.msra.mxu0 0.0
      %844 = vmatprep.subr.mxu0 0.0
      %845 = vmatpush1.msra.mxu0 0.0
      %846 = vmatprep.subr.mxu0 0.0
      %847 = vmatpush1.msra.mxu0 0.0
      %848 = vmatprep.subr.mxu0 0.0
      %849 = vmatpush1.msra.mxu0 0.0
      %850 = vmatprep.subr.mxu0 0.0
      %851 = vmatpush1.msra.mxu0 0.0
      %852 = vmatprep.subr.mxu0 0.0
      %853 = vmatpush1.msra.mxu0 0.0
      %854 = vmatprep.subr.mxu0 0.0
      %855 = vmatpush1.msra.mxu0 0.0
      %856 = vmatprep.subr.mxu0 0.0
      %857 = vmatpush1.msra.mxu0 0.0
      %858 = vmatprep.subr.mxu0 0.0
      %859 = vmatpush1.msra.mxu0 0.0
      %860 = vmatprep.mubr.f32.mxu0 0.0
      %861 = vmatmul.mubr.f32.gmra.mrb[0].mxu0 %v408
      %v862 = vpop.f32.mrb[0].mxu0
      %v863 = vadd.f32 %v720, %v862
      %v864 = vpop.f32.mrb[0].mxu0
      %865 = vdwg.mxu0
      %v866 = vadd.f32 %v863, %v794
      %v867 = vld [vmem:[%s374] sm:$0x3]
      %v868 = vunpack.c.0.s8 %v867
      %v869 = vcvt.s32.f32 %v868
      %vm870 = vcmp.lt.f32.partialorder %v869, 0.5
      %v871 = vmax.f32 %v795, 0.0
      %v872 = vsel %vm870, 1, 0
      %873 = vset.pattern.permute.xlu0 0
      %874 = vperm.xlu0 %873, %v872
      %v875 = vpop.permute.xlu0 %874
      %vm876 = vcmp.eq.s32.totalorder %v875, 1
      %v877 = vsel %vm876, %v871, 0.0
      %v878 = vmax.f32 %v866, 0.0
      %879 = vset.pattern.permute.xlu0 1
      %880 = vperm.xlu0 %879, %v872
      %v881 = vpop.permute.xlu0 %880
      %vm882 = vcmp.eq.s32.totalorder %v881, 1
      %v883 = vsel %vm882, %v878, 0.0
      %v884 = vld [vmem:[%s381] sm:$0xff]
      %v885 = vld [vmem:[%s5] sm:$0xff]
      %v886 = vld [vmem:[%s5 + $0x8] sm:$0xff]
      %v887 = vld [vmem:[%s5 + $0x10] sm:$0xff]
      %v888 = vld [vmem:[%s5 + $0x18] sm:$0xff]
      %s889 = scalar_lea.vmem %s5, 32
      %v890 = vld [vmem:[%s889] sm:$0xff]
      %v891 = vld [vmem:[%s889 + $0x8] sm:$0xff]
      %v892 = vld [vmem:[%s889 + $0x10] sm:$0xff]
      %v893 = vld [vmem:[%s889 + $0x18] sm:$0xff]
      %v895 = vsel %vm406, %v884, 0
      %897 = vmatprep.subr.mxu0 0.0
      %898 = vmatpush1.msra.mxu0 %v890
      %899 = vmatprep.subr.mxu0 0.0
      %900 = vmatpush1.msra.mxu0 %v891
      %901 = vmatprep.subr.mxu0 0.0
      %902 = vmatpush1.msra.mxu0 %v892
      %903 = vmatprep.subr.mxu0 0.0
      %904 = vmatpush1.msra.mxu0 %v893
      %905 = vmatprep.subr.mxu0 0.0
      %906 = vmatpush1.msra.mxu0 0.0
      %907 = vmatprep.subr.mxu0 0.0
      %908 = vmatpush1.msra.mxu0 0.0
      %909 = vmatprep.subr.mxu0 0.0
      %910 = vmatpush1.msra.mxu0 0.0
      %911 = vmatprep.subr.mxu0 0.0
      %912 = vmatpush1.msra.mxu0 0.0
      %913 = vmatprep.subr.mxu0 0.0
      %914 = vmatpush1.msra.mxu0 0.0
      %915 = vmatprep.subr.mxu0 0.0
      %916 = vmatpush1.msra.mxu0 0.0
      %917 = vmatprep.subr.mxu0 0.0
      %918 = vmatpush1.msra.mxu0 0.0
      %919 = vmatprep.subr.mxu0 0.0
      %920 = vmatpush1.msra.mxu0 0.0
      %921 = vmatprep.subr.mxu0 0.0
      %922 = vmatpush1.msra.mxu0 0.0
      %923 = vmatprep.subr.mxu0 0.0
      %924 = vmatpush1.msra.mxu0 0.0
      %925 = vmatprep.subr.mxu0 0.0
      %926 = vmatpush1.msra.mxu0 0.0
      %927 = vmatprep.subr.mxu0 0.0
      %928 = vmatpush1.msra.mxu0 0.0
      %929 = vmatprep.subr.mxu0 0.0
      %930 = vmatpush1.msra.mxu0 0.0
      %931 = vmatprep.subr.mxu0 0.0
      %932 = vmatpush1.msra.mxu0 0.0
      %933 = vmatprep.subr.mxu0 0.0
      %934 = vmatpush1.msra.mxu0 0.0
      %935 = vmatprep.subr.mxu0 0.0
      %936 = vmatpush1.msra.mxu0 0.0
      %937 = vmatprep.subr.mxu0 0.0
      %938 = vmatpush1.msra.mxu0 0.0
      %939 = vmatprep.subr.mxu0 0.0
      %940 = vmatpush1.msra.mxu0 0.0
      %941 = vmatprep.subr.mxu0 0.0
      %942 = vmatpush1.msra.mxu0 0.0
      %943 = vmatprep.subr.mxu0 0.0
      %944 = vmatpush1.msra.mxu0 0.0
      %945 = vmatprep.subr.mxu0 0.0
      %946 = vmatpush1.msra.mxu0 0.0
      %947 = vmatprep.subr.mxu0 0.0
      %948 = vmatpush1.msra.mxu0 0.0
      %949 = vmatprep.subr.mxu0 0.0
      %950 = vmatpush1.msra.mxu0 0.0
      %951 = vmatprep.subr.mxu0 0.0
      %952 = vmatpush1.msra.mxu0 0.0
      %953 = vmatprep.subr.mxu0 0.0
      %954 = vmatpush1.msra.mxu0 0.0
      %955 = vmatprep.subr.mxu0 0.0
      %956 = vmatpush1.msra.mxu0 0.0
      %957 = vmatprep.subr.mxu0 0.0
      %958 = vmatpush1.msra.mxu0 0.0
      %959 = vmatprep.subr.mxu0 0.0
      %960 = vmatpush1.msra.mxu0 0.0
      %961 = vmatprep.mubr.f32.mxu0 0.0
      %962 = vmatmul.mubr.f32.gmra.mrb[0].mxu0 %v895
      %v963 = vpop.f32.mrb[0].mxu0
      %v964 = vadd.f32 0.0, %v963
      %v965 = vpop.f32.mrb[0].mxu0
      %966 = vdwg.mxu0
      %v968 = vsel %vm406, %v877, 0
      %970 = vmatprep.subr.mxu0 0.0
      %971 = vmatpush1.msra.mxu0 %v885
      %972 = vmatprep.subr.mxu0 0.0
      %973 = vmatpush1.msra.mxu0 %v886
      %974 = vmatprep.subr.mxu0 0.0
      %975 = vmatpush1.msra.mxu0 %v887
      %976 = vmatprep.subr.mxu0 0.0
      %977 = vmatpush1.msra.mxu0 %v888
      %978 = vmatprep.subr.mxu0 0.0
      %979 = vmatpush1.msra.mxu0 0.0
      %980 = vmatprep.subr.mxu0 0.0
      %981 = vmatpush1.msra.mxu0 0.0
      %982 = vmatprep.subr.mxu0 0.0
      %983 = vmatpush1.msra.mxu0 0.0
      %984 = vmatprep.subr.mxu0 0.0
      %985 = vmatpush1.msra.mxu0 0.0
      %986 = vmatprep.subr.mxu0 0.0
      %987 = vmatpush1.msra.mxu0 0.0
      %988 = vmatprep.subr.mxu0 0.0
      %989 = vmatpush1.msra.mxu0 0.0
      %990 = vmatprep.subr.mxu0 0.0
      %991 = vmatpush1.msra.mxu0 0.0
      %992 = vmatprep.subr.mxu0 0.0
      %993 = vmatpush1.msra.mxu0 0.0
      %994 = vmatprep.subr.mxu0 0.0
      %995 = vmatpush1.msra.mxu0 0.0
      %996 = vmatprep.subr.mxu0 0.0
      %997 = vmatpush1.msra.mxu0 0.0
      %998 = vmatprep.subr.mxu0 0.0
      %999 = vmatpush1.msra.mxu0 0.0
      %1000 = vmatprep.subr.mxu0 0.0
      %1001 = vmatpush1.msra.mxu0 0.0
      %1002 = vmatprep.subr.mxu0 0.0
      %1003 = vmatpush1.msra.mxu0 0.0
      %1004 = vmatprep.subr.mxu0 0.0
      %1005 = vmatpush1.msra.mxu0 0.0
      %1006 = vmatprep.subr.mxu0 0.0
      %1007 = vmatpush1.msra.mxu0 0.0
      %1008 = vmatprep.subr.mxu0 0.0
      %1009 = vmatpush1.msra.mxu0 0.0
      %1010 = vmatprep.subr.mxu0 0.0
      %1011 = vmatpush1.msra.mxu0 0.0
      %1012 = vmatprep.subr.mxu0 0.0
      %1013 = vmatpush1.msra.mxu0 0.0
      %1014 = vmatprep.subr.mxu0 0.0
      %1015 = vmatpush1.msra.mxu0 0.0
      %1016 = vmatprep.subr.mxu0 0.0
      %1017 = vmatpush1.msra.mxu0 0.0
      %1018 = vmatprep.subr.mxu0 0.0
      %1019 = vmatpush1.msra.mxu0 0.0
      %1020 = vmatprep.subr.mxu0 0.0
      %1021 = vmatpush1.msra.mxu0 0.0
      %1022 = vmatprep.subr.mxu0 0.0
      %1023 = vmatpush1.msra.mxu0 0.0
      %1024 = vmatprep.subr.mxu0 0.0
      %1025 = vmatpush1.msra.mxu0 0.0
      %1026 = vmatprep.subr.mxu0 0.0
      %1027 = vmatpush1.msra.mxu0 0.0
      %1028 = vmatprep.subr.mxu0 0.0
      %1029 = vmatpush1.msra.mxu0 0.0
      %1030 = vmatprep.subr.mxu0 0.0
      %1031 = vmatpush1.msra.mxu0 0.0
      %1032 = vmatprep.subr.mxu0 0.0
      %1033 = vmatpush1.msra.mxu0 0.0
      %1034 = vmatprep.mubr.f32.mxu0 0.0
      %1035 = vmatmul.mubr.f32.gmra.mrb[0].mxu0 %v968
      %v1036 = vpop.f32.mrb[0].mxu0
      %v1037 = vadd.f32 %v964, %v1036
      %v1038 = vpop.f32.mrb[0].mxu0
      %1039 = vdwg.mxu0
      %v1040 = vlaneseq
      %v1041 = vshrl.u32 %v1040, 7
      %v1042 = vsub.s32 1, %v1041
      %v1043 = vrot.slane %v391, %v1042
      %v1044 = vadd.f32 %v1037, %v1043
      %1045 = vrot.lane.b32.xlu0 %v884, 96
      %v1046 = vpop.permute.xlu0 %1045
      %v1047 = vsel %vm406, %v1046, 0
      %1049 = vmatprep.subr.mxu0 0.0
      %1050 = vmatpush1.msra.mxu0 %v890
      %1051 = vmatprep.subr.mxu0 0.0
      %1052 = vmatpush1.msra.mxu0 %v891
      %1053 = vmatprep.subr.mxu0 0.0
      %1054 = vmatpush1.msra.mxu0 %v892
      %1055 = vmatprep.subr.mxu0 0.0
      %1056 = vmatpush1.msra.mxu0 %v893
      %1057 = vmatprep.subr.mxu0 0.0
      %1058 = vmatpush1.msra.mxu0 0.0
      %1059 = vmatprep.subr.mxu0 0.0
      %1060 = vmatpush1.msra.mxu0 0.0
      %1061 = vmatprep.subr.mxu0 0.0
      %1062 = vmatpush1.msra.mxu0 0.0
      %1063 = vmatprep.subr.mxu0 0.0
      %1064 = vmatpush1.msra.mxu0 0.0
      %1065 = vmatprep.subr.mxu0 0.0
      %1066 = vmatpush1.msra.mxu0 0.0
      %1067 = vmatprep.subr.mxu0 0.0
      %1068 = vmatpush1.msra.mxu0 0.0
      %1069 = vmatprep.subr.mxu0 0.0
      %1070 = vmatpush1.msra.mxu0 0.0
      %1071 = vmatprep.subr.mxu0 0.0
      %1072 = vmatpush1.msra.mxu0 0.0
      %1073 = vmatprep.subr.mxu0 0.0
      %1074 = vmatpush1.msra.mxu0 0.0
      %1075 = vmatprep.subr.mxu0 0.0
      %1076 = vmatpush1.msra.mxu0 0.0
      %1077 = vmatprep.subr.mxu0 0.0
      %1078 = vmatpush1.msra.mxu0 0.0
      %1079 = vmatprep.subr.mxu0 0.0
      %1080 = vmatpush1.msra.mxu0 0.0
      %1081 = vmatprep.subr.mxu0 0.0
      %1082 = vmatpush1.msra.mxu0 0.0
      %1083 = vmatprep.subr.mxu0 0.0
      %1084 = vmatpush1.msra.mxu0 0.0
      %1085 = vmatprep.subr.mxu0 0.0
      %1086 = vmatpush1.msra.mxu0 0.0
      %1087 = vmatprep.subr.mxu0 0.0
      %1088 = vmatpush1.msra.mxu0 0.0
      %1089 = vmatprep.subr.mxu0 0.0
      %1090 = vmatpush1.msra.mxu0 0.0
      %1091 = vmatprep.subr.mxu0 0.0
      %1092 = vmatpush1.msra.mxu0 0.0
      %1093 = vmatprep.subr.mxu0 0.0
      %1094 = vmatpush1.msra.mxu0 0.0
      %1095 = vmatprep.subr.mxu0 0.0
      %1096 = vmatpush1.msra.mxu0 0.0
      %1097 = vmatprep.subr.mxu0 0.0
      %1098 = vmatpush1.msra.mxu0 0.0
      %1099 = vmatprep.subr.mxu0 0.0
      %1100 = vmatpush1.msra.mxu0 0.0
      %1101 = vmatprep.subr.mxu0 0.0
      %1102 = vmatpush1.msra.mxu0 0.0
      %1103 = vmatprep.subr.mxu0 0.0
      %1104 = vmatpush1.msra.mxu0 0.0
      %1105 = vmatprep.subr.mxu0 0.0
      %1106 = vmatpush1.msra.mxu0 0.0
      %1107 = vmatprep.subr.mxu0 0.0
      %1108 = vmatpush1.msra.mxu0 0.0
      %1109 = vmatprep.subr.mxu0 0.0
      %1110 = vmatpush1.msra.mxu0 0.0
      %1111 = vmatprep.subr.mxu0 0.0
      %1112 = vmatpush1.msra.mxu0 0.0
      %1113 = vmatprep.mubr.f32.mxu0 0.0
      %1114 = vmatmul.mubr.f32.gmra.mrb[0].mxu0 %v1047
      %v1115 = vpop.f32.mrb[0].mxu0
      %v1116 = vadd.f32 0.0, %v1115
      %v1117 = vpop.f32.mrb[0].mxu0
      %1118 = vdwg.mxu0
      %v1120 = vsel %vm406, %v883, 0
      %1122 = vmatprep.subr.mxu0 0.0
      %1123 = vmatpush1.msra.mxu0 %v885
      %1124 = vmatprep.subr.mxu0 0.0
      %1125 = vmatpush1.msra.mxu0 %v886
      %1126 = vmatprep.subr.mxu0 0.0
      %1127 = vmatpush1.msra.mxu0 %v887
      %1128 = vmatprep.subr.mxu0 0.0
      %1129 = vmatpush1.msra.mxu0 %v888
      %1130 = vmatprep.subr.mxu0 0.0
      %1131 = vmatpush1.msra.mxu0 0.0
      %1132 = vmatprep.subr.mxu0 0.0
      %1133 = vmatpush1.msra.mxu0 0.0
      %1134 = vmatprep.subr.mxu0 0.0
      %1135 = vmatpush1.msra.mxu0 0.0
      %1136 = vmatprep.subr.mxu0 0.0
      %1137 = vmatpush1.msra.mxu0 0.0
      %1138 = vmatprep.subr.mxu0 0.0
      %1139 = vmatpush1.msra.mxu0 0.0
      %1140 = vmatprep.subr.mxu0 0.0
      %1141 = vmatpush1.msra.mxu0 0.0
      %1142 = vmatprep.subr.mxu0 0.0
      %1143 = vmatpush1.msra.mxu0 0.0
      %1144 = vmatprep.subr.mxu0 0.0
      %1145 = vmatpush1.msra.mxu0 0.0
      %1146 = vmatprep.subr.mxu0 0.0
      %1147 = vmatpush1.msra.mxu0 0.0
      %1148 = vmatprep.subr.mxu0 0.0
      %1149 = vmatpush1.msra.mxu0 0.0
      %1150 = vmatprep.subr.mxu0 0.0
      %1151 = vmatpush1.msra.mxu0 0.0
      %1152 = vmatprep.subr.mxu0 0.0
      %1153 = vmatpush1.msra.mxu0 0.0
      %1154 = vmatprep.subr.mxu0 0.0
      %1155 = vmatpush1.msra.mxu0 0.0
      %1156 = vmatprep.subr.mxu0 0.0
      %1157 = vmatpush1.msra.mxu0 0.0
      %1158 = vmatprep.subr.mxu0 0.0
      %1159 = vmatpush1.msra.mxu0 0.0
      %1160 = vmatprep.subr.mxu0 0.0
      %1161 = vmatpush1.msra.mxu0 0.0
      %1162 = vmatprep.subr.mxu0 0.0
      %1163 = vmatpush1.msra.mxu0 0.0
      %1164 = vmatprep.subr.mxu0 0.0
      %1165 = vmatpush1.msra.mxu0 0.0
      %1166 = vmatprep.subr.mxu0 0.0
      %1167 = vmatpush1.msra.mxu0 0.0
      %1168 = vmatprep.subr.mxu0 0.0
      %1169 = vmatpush1.msra.mxu0 0.0
      %1170 = vmatprep.subr.mxu0 0.0
      %1171 = vmatpush1.msra.mxu0 0.0
      %1172 = vmatprep.subr.mxu0 0.0
      %1173 = vmatpush1.msra.mxu0 0.0
      %1174 = vmatprep.subr.mxu0 0.0
      %1175 = vmatpush1.msra.mxu0 0.0
      %1176 = vmatprep.subr.mxu0 0.0
      %1177 = vmatpush1.msra.mxu0 0.0
      %1178 = vmatprep.subr.mxu0 0.0
      %1179 = vmatpush1.msra.mxu0 0.0
      %1180 = vmatprep.subr.mxu0 0.0
      %1181 = vmatpush1.msra.mxu0 0.0
      %1182 = vmatprep.subr.mxu0 0.0
      %1183 = vmatpush1.msra.mxu0 0.0
      %1184 = vmatprep.subr.mxu0 0.0
      %1185 = vmatpush1.msra.mxu0 0.0
      %1186 = vmatprep.mubr.f32.mxu0 0.0
      %1187 = vmatmul.mubr.f32.gmra.mrb[0].mxu0 %v1120
      %v1188 = vpop.f32.mrb[0].mxu0
      %v1189 = vadd.f32 %v1116, %v1188
      %v1190 = vpop.f32.mrb[0].mxu0
      %1191 = vdwg.mxu0
      %v1192 = vadd.f32 %v1189, %v1043
      %1193 = vst.msk [vmem:[%s388] sm:$0xff] %vm406, %v1044
      %1195 = vrot.lane.b32.xlu0 %v1192, 32
      %v1196 = vpop.permute.xlu0 %1195
      %vm1198 = vcmask 523520
      %1199 = vst.msk [vmem:[%s388] sm:$0xff] %vm1198, %v1196
      %p1200 = scmp.lt.s32.totalorder %s22, 1
      %s1201 = scalar_select %p1200, %s22, 1
      %p1202 = scmp.lt.s32.totalorder %s23, 0
      %s1203 = scalar_select %p1202, %s23, 0
      %s1204 = sadd.s32 %s1203, %s1201
      %s1205 = smul.addr %s1204, 8
      %s1206 = scalar_lea.vmem %s7, %s1205
      // Predicated region
      $region49: #{upsample_forward.3} parent=47 // pred_check
        %p1207 = pneg %p225
      $region50: #{upsample_forward.3} parent=47 // pred_check_branch
        %1209 = sbr.rel (%p1207) target = $region52
      $region51: #{upsample_forward.3} parent=47 // pred_region
        _
      $region52: #{upsample_forward.3} parent=47 // pred_fallthru
        _
    $region48: #{upsample_forward.3} parent=5 // pred_fallthru
      _
    %p1210 = scmp.le.s32.totalorder 2, %s13
    // Predicated region
    $region53: #{upsample_forward.3} parent=5 // pred_check
      %p1211 = pneg %p1210
    $region54: #{upsample_forward.3} parent=5 // pred_check_branch
      %1213 = sbr.rel (%p1211) target = $region56
    $region55: #{upsample_forward.3} parent=5 // pred_region
      %s1214 = ssub.s32 %s13, 2
      // Predicated region
      $region57: #{upsample_forward.3} parent=55 // pred_check
        %p1215 = pneg %p231
      $region58: #{upsample_forward.3} parent=55 // pred_check_branch
        %1217 = sbr.rel (%p1215) target = $region60
      $region59: #{upsample_forward.3} parent=55 // pred_region
        %p1218 = scmp.lt.s32.totalorder %s24, 1
        %s1219 = scalar_select %p1218, %s24, 1
        %p1220 = scmp.lt.s32.totalorder %s25, 0
        %s1221 = scalar_select %p1220, %s25, 0
        %s1222 = sadd.s32 %s1221, %s1219
        %s1223 = smul.addr %s1222, 8
        %s1224 = scalar_lea.vmem %s7, %s1223
      $region60: #{upsample_forward.3} parent=55 // pred_fallthru
        _
    $region56: #{upsample_forward.3} parent=5 // pred_fallthru
      _
  $region6: #{upsample_forward.3} parent=0 // loop_footer
    %s17 = sadd.s32 1, %s13
  $region7: #{upsample_forward.3} parent=0 // loop_footer_branch
    %12 = sbr.rel target = $region3
  $region8: #{upsample_forward.3} parent=0 // loop_exit
    _

// kernel: upsample_forward.4
$region0: #{upsample_forward.4}
  #allocation0 [shape = 'u32[]', space=smem, size = 0x4, offset = 0x4, fixed_abs, tag = 'smem constant byte address 0x4 - core index']
  #allocation1 [shape = 'u32[144,128]{1,0:T(1,128)}', space=vmem, size = 0x12000, scoped, tag = 'internal scratch']
  %s0 = inlined_call_operand.vmem [shape: f32[2,16,32], index: 0, kind: input, shape index: {}]
  %s1 = inlined_call_operand.vmem [shape: f32[2,1,2,32], index: 1, kind: input, shape index: {}]
  %s2 = inlined_call_operand.vmem [shape: s8[2,16,2], index: 2, kind: input, shape index: {}]
  %s3 = inlined_call_operand.vmem [shape: f32[2,16,64], index: 3, kind: input, shape index: {}]
  %s4 = inlined_call_operand.vmem [shape: f32[4,32,32], index: 4, kind: input, shape index: {}]
  %s5 = inlined_call_operand.vmem [shape: f32[2,32,32], index: 5, kind: input, shape index: {}]
  %s6 = inlined_call_operand.vmem [shape: f32[2,32], index: 6, kind: input, shape index: {}]
  %s7 = inlined_call_operand.vmem [shape: f32[2,16,64], index: 7, kind: output, shape index: {}]
  %s8 = sld [smem:[#allocation0]]
  $region61: #{upsample_forward.4} parent=0
    _
  %s10 = ssub.s32 1, %s8
  %s11 = scalar_select 0, %s10, %s8
  loop: start=0, step=1, limit=4
  $region2: #{upsample_forward.4} parent=0 // loop_pre_header
    _
  $region3: #{upsample_forward.4} parent=0 // loop_header
    %s13 = sphi 0, %s17
    %p14 = scmp.ge.s32.totalorder %s13, 4
    %s20 = sphi 0, %s32
    %s21 = sphi 0, %s28
    %s22 = sphi 0, %s20
    %s23 = sphi 0, %s21
    %s24 = sphi 0, %s22
    %s25 = sphi 0, %s23
    %s37 = sphi 0, %s39
    %s40 = sphi 0, %s37
    %s41 = sphi 0, %s40
    %s57 = sphi 0, %s41
    %s65 = sphi 0, %s67
    %s68 = sphi 0, %s65
    %s69 = sphi 0, %s68
    %s85 = sphi 0, %s69
    %s93 = sphi 0, %s95
    %s96 = sphi 0, %s93
    %s97 = sphi 0, %s96
    %s113 = sphi 0, %s97
    %s121 = sphi 0, %s123
    %s124 = sphi 0, %s121
    %s125 = sphi 0, %s124
    %s141 = sphi 0, %s125
    %s145 = sphi 0, %s145
    %s147 = sphi 0, %s145
    %s148 = sphi 0, %s147
    %s162 = sphi 0, %s148
    %s166 = sphi 0, %s166
    %s168 = sphi 0, %s166
    %s169 = sphi 0, %s168
    %s183 = sphi 0, %s169
    %s187 = sphi 0, %s187
    %s189 = sphi 0, %s187
    %s190 = sphi 0, %s189
    %s204 = sphi 0, %s190
    %s212 = sphi 0, %s214
    %s215 = sphi 0, %s212
    %s216 = sphi 0, %s215
    %s232 = sphi 0, %s216
  $region4: #{upsample_forward.4} parent=0 // loop_header_branch
    %16 = sbr.rel (%p14) target = $region8
  $region5: #{upsample_forward.4} parent=0 // loop_body
    %s18 = ssub.s32 %s13, 1
    %s19 = ssub.s32 %s13, 2
    %s26 = sadd.s32 1, %s21
    %p27 = scmp.ge.s32.totalorder %s26, 1
    %s28 = scalar_select %p27, 0, %s26
    %s29 = sadd.s32 1, %s20
    %s30 = scalar_select %p27, %s29, %s20
    %p31 = scmp.ge.s32.totalorder %s30, 2
    %s32 = scalar_select %p31, 0, %s30
    %s33 = ssub.s32 %s20, %s32
    %s34 = ssub.s32 %s21, %s28
    %s35 = sor.u32 %s33, %s34
    %p36 = scmp.eq.s32.totalorder %s35, 0
    %s38 = sadd.s32 %s37, 1
    %s39 = scalar_select %p36, %s37, %s38
    %p42 = pneg %p36
    %p43 = scmp.eq.s32.totalorder %s13, 1
    %p44 = por %p42, %p43
    %p45 = scmp.ne.s32.totalorder %s37, %s40
    %p46 = scmp.eq.s32.totalorder %s13, 0
    %p47 = por %p45, %p46
    %p48 = scmp.ne.s32.totalorder %s37, %s40
    %p49 = scmp.eq.s32.totalorder %s18, 1
    %p50 = por %p48, %p49
    %p51 = scmp.ne.s32.totalorder %s40, %s41
    %p52 = scmp.eq.s32.totalorder %s18, 0
    %p53 = por %p51, %p52
    %p54 = scmp.ne.s32.totalorder %s40, %s41
    %p55 = scmp.eq.s32.totalorder %s19, 1
    %p56 = por %p54, %p55
    %p58 = scmp.ne.s32.totalorder %s41, %s57
    %p59 = scmp.eq.s32.totalorder %s19, 0
    %p60 = por %p58, %p59
    %s61 = ssub.s32 %s20, %s32
    %s62 = ssub.s32 %s21, %s28
    %s63 = sor.u32 %s61, %s62
    %p64 = scmp.eq.s32.totalorder %s63, 0
    %s66 = sadd.s32 %s65, 1
    %s67 = scalar_select %p64, %s65, %s66
    %p70 = pneg %p64
    %p71 = scmp.eq.s32.totalorder %s13, 1
    %p72 = por %p70, %p71
    %p73 = scmp.ne.s32.totalorder %s65, %s68
    %p74 = scmp.eq.s32.totalorder %s13, 0
    %p75 = por %p73, %p74
    %p76 = scmp.ne.s32.totalorder %s65, %s68
    %p77 = scmp.eq.s32.totalorder %s18, 1
    %p78 = por %p76, %p77
    %p79 = scmp.ne.s32.totalorder %s68, %s69
    %p80 = scmp.eq.s32.totalorder %s18, 0
    %p81 = por %p79, %p80
    %p82 = scmp.ne.s32.totalorder %s68, %s69
    %p83 = scmp.eq.s32.totalorder %s19, 1
    %p84 = por %p82, %p83
    %p86 = scmp.ne.s32.totalorder %s69, %s85
    %p87 = scmp.eq.s32.totalorder %s19, 0
    %p88 = por %p86, %p87
    %s89 = ssub.s32 %s20, %s32
    %s90 = ssub.s32 %s21, %s28
    %s91 = sor.u32 %s89, %s90
    %p92 = scmp.eq.s32.totalorder %s91, 0
    %s94 = sadd.s32 %s93, 1
    %s95 = scalar_select %p92, %s93, %s94
    %p98 = pneg %p92
    %p99 = scmp.eq.s32.totalorder %s13, 1
    %p100 = por %p98, %p99
    %p101 = scmp.ne.s32.totalorder %s93, %s96
    %p102 = scmp.eq.s32.totalorder %s13, 0
    %p103 = por %p101, %p102
    %p104 = scmp.ne.s32.totalorder %s93, %s96
    %p105 = scmp.eq.s32.totalorder %s18, 1
    %p106 = por %p104, %p105
    %p107 = scmp.ne.s32.totalorder %s96, %s97
    %p108 = scmp.eq.s32.totalorder %s18, 0
    %p109 = por %p107, %p108
    %p110 = scmp.ne.s32.totalorder %s96, %s97
    %p111 = scmp.eq.s32.totalorder %s19, 1
    %p112 = por %p110, %p111
    %p114 = scmp.ne.s32.totalorder %s97, %s113
    %p115 = scmp.eq.s32.totalorder %s19, 0
    %p116 = por %p114, %p115
    %s117 = ssub.s32 %s20, %s32
    %s118 = ssub.s32 %s21, %s28
    %s119 = sor.u32 %s117, %s118
    %p120 = scmp.eq.s32.totalorder %s119, 0
    %s122 = sadd.s32 %s121, 1
    %s123 = scalar_select %p120, %s121, %s122
    %p126 = pneg %p120
    %p127 = scmp.eq.s32.totalorder %s13, 1
    %p128 = por %p126, %p127
    %p129 = scmp.ne.s32.totalorder %s121, %s124
    %p130 = scmp.eq.s32.totalorder %s13, 0
    %p131 = por %p129, %p130
    %p132 = scmp.ne.s32.totalorder %s121, %s124
    %p133 = scmp.eq.s32.totalorder %s18, 1
    %p134 = por %p132, %p133
    %p135 = scmp.ne.s32.totalorder %s124, %s125
    %p136 = scmp.eq.s32.totalorder %s18, 0
    %p137 = por %p135, %p136
    %p138 = scmp.ne.s32.totalorder %s124, %s125
    %p139 = scmp.eq.s32.totalorder %s19, 1
    %p140 = por %p138, %p139
    %p142 = scmp.ne.s32.totalorder %s125, %s141
    %p143 = scmp.eq.s32.totalorder %s19, 0
    %p144 = por %p142, %p143
    %s146 = sadd.s32 %s145, 1
    %p149 = scmp.eq.s32.totalorder %s13, 1
    %p150 = scmp.ne.s32.totalorder %s145, %s147
    %p151 = scmp.eq.s32.totalorder %s13, 0
    %p152 = por %p150, %p151
    %p153 = scmp.ne.s32.totalorder %s145, %s147
    %p154 = scmp.eq.s32.totalorder %s18, 1
    %p155 = por %p153, %p154
    %p156 = scmp.ne.s32.totalorder %s147, %s148
    %p157 = scmp.eq.s32.totalorder %s18, 0
    %p158 = por %p156, %p157
    %p159 = scmp.ne.s32.totalorder %s147, %s148
    %p160 = scmp.eq.s32.totalorder %s19, 1
    %p161 = por %p159, %p160
    %p163 = scmp.ne.s32.totalorder %s148, %s162
    %p164 = scmp.eq.s32.totalorder %s19, 0
    %p165 = por %p163, %p164
    %s167 = sadd.s32 %s166, 1
    %p170 = scmp.eq.s32.totalorder %s13, 1
    %p171 = scmp.ne.s32.totalorder %s166, %s168
    %p172 = scmp.eq.s32.totalorder %s13, 0
    %p173 = por %p171, %p172
    %p174 = scmp.ne.s32.totalorder %s166, %s168
    %p175 = scmp.eq.s32.totalorder %s18, 1
    %p176 = por %p174, %p175
    %p177 = scmp.ne.s32.totalorder %s168, %s169
    %p178 = scmp.eq.s32.totalorder %s18, 0
    %p179 = por %p177, %p178
    %p180 = scmp.ne.s32.totalorder %s168, %s169
    %p181 = scmp.eq.s32.totalorder %s19, 1
    %p182 = por %p180, %p181
    %p184 = scmp.ne.s32.totalorder %s169, %s183
    %p185 = scmp.eq.s32.totalorder %s19, 0
    %p186 = por %p184, %p185
    %s188 = sadd.s32 %s187, 1
    %p191 = scmp.eq.s32.totalorder %s13, 1
    %p192 = scmp.ne.s32.totalorder %s187, %s189
    %p193 = scmp.eq.s32.totalorder %s13, 0
    %p194 = por %p192, %p193
    %p195 = scmp.ne.s32.totalorder %s187, %s189
    %p196 = scmp.eq.s32.totalorder %s18, 1
    %p197 = por %p195, %p196
    %p198 = scmp.ne.s32.totalorder %s189, %s190
    %p199 = scmp.eq.s32.totalorder %s18, 0
    %p200 = por %p198, %p199
    %p201 = scmp.ne.s32.totalorder %s189, %s190
    %p202 = scmp.eq.s32.totalorder %s19, 1
    %p203 = por %p201, %p202
    %p205 = scmp.ne.s32.totalorder %s190, %s204
    %p206 = scmp.eq.s32.totalorder %s19, 0
    %p207 = por %p205, %p206
    %s208 = ssub.s32 %s20, %s32
    %s209 = ssub.s32 %s21, %s28
    %s210 = sor.u32 %s208, %s209
    %p211 = scmp.eq.s32.totalorder %s210, 0
    %s213 = sadd.s32 %s212, 1
    %s214 = scalar_select %p211, %s212, %s213
    %p217 = pneg %p211
    %p218 = scmp.eq.s32.totalorder %s13, 1
    %p219 = por %p217, %p218
    %p220 = scmp.ne.s32.totalorder %s212, %s215
    %p221 = scmp.eq.s32.totalorder %s13, 0
    %p222 = por %p220, %p221
    %p223 = scmp.ne.s32.totalorder %s212, %s215
    %p224 = scmp.eq.s32.totalorder %s18, 1
    %p225 = por %p223, %p224
    %p226 = scmp.ne.s32.totalorder %s215, %s216
    %p227 = scmp.eq.s32.totalorder %s18, 0
    %p228 = por %p226, %p227
    %p229 = scmp.ne.s32.totalorder %s215, %s216
    %p230 = scmp.eq.s32.totalorder %s19, 1
    %p231 = por %p229, %p230
    %p233 = scmp.ne.s32.totalorder %s216, %s232
    %p234 = scmp.eq.s32.totalorder %s19, 0
    %p235 = por %p233, %p234
    %p236 = scmp.le.s32.totalorder 1, %s13
    %p237 = scmp.lt.s32.totalorder %s13, 3
    %p238 = pnand %p236, %p237
    %p239 = pneg %p238
    // Predicated region
    $region9: #{upsample_forward.4} parent=5 // pred_check
      _
    $region10: #{upsample_forward.4} parent=5 // pred_check_branch
      %241 = sbr.rel (%p238) target = $region12
    $region11: #{upsample_forward.4} parent=5 // pred_region
      %s242 = ssub.s32 %s13, 1
      // Predicated region
      $region13: #{upsample_forward.4} parent=11 // pred_check
        %p243 = pneg %p158
      $region14: #{upsample_forward.4} parent=11 // pred_check_branch
        %245 = sbr.rel (%p243) target = $region16
      $region15: #{upsample_forward.4} parent=11 // pred_region
        _
      $region16: #{upsample_forward.4} parent=11 // pred_fallthru
        _
      // Predicated region
      $region17: #{upsample_forward.4} parent=11 // pred_check
        %p246 = pneg %p179
      $region18: #{upsample_forward.4} parent=11 // pred_check_branch
        %248 = sbr.rel (%p246) target = $region20
      $region19: #{upsample_forward.4} parent=11 // pred_region
        _
      $region20: #{upsample_forward.4} parent=11 // pred_fallthru
        _
      // Predicated region
      $region21: #{upsample_forward.4} parent=11 // pred_check
        %p249 = pneg %p200
      $region22: #{upsample_forward.4} parent=11 // pred_check_branch
        %251 = sbr.rel (%p249) target = $region24
      $region23: #{upsample_forward.4} parent=11 // pred_region
        _
      $region24: #{upsample_forward.4} parent=11 // pred_fallthru
        _
    $region12: #{upsample_forward.4} parent=5 // pred_fallthru
      _
    %p252 = scmp.lt.s32.totalorder %s13, 2
    // Predicated region
    $region25: #{upsample_forward.4} parent=5 // pred_check
      %p253 = pneg %p252
    $region26: #{upsample_forward.4} parent=5 // pred_check_branch
      %255 = sbr.rel (%p253) target = $region28
    $region27: #{upsample_forward.4} parent=5 // pred_region
      // Predicated region
      $region29: #{upsample_forward.4} parent=27 // pred_check
        %p256 = pneg %p47
      $region30: #{upsample_forward.4} parent=27 // pred_check_branch
        %258 = sbr.rel (%p256) target = $region32
      $region31: #{upsample_forward.4} parent=27 // pred_region
        %s259 = smul.u32 2, %s21
        %p260 = scmp.lt.s32.totalorder %s20, 1
        %s261 = scalar_select %p260, %s20, 1
        %p262 = scmp.lt.s32.totalorder %s259, 1
        %s263 = scalar_select %p262, %s259, 1
        %s264 = smul.addr %s261, 2
        %s265 = sadd.s32 %s263, %s264
        %s266 = smul.addr %s265, 8
        %s267 = scalar_lea.vmem %s0, %s266
        %s268 = smul.u32 2, %s21
      $region32: #{upsample_forward.4} parent=27 // pred_fallthru
        _
      // Predicated region
      $region33: #{upsample_forward.4} parent=27 // pred_check
        %p269 = pneg %p75
      $region34: #{upsample_forward.4} parent=27 // pred_check_branch
        %271 = sbr.rel (%p269) target = $region36
      $region35: #{upsample_forward.4} parent=27 // pred_region
        %p272 = scmp.lt.s32.totalorder %s20, 1
        %s273 = scalar_select %p272, %s20, 1
        %p274 = scmp.lt.s32.totalorder %s21, 0
        %s275 = scalar_select %p274, %s21, 0
        %s276 = sadd.s32 %s275, %s273
        %s277 = smul.addr %s276, 2
        %s278 = scalar_lea.vmem %s1, %s277
      $region36: #{upsample_forward.4} parent=27 // pred_fallthru
        _
      // Predicated region
      $region37: #{upsample_forward.4} parent=27 // pred_check
        %p279 = pneg %p103
      $region38: #{upsample_forward.4} parent=27 // pred_check_branch
        %281 = sbr.rel (%p279) target = $region40
      $region39: #{upsample_forward.4} parent=27 // pred_region
        %s282 = smul.u32 2, %s21
        %p283 = scmp.lt.s32.totalorder %s20, 1
        %s284 = scalar_select %p283, %s20, 1
        %p285 = scmp.lt.s32.totalorder %s282, 1
        %s286 = scalar_select %p285, %s282, 1
        %s287 = smul.addr %s284, 2
        %s288 = sadd.s32 %s286, %s287
        %s289 = smul.addr %s288, 2
        %s290 = scalar_lea.vmem %s2, %s289
        %s291 = smul.u32 2, %s21
      $region40: #{upsample_forward.4} parent=27 // pred_fallthru
        _
      // Predicated region
      $region41: #{upsample_forward.4} parent=27 // pred_check
        %p292 = pneg %p131
      $region42: #{upsample_forward.4} parent=27 // pred_check_branch
        %294 = sbr.rel (%p292) target = $region44
      $region43: #{upsample_forward.4} parent=27 // pred_region
        %s295 = smul.u32 2, %s21
        %p296 = scmp.lt.s32.totalorder %s20, 1
        %s297 = scalar_select %p296, %s20, 1
        %p298 = scmp.lt.s32.totalorder %s295, 1
        %s299 = scalar_select %p298, %s295, 1
        %s300 = smul.addr %s297, 2
        %s301 = sadd.s32 %s299, %s300
        %s302 = smul.addr %s301, 8
        %s303 = scalar_lea.vmem %s3, %s302
        %s304 = smul.u32 2, %s21
      $region44: #{upsample_forward.4} parent=27 // pred_fallthru
        _
    $region28: #{upsample_forward.4} parent=5 // pred_fallthru
      _
    %p305 = scmp.le.s32.totalorder 1, %s13
    %p306 = scmp.lt.s32.totalorder %s13, 3
    %p307 = pnand %p305, %p306
    %p308 = pneg %p307
    // Predicated region
    $region45: #{upsample_forward.4} parent=5 // pred_check
      _
    $region46: #{upsample_forward.4} parent=5 // pred_check_branch
      %310 = sbr.rel (%p307) target = $region48
    $region47: #{upsample_forward.4} parent=5 // pred_region
      %s311 = ssub.s32 %s13, 1
      %s312 = smul.u32 2, %s23
      %p313 = scmp.lt.s32.totalorder %s22, 1
      %s314 = scalar_select %p313, %s22, 1
      %p315 = scmp.lt.s32.totalorder %s312, 1
      %s316 = scalar_select %p315, %s312, 1
      %s317 = smul.addr %s314, 2
      %s318 = sadd.s32 %s316, %s317
      %s319 = smul.addr %s318, 8
      %s320 = scalar_lea.vmem %s0, %s319
      %p321 = pneg %p53
      %p322 = pneg %p50
      %p323 = scmp.lt.s32.totalorder %s22, 1
      %s324 = scalar_select %p323, %s22, 1
      %p325 = scmp.lt.s32.totalorder %s23, 0
      %s326 = scalar_select %p325, %s23, 0
      %s327 = sadd.s32 %s326, %s324
      %s328 = smul.addr %s327, 2
      %s329 = scalar_lea.vmem %s1, %s328
      %p330 = pneg %p81
      %p331 = pneg %p78
      %s332 = smul.u32 2, %s23
      %p333 = scmp.lt.s32.totalorder %s22, 1
      %s334 = scalar_select %p333, %s22, 1
      %p335 = scmp.lt.s32.totalorder %s332, 1
      %s336 = scalar_select %p335, %s332, 1
      %s337 = smul.addr %s334, 2
      %s338 = sadd.s32 %s336, %s337
      %s339 = smul.addr %s338, 2
      %s340 = scalar_lea.vmem %s2, %s339
      %p341 = pneg %p109
      %p342 = pneg %p106
      %s343 = smul.u32 2, %s23
      %p344 = scmp.lt.s32.totalorder %s22, 1
      %s345 = scalar_select %p344, %s22, 1
      %p346 = scmp.lt.s32.totalorder %s343, 1
      %s347 = scalar_select %p346, %s343, 1
      %s348 = smul.addr %s345, 2
      %s349 = sadd.s32 %s347, %s348
      %s350 = smul.addr %s349, 8
      %s351 = scalar_lea.vmem %s3, %s350
      %p352 = pneg %p137
      %p353 = pneg %p134
      %p354 = pneg %p158
      %p355 = pneg %p155
      %p356 = pneg %p179
      %p357 = pneg %p176
      %p358 = pneg %p200
      %p359 = pneg %p197
      %p360 = pneg %p228
      %p361 = pneg %p225
      %s362 = smul.u32 2, %s23
      %p363 = scmp.lt.s32.totalorder %s22, 1
      %s364 = scalar_select %p363, %s22, 1
      %p365 = scmp.lt.s32.totalorder %s362, 1
      %s366 = scalar_select %p365, %s362, 1
      %s367 = smul.addr %s364, 2
      %s368 = sadd.s32 %s366, %s367
      %s369 = smul.addr %s368, 8
      %s370 = scalar_lea.vmem %s7, %s369
      %s371 = smul.u32 2, %s23
      %p372 = scmp.lt.s32.totalorder %s22, 1
      %s373 = scalar_select %p372, %s22, 1
      %p374 = scmp.lt.s32.totalorder %s371, 1
      %s375 = scalar_select %p374, %s371, 1
      %s376 = smul.addr %s373, 2
      %s377 = sadd.s32 %s375, %s376
      %s378 = smul.addr %s377, 8
      %s379 = scalar_lea.vmem %s0, %s378
      %s380 = smul.u32 2, %s23
      %p381 = scmp.lt.s32.totalorder %s22, 1
      %s382 = scalar_select %p381, %s22, 1
      %p383 = scmp.lt.s32.totalorder %s23, 0
      %s384 = scalar_select %p383, %s23, 0
      %s385 = sadd.s32 %s384, %s382
      %s386 = smul.addr %s385, 2
      %s387 = scalar_lea.vmem %s1, %s386
      %s388 = smul.u32 2, %s23
      %p389 = scmp.lt.s32.totalorder %s22, 1
      %s390 = scalar_select %p389, %s22, 1
      %p391 = scmp.lt.s32.totalorder %s388, 1
      %s392 = scalar_select %p391, %s388, 1
      %s393 = smul.addr %s390, 2
      %s394 = sadd.s32 %s392, %s393
      %s395 = smul.addr %s394, 2
      %s396 = scalar_lea.vmem %s2, %s395
      %s397 = smul.u32 2, %s23
      %s398 = smul.u32 2, %s23
      %p399 = scmp.lt.s32.totalorder %s22, 1
      %s400 = scalar_select %p399, %s22, 1
      %p401 = scmp.lt.s32.totalorder %s398, 1
      %s402 = scalar_select %p401, %s398, 1
      %s403 = smul.addr %s400, 2
      %s404 = sadd.s32 %s402, %s403
      %s405 = smul.addr %s404, 8
      %s406 = scalar_lea.vmem %s3, %s405
      %s407 = smul.u32 2, %s23
      %s408 = smul.u32 2, %s23
      %p409 = scmp.lt.s32.totalorder %s22, 1
      %s410 = scalar_select %p409, %s22, 1
      %p411 = scmp.lt.s32.totalorder %s408, 1
      %s412 = scalar_select %p411, %s408, 1
      %s413 = smul.addr %s410, 2
      %s414 = sadd.s32 %s412, %s413
      %s415 = smul.addr %s414, 8
      %s416 = scalar_lea.vmem %s7, %s415
      %s417 = smul.u32 2, %s23
      %v418 = vld [vmem:[%s379] sm:$0xff]
      %v419 = vld [vmem:[%s379 + $0x8] sm:$0xff]
      %v420 = vld [vmem:[%s387] sm:$0x3]
      %v421 = vld [vmem:[%s6] sm:$0x3]
      %v422 = vld [vmem:[%s4] sm:$0xff]
      %v423 = vld [vmem:[%s4 + $0x8] sm:$0xff]
      %v424 = vld [vmem:[%s4 + $0x10] sm:$0xff]
      %v425 = vld [vmem:[%s4 + $0x18] sm:$0xff]
      %s426 = scalar_lea.vmem %s4, 64
      %v427 = vld [vmem:[%s426] sm:$0xff]
      %v428 = vld [vmem:[%s426 + $0x8] sm:$0xff]
      %v429 = vld [vmem:[%s426 + $0x10] sm:$0xff]
      %v430 = vld [vmem:[%s426 + $0x18] sm:$0xff]
      %s431 = scalar_lea.vmem %s4, 32
      %v432 = vld [vmem:[%s431] sm:$0xff]
      %v433 = vld [vmem:[%s431 + $0x8] sm:$0xff]
      %v434 = vld [vmem:[%s431 + $0x10] sm:$0xff]
      %v435 = vld [vmem:[%s431 + $0x18] sm:$0xff]
      %vm436 = vcmask 261120
      %v438 = vsel %vm436, %v418, 0
      %v441 = vsel %vm436, %v419, 0
      %443 = vmatprep.subr.mxu0 0.0
      %444 = vmatpush1.msra.mxu0 %v432
      %445 = vmatprep.subr.mxu0 0.0
      %446 = vmatpush1.msra.mxu0 %v433
      %447 = vmatprep.subr.mxu0 0.0
      %448 = vmatpush1.msra.mxu0 %v434
      %449 = vmatprep.subr.mxu0 0.0
      %450 = vmatpush1.msra.mxu0 %v435
      %451 = vmatprep.subr.mxu0 0.0
      %452 = vmatpush1.msra.mxu0 0.0
      %453 = vmatprep.subr.mxu0 0.0
      %454 = vmatpush1.msra.mxu0 0.0
      %455 = vmatprep.subr.mxu0 0.0
      %456 = vmatpush1.msra.mxu0 0.0
      %457 = vmatprep.subr.mxu0 0.0
      %458 = vmatpush1.msra.mxu0 0.0
      %459 = vmatprep.subr.mxu0 0.0
      %460 = vmatpush1.msra.mxu0 0.0
      %461 = vmatprep.subr.mxu0 0.0
      %462 = vmatpush1.msra.mxu0 0.0
      %463 = vmatprep.subr.mxu0 0.0
      %464 = vmatpush1.msra.mxu0 0.0
      %465 = vmatprep.subr.mxu0 0.0
      %466 = vmatpush1.msra.mxu0 0.0
      %467 = vmatprep.subr.mxu0 0.0
      %468 = vmatpush1.msra.mxu0 0.0
      %469 = vmatprep.subr.mxu0 0.0
      %470 = vmatpush1.msra.mxu0 0.0
      %471 = vmatprep.subr.mxu0 0.0
      %472 = vmatpush1.msra.mxu0 0.0
      %473 = vmatprep.subr.mxu0 0.0
      %474 = vmatpush1.msra.mxu0 0.0
      %475 = vmatprep.subr.mxu0 0.0
      %476 = vmatpush1.msra.mxu0 0.0
      %477 = vmatprep.subr.mxu0 0.0
      %478 = vmatpush1.msra.mxu0 0.0
      %479 = vmatprep.subr.mxu0 0.0
      %480 = vmatpush1.msra.mxu0 0.0
      %481 = vmatprep.subr.mxu0 0.0
      %482 = vmatpush1.msra.mxu0 0.0
      %483 = vmatprep.subr.mxu0 0.0
      %484 = vmatpush1.msra.mxu0 0.0
      %485 = vmatprep.subr.mxu0 0.0
      %486 = vmatpush1.msra.mxu0 0.0
      %487 = vmatprep.subr.mxu0 0.0
      %488 = vmatpush1.msra.mxu0 0.0
      %489 = vmatprep.subr.mxu0 0.0
      %490 = vmatpush1.msra.mxu0 0.0
      %491 = vmatprep.subr.mxu0 0.0
      %492 = vmatpush1.msra.mxu0 0.0
      %493 = vmatprep.subr.mxu0 0.0
      %494 = vmatpush1.msra.mxu0 0.0
      %495 = vmatprep.subr.mxu0 0.0
      %496 = vmatpush1.msra.mxu0 0.0
      %497 = vmatprep.subr.mxu0 0.0
      %498 = vmatpush1.msra.mxu0 0.0
      %499 = vmatprep.subr.mxu0 0.0
      %500 = vmatpush1.msra.mxu0 0.0
      %501 = vmatprep.subr.mxu0 0.0
      %502 = vmatpush1.msra.mxu0 0.0
      %503 = vmatprep.subr.mxu0 0.0
      %504 = vmatpush1.msra.mxu0 0.0
      %505 = vmatprep.subr.mxu0 0.0
      %506 = vmatpush1.msra.mxu0 0.0
      %507 = vmatprep.mubr.f32.mxu0 0.0
      %508 = vmatmul.mubr.f32.gmra.mrb[0].mxu0 %v438
      %v509 = vpop.f32.mrb[0].mxu0
      %v510 = vadd.f32 0.0, %v509
      %v511 = vpop.f32.mrb[0].mxu0
      %512 = vmatprep.mubr.f32.mxu0 0.0
      %513 = vmatmul.mubr.f32.gmra.mrb[0].mxu0 %v441
      %v514 = vpop.f32.mrb[0].mxu0
      %v515 = vadd.f32 0.0, %v514
      %v516 = vpop.f32.mrb[0].mxu0
      %517 = vdwg.mxu0
      %s518 = scalar_lea.vmem %s4, 96
      %v519 = vld [vmem:[%s518] sm:$0xff]
      %v520 = vld [vmem:[%s518 + $0x8] sm:$0xff]
      %v521 = vld [vmem:[%s518 + $0x10] sm:$0xff]
      %v522 = vld [vmem:[%s518 + $0x18] sm:$0xff]
      %523 = vmatprep.subr.mxu0 0.0
      %524 = vmatpush1.msra.mxu0 %v519
      %525 = vmatprep.subr.mxu0 0.0
      %526 = vmatpush1.msra.mxu0 %v520
      %527 = vmatprep.subr.mxu0 0.0
      %528 = vmatpush1.msra.mxu0 %v521
      %529 = vmatprep.subr.mxu0 0.0
      %530 = vmatpush1.msra.mxu0 %v522
      %531 = vmatprep.subr.mxu0 0.0
      %532 = vmatpush1.msra.mxu0 0.0
      %533 = vmatprep.subr.mxu0 0.0
      %534 = vmatpush1.msra.mxu0 0.0
      %535 = vmatprep.subr.mxu0 0.0
      %536 = vmatpush1.msra.mxu0 0.0
      %537 = vmatprep.subr.mxu0 0.0
      %538 = vmatpush1.msra.mxu0 0.0
      %539 = vmatprep.subr.mxu0 0.0
      %540 = vmatpush1.msra.mxu0 0.0
      %541 = vmatprep.subr.mxu0 0.0
      %542 = vmatpush1.msra.mxu0 0.0
      %543 = vmatprep.subr.mxu0 0.0
      %544 = vmatpush1.msra.mxu0 0.0
      %545 = vmatprep.subr.mxu0 0.0
      %546 = vmatpush1.msra.mxu0 0.0
      %547 = vmatprep.subr.mxu0 0.0
      %548 = vmatpush1.msra.mxu0 0.0
      %549 = vmatprep.subr.mxu0 0.0
      %550 = vmatpush1.msra.mxu0 0.0
      %551 = vmatprep.subr.mxu0 0.0
      %552 = vmatpush1.msra.mxu0 0.0
      %553 = vmatprep.subr.mxu0 0.0
      %554 = vmatpush1.msra.mxu0 0.0
      %555 = vmatprep.subr.mxu0 0.0
      %556 = vmatpush1.msra.mxu0 0.0
      %557 = vmatprep.subr.mxu0 0.0
      %558 = vmatpush1.msra.mxu0 0.0
      %559 = vmatprep.subr.mxu0 0.0
      %560 = vmatpush1.msra.mxu0 0.0
      %561 = vmatprep.subr.mxu0 0.0
      %562 = vmatpush1.msra.mxu0 0.0
      %563 = vmatprep.subr.mxu0 0.0
      %564 = vmatpush1.msra.mxu0 0.0
      %565 = vmatprep.subr.mxu0 0.0
      %566 = vmatpush1.msra.mxu0 0.0
      %567 = vmatprep.subr.mxu0 0.0
      %568 = vmatpush1.msra.mxu0 0.0
      %569 = vmatprep.subr.mxu0 0.0
      %570 = vmatpush1.msra.mxu0 0.0
      %571 = vmatprep.subr.mxu0 0.0
      %572 = vmatpush1.msra.mxu0 0.0
      %573 = vmatprep.subr.mxu0 0.0
      %574 = vmatpush1.msra.mxu0 0.0
      %575 = vmatprep.subr.mxu0 0.0
      %576 = vmatpush1.msra.mxu0 0.0
      %577 = vmatprep.subr.mxu0 0.0
      %578 = vmatpush1.msra.mxu0 0.0
      %579 = vmatprep.subr.mxu0 0.0
      %580 = vmatpush1.msra.mxu0 0.0
      %581 = vmatprep.subr.mxu0 0.0
      %582 = vmatpush1.msra.mxu0 0.0
      %583 = vmatprep.subr.mxu0 0.0
      %584 = vmatpush1.msra.mxu0 0.0
      %585 = vmatprep.subr.mxu0 0.0
      %586 = vmatpush1.msra.mxu0 0.0
      %587 = vmatprep.mubr.f32.mxu0 0.0
      %588 = vmatmul.mubr.f32.gmra.mrb[0].mxu0 %v438
      %v589 = vpop.f32.mrb[0].mxu0
      %v590 = vadd.f32 0.0, %v589
      %v591 = vpop.f32.mrb[0].mxu0
      %592 = vmatprep.mubr.f32.mxu0 0.0
      %593 = vmatmul.mubr.f32.gmra.mrb[0].mxu0 %v441
      %v594 = vpop.f32.mrb[0].mxu0
      %v595 = vadd.f32 0.0, %v594
      %v596 = vpop.f32.mrb[0].mxu0
      %597 = vdwg.mxu0
      %v599 = vsel %vm436, %v420, 0
      %601 = vmatprep.subr.mxu0 0.0
      %602 = vmatpush1.msra.mxu0 %v432
      %603 = vmatprep.subr.mxu0 0.0
      %604 = vmatpush1.msra.mxu0 %v433
      %605 = vmatprep.subr.mxu0 0.0
      %606 = vmatpush1.msra.mxu0 %v434
      %607 = vmatprep.subr.mxu0 0.0
      %608 = vmatpush1.msra.mxu0 %v435
      %609 = vmatprep.subr.mxu0 0.0
      %610 = vmatpush1.msra.mxu0 0.0
      %611 = vmatprep.subr.mxu0 0.0
      %612 = vmatpush1.msra.mxu0 0.0
      %613 = vmatprep.subr.mxu0 0.0
      %614 = vmatpush1.msra.mxu0 0.0
      %615 = vmatprep.subr.mxu0 0.0
      %616 = vmatpush1.msra.mxu0 0.0
      %617 = vmatprep.subr.mxu0 0.0
      %618 = vmatpush1.msra.mxu0 0.0
      %619 = vmatprep.subr.mxu0 0.0
      %620 = vmatpush1.msra.mxu0 0.0
      %621 = vmatprep.subr.mxu0 0.0
      %622 = vmatpush1.msra.mxu0 0.0
      %623 = vmatprep.subr.mxu0 0.0
      %624 = vmatpush1.msra.mxu0 0.0
      %625 = vmatprep.subr.mxu0 0.0
      %626 = vmatpush1.msra.mxu0 0.0
      %627 = vmatprep.subr.mxu0 0.0
      %628 = vmatpush1.msra.mxu0 0.0
      %629 = vmatprep.subr.mxu0 0.0
      %630 = vmatpush1.msra.mxu0 0.0
      %631 = vmatprep.subr.mxu0 0.0
      %632 = vmatpush1.msra.mxu0 0.0
      %633 = vmatprep.subr.mxu0 0.0
      %634 = vmatpush1.msra.mxu0 0.0
      %635 = vmatprep.subr.mxu0 0.0
      %636 = vmatpush1.msra.mxu0 0.0
      %637 = vmatprep.subr.mxu0 0.0
      %638 = vmatpush1.msra.mxu0 0.0
      %639 = vmatprep.subr.mxu0 0.0
      %640 = vmatpush1.msra.mxu0 0.0
      %641 = vmatprep.subr.mxu0 0.0
      %642 = vmatpush1.msra.mxu0 0.0
      %643 = vmatprep.subr.mxu0 0.0
      %644 = vmatpush1.msra.mxu0 0.0
      %645 = vmatprep.subr.mxu0 0.0
      %646 = vmatpush1.msra.mxu0 0.0
      %647 = vmatprep.subr.mxu0 0.0
      %648 = vmatpush1.msra.mxu0 0.0
      %649 = vmatprep.subr.mxu0 0.0
      %650 = vmatpush1.msra.mxu0 0.0
      %651 = vmatprep.subr.mxu0 0.0
      %652 = vmatpush1.msra.mxu0 0.0
      %653 = vmatprep.subr.mxu0 0.0
      %654 = vmatpush1.msra.mxu0 0.0
      %655 = vmatprep.subr.mxu0 0.0
      %656 = vmatpush1.msra.mxu0 0.0
      %657 = vmatprep.subr.mxu0 0.0
      %658 = vmatpush1.msra.mxu0 0.0
      %659 = vmatprep.subr.mxu0 0.0
      %660 = vmatpush1.msra.mxu0 0.0
      %661 = vmatprep.subr.mxu0 0.0
      %662 = vmatpush1.msra.mxu0 0.0
      %663 = vmatprep.subr.mxu0 0.0
      %664 = vmatpush1.msra.mxu0 0.0
      %665 = vmatprep.mubr.f32.mxu0 0.0
      %666 = vmatmul.mubr.f32.gmra.mrb[0].mxu0 %v599
      %v667 = vpop.f32.mrb[0].mxu0
      %v668 = vadd.f32 0.0, %v667
      %v669 = vpop.f32.mrb[0].mxu0
      %670 = vdwg.mxu0
      %v671 = vrot.slane %v420, 1
      %v672 = vsel %vm436, %v671, 0
      %674 = vmatprep.subr.mxu0 0.0
      %675 = vmatpush1.msra.mxu0 %v519
      %676 = vmatprep.subr.mxu0 0.0
      %677 = vmatpush1.msra.mxu0 %v520
      %678 = vmatprep.subr.mxu0 0.0
      %679 = vmatpush1.msra.mxu0 %v521
      %680 = vmatprep.subr.mxu0 0.0
      %681 = vmatpush1.msra.mxu0 %v522
      %682 = vmatprep.subr.mxu0 0.0
      %683 = vmatpush1.msra.mxu0 0.0
      %684 = vmatprep.subr.mxu0 0.0
      %685 = vmatpush1.msra.mxu0 0.0
      %686 = vmatprep.subr.mxu0 0.0
      %687 = vmatpush1.msra.mxu0 0.0
      %688 = vmatprep.subr.mxu0 0.0
      %689 = vmatpush1.msra.mxu0 0.0
      %690 = vmatprep.subr.mxu0 0.0
      %691 = vmatpush1.msra.mxu0 0.0
      %692 = vmatprep.subr.mxu0 0.0
      %693 = vmatpush1.msra.mxu0 0.0
      %694 = vmatprep.subr.mxu0 0.0
      %695 = vmatpush1.msra.mxu0 0.0
      %696 = vmatprep.subr.mxu0 0.0
      %697 = vmatpush1.msra.mxu0 0.0
      %698 = vmatprep.subr.mxu0 0.0
      %699 = vmatpush1.msra.mxu0 0.0
      %700 = vmatprep.subr.mxu0 0.0
      %701 = vmatpush1.msra.mxu0 0.0
      %702 = vmatprep.subr.mxu0 0.0
      %703 = vmatpush1.msra.mxu0 0.0
      %704 = vmatprep.subr.mxu0 0.0
      %705 = vmatpush1.msra.mxu0 0.0
      %706 = vmatprep.subr.mxu0 0.0
      %707 = vmatpush1.msra.mxu0 0.0
      %708 = vmatprep.subr.mxu0 0.0
      %709 = vmatpush1.msra.mxu0 0.0
      %710 = vmatprep.subr.mxu0 0.0
      %711 = vmatpush1.msra.mxu0 0.0
      %712 = vmatprep.subr.mxu0 0.0
      %713 = vmatpush1.msra.mxu0 0.0
      %714 = vmatprep.subr.mxu0 0.0
      %715 = vmatpush1.msra.mxu0 0.0
      %716 = vmatprep.subr.mxu0 0.0
      %717 = vmatpush1.msra.mxu0 0.0
      %718 = vmatprep.subr.mxu0 0.0
      %719 = vmatpush1.msra.mxu0 0.0
      %720 = vmatprep.subr.mxu0 0.0
      %721 = vmatpush1.msra.mxu0 0.0
      %722 = vmatprep.subr.mxu0 0.0
      %723 = vmatpush1.msra.mxu0 0.0
      %724 = vmatprep.subr.mxu0 0.0
      %725 = vmatpush1.msra.mxu0 0.0
      %726 = vmatprep.subr.mxu0 0.0
      %727 = vmatpush1.msra.mxu0 0.0
      %728 = vmatprep.subr.mxu0 0.0
      %729 = vmatpush1.msra.mxu0 0.0
      %730 = vmatprep.subr.mxu0 0.0
      %731 = vmatpush1.msra.mxu0 0.0
      %732 = vmatprep.subr.mxu0 0.0
      %733 = vmatpush1.msra.mxu0 0.0
      %734 = vmatprep.subr.mxu0 0.0
      %735 = vmatpush1.msra.mxu0 0.0
      %736 = vmatprep.subr.mxu0 0.0
      %737 = vmatpush1.msra.mxu0 0.0
      %738 = vmatprep.mubr.f32.mxu0 0.0
      %739 = vmatmul.mubr.f32.gmra.mrb[0].mxu0 %v672
      %v740 = vpop.f32.mrb[0].mxu0
      %v741 = vadd.f32 0.0, %v740
      %v742 = vpop.f32.mrb[0].mxu0
      %743 = vdwg.mxu0
      %v744 = vlaneseq
      %v745 = vshrl.u32 %v744, 7
      %v746 = vadd.s32 %v745, 8
      %vm747 = vcmp.eq.s32.totalorder %v745, 0
      %vm748 = vcmp.eq.s32.totalorder %v746, 0
      %v749 = vlaneseq
      %v750 = vshrl.u32 %v749, 7
      %v751 = vsub.s32 0, %v750
      %v752 = vrot.slane %v668, %v751
      %v753 = vrot.slane %v510, 7
      %v754 = vrot.slane %v515, 7
      %vm755 = vcmp.lt.s32.totalorder %v745, 1
      %v756 = vsel %vm755, %v753, %v754
      %v757 = vsel %vm755, %v754, %v753
      %v758 = vsel %vm747, 1, 0
      %v759 = vsel %vm748, 1, 0
      %vm760 = vcmp.eq.s32.totalorder %v758, 1
      %vm761 = vcmp.eq.s32.totalorder %v759, 1
      %v762 = vsel %vm760, %v752, %v757
      %v763 = vsel %vm761, %v752, %v756
      %vm764 = vcmp.eq.s32.totalorder %v745, 15
      %vm765 = vcmp.eq.s32.totalorder %v746, 15
      %v766 = vlaneseq
      %v767 = vshrl.u32 %v766, 7
      %v768 = vsub.s32 0, %v767
      %v769 = vrot.slane %v741, %v768
      %v770 = vrot.slane %v590, 1
      %v771 = vrot.slane %v595, 1
      %vm772 = vcmp.lt.s32.totalorder %v745, 7
      %v773 = vsel %vm772, %v770, %v771
      %v774 = vsel %vm772, %v771, %v770
      %v775 = vsel %vm764, 1, 0
      %v776 = vsel %vm765, 1, 0
      %vm777 = vcmp.eq.s32.totalorder %v775, 1
      %vm778 = vcmp.eq.s32.totalorder %v776, 1
      %v779 = vsel %vm777, %v769, %v773
      %v780 = vsel %vm778, %v769, %v774
      %781 = vmatprep.subr.mxu0 0.0
      %782 = vmatpush1.msra.mxu0 %v422
      %783 = vmatprep.subr.mxu0 0.0
      %784 = vmatpush1.msra.mxu0 %v423
      %785 = vmatprep.subr.mxu0 0.0
      %786 = vmatpush1.msra.mxu0 %v424
      %787 = vmatprep.subr.mxu0 0.0
      %788 = vmatpush1.msra.mxu0 %v425
      %789 = vmatprep.subr.mxu0 0.0
      %790 = vmatpush1.msra.mxu0 0.0
      %791 = vmatprep.subr.mxu0 0.0
      %792 = vmatpush1.msra.mxu0 0.0
      %793 = vmatprep.subr.mxu0 0.0
      %794 = vmatpush1.msra.mxu0 0.0
      %795 = vmatprep.subr.mxu0 0.0
      %796 = vmatpush1.msra.mxu0 0.0
      %797 = vmatprep.subr.mxu0 0.0
      %798 = vmatpush1.msra.mxu0 0.0
      %799 = vmatprep.subr.mxu0 0.0
      %800 = vmatpush1.msra.mxu0 0.0
      %801 = vmatprep.subr.mxu0 0.0
      %802 = vmatpush1.msra.mxu0 0.0
      %803 = vmatprep.subr.mxu0 0.0
      %804 = vmatpush1.msra.mxu0 0.0
      %805 = vmatprep.subr.mxu0 0.0
      %806 = vmatpush1.msra.mxu0 0.0
      %807 = vmatprep.subr.mxu0 0.0
      %808 = vmatpush1.msra.mxu0 0.0
      %809 = vmatprep.subr.mxu0 0.0
      %810 = vmatpush1.msra.mxu0 0.0
      %811 = vmatprep.subr.mxu0 0.0
      %812 = vmatpush1.msra.mxu0 0.0
      %813 = vmatprep.subr.mxu0 0.0
      %814 = vmatpush1.msra.mxu0 0.0
      %815 = vmatprep.subr.mxu0 0.0
      %816 = vmatpush1.msra.mxu0 0.0
      %817 = vmatprep.subr.mxu0 0.0
      %818 = vmatpush1.msra.mxu0 0.0
      %819 = vmatprep.subr.mxu0 0.0
      %820 = vmatpush1.msra.mxu0 0.0
      %821 = vmatprep.subr.mxu0 0.0
      %822 = vmatpush1.msra.mxu0 0.0
      %823 = vmatprep.subr.mxu0 0.0
      %824 = vmatpush1.msra.mxu0 0.0
      %825 = vmatprep.subr.mxu0 0.0
      %826 = vmatpush1.msra.mxu0 0.0
      %827 = vmatprep.subr.mxu0 0.0
      %828 = vmatpush1.msra.mxu0 0.0
      %829 = vmatprep.subr.mxu0 0.0
      %830 = vmatpush1.msra.mxu0 0.0
      %831 = vmatprep.subr.mxu0 0.0
      %832 = vmatpush1.msra.mxu0 0.0
      %833 = vmatprep.subr.mxu0 0.0
      %834 = vmatpush1.msra.mxu0 0.0
      %835 = vmatprep.subr.mxu0 0.0
      %836 = vmatpush1.msra.mxu0 0.0
      %837 = vmatprep.subr.mxu0 0.0
      %838 = vmatpush1.msra.mxu0 0.0
      %839 = vmatprep.subr.mxu0 0.0
      %840 = vmatpush1.msra.mxu0 0.0
      %841 = vmatprep.subr.mxu0 0.0
      %842 = vmatpush1.msra.mxu0 0.0
      %843 = vmatprep.subr.mxu0 0.0
      %844 = vmatpush1.msra.mxu0 0.0
      %845 = vmatprep.mubr.f32.mxu0 0.0
      %846 = vmatmul.mubr.f32.gmra.mrb[0].mxu0 %v438
      %v847 = vpop.f32.mrb[0].mxu0
      %v848 = vadd.f32 %v762, %v847
      %v849 = vpop.f32.mrb[0].mxu0
      %850 = vmatprep.mubr.f32.mxu0 0.0
      %851 = vmatmul.mubr.f32.gmra.mrb[0].mxu0 %v441
      %v852 = vpop.f32.mrb[0].mxu0
      %v853 = vadd.f32 %v763, %v852
      %v854 = vpop.f32.mrb[0].mxu0
      %855 = vdwg.mxu0
      %v856 = vlaneseq
      %v857 = vshrl.u32 %v856, 7
      %v858 = vsub.s32 0, %v857
      %v859 = vrot.slane %v421, %v858
      %v860 = vadd.f32 %v848, %v859
      %v861 = vadd.f32 %v853, %v859
      %862 = vmatprep.subr.mxu0 0.0
      %863 = vmatpush1.msra.mxu0 %v427
      %864 = vmatprep.subr.mxu0 0.0
      %865 = vmatpush1.msra.mxu0 %v428
      %866 = vmatprep.subr.mxu0 0.0
      %867 = vmatpush1.msra.mxu0 %v429
      %868 = vmatprep.subr.mxu0 0.0
      %869 = vmatpush1.msra.mxu0 %v430
      %870 = vmatprep.subr.mxu0 0.0
      %871 = vmatpush1.msra.mxu0 0.0
      %872 = vmatprep.subr.mxu0 0.0
      %873 = vmatpush1.msra.mxu0 0.0
      %874 = vmatprep.subr.mxu0 0.0
      %875 = vmatpush1.msra.mxu0 0.0
      %876 = vmatprep.subr.mxu0 0.0
      %877 = vmatpush1.msra.mxu0 0.0
      %878 = vmatprep.subr.mxu0 0.0
      %879 = vmatpush1.msra.mxu0 0.0
      %880 = vmatprep.subr.mxu0 0.0
      %881 = vmatpush1.msra.mxu0 0.0
      %882 = vmatprep.subr.mxu0 0.0
      %883 = vmatpush1.msra.mxu0 0.0
      %884 = vmatprep.subr.mxu0 0.0
      %885 = vmatpush1.msra.mxu0 0.0
      %886 = vmatprep.subr.mxu0 0.0
      %887 = vmatpush1.msra.mxu0 0.0
      %888 = vmatprep.subr.mxu0 0.0
      %889 = vmatpush1.msra.mxu0 0.0
      %890 = vmatprep.subr.mxu0 0.0
      %891 = vmatpush1.msra.mxu0 0.0
      %892 = vmatprep.subr.mxu0 0.0
      %893 = vmatpush1.msra.mxu0 0.0
      %894 = vmatprep.subr.mxu0 0.0
      %895 = vmatpush1.msra.mxu0 0.0
      %896 = vmatprep.subr.mxu0 0.0
      %897 = vmatpush1.msra.mxu0 0.0
      %898 = vmatprep.subr.mxu0 0.0
      %899 = vmatpush1.msra.mxu0 0.0
      %900 = vmatprep.subr.mxu0 0.0
      %901 = vmatpush1.msra.mxu0 0.0
      %902 = vmatprep.subr.mxu0 0.0
      %903 = vmatpush1.msra.mxu0 0.0
      %904 = vmatprep.subr.mxu0 0.0
      %905 = vmatpush1.msra.mxu0 0.0
      %906 = vmatprep.subr.mxu0 0.0
      %907 = vmatpush1.msra.mxu0 0.0
      %908 = vmatprep.subr.mxu0 0.0
      %909 = vmatpush1.msra.mxu0 0.0
      %910 = vmatprep.subr.mxu0 0.0
      %911 = vmatpush1.msra.mxu0 0.0
      %912 = vmatprep.subr.mxu0 0.0
      %913 = vmatpush1.msra.mxu0 0.0
      %914 = vmatprep.subr.mxu0 0.0
      %915 = vmatpush1.msra.mxu0 0.0
      %916 = vmatprep.subr.mxu0 0.0
      %917 = vmatpush1.msra.mxu0 0.0
      %918 = vmatprep.subr.mxu0 0.0
      %919 = vmatpush1.msra.mxu0 0.0
      %920 = vmatprep.subr.mxu0 0.0
      %921 = vmatpush1.msra.mxu0 0.0
      %922 = vmatprep.subr.mxu0 0.0
      %923 = vmatpush1.msra.mxu0 0.0
      %924 = vmatprep.subr.mxu0 0.0
      %925 = vmatpush1.msra.mxu0 0.0
      %926 = vmatprep.mubr.f32.mxu0 0.0
      %927 = vmatmul.mubr.f32.gmra.mrb[0].mxu0 %v438
      %v928 = vpop.f32.mrb[0].mxu0
      %v929 = vadd.f32 %v779, %v928
      %v930 = vpop.f32.mrb[0].mxu0
      %931 = vmatprep.mubr.f32.mxu0 0.0
      %932 = vmatmul.mubr.f32.gmra.mrb[0].mxu0 %v441
      %v933 = vpop.f32.mrb[0].mxu0
      %v934 = vadd.f32 %v780, %v933
      %v935 = vpop.f32.mrb[0].mxu0
      %936 = vdwg.mxu0
      %v937 = vadd.f32 %v929, %v859
      %v938 = vadd.f32 %v934, %v859
      %v939 = vld [vmem:[%s396] sm:$0x3]
      %v940 = vld [vmem:[%s396 + $0x2] sm:$0x3]
      %v941 = vunpack.c.0.s8 %v939
      %v942 = vunpack.c.0.s8 %v940
      %v943 = vcvt.s32.f32 %v941
      %v944 = vcvt.s32.f32 %v942
      %vm945 = vcmp.lt.f32.partialorder %v943, 0.5
      %vm946 = vcmp.lt.f32.partialorder %v944, 0.5
      %v947 = vmax.f32 %v860, 0.0
      %v948 = vmax.f32 %v861, 0.0
      %v949 = vsel %vm945, 1, 0
      %v950 = vsel %vm946, 1, 0
      %951 = vset.pattern.permute.xlu0 0
      %952 = vperm.xlu0 %951, %v949
      %v953 = vpop.permute.xlu0 %952
      %954 = vset.pattern.permute.xlu0 0
      %955 = vperm.xlu0 %954, %v950
      %v956 = vpop.permute.xlu0 %955
      %vm957 = vcmp.eq.s32.totalorder %v953, 1
      %vm958 = vcmp.eq.s32.totalorder %v956, 1
      %v959 = vsel %vm957, %v947, 0.0
      %v960 = vsel %vm958, %v948, 0.0
      %v961 = vmax.f32 %v937, 0.0
      %v962 = vmax.f32 %v938, 0.0
      %963 = vset.pattern.permute.xlu0 1
      %964 = vperm.xlu0 %963, %v949
      %v965 = vpop.permute.xlu0 %964
      %966 = vset.pattern.permute.xlu0 1
      %967 = vperm.xlu0 %966, %v950
      %v968 = vpop.permute.xlu0 %967
      %vm969 = vcmp.eq.s32.totalorder %v965, 1
      %vm970 = vcmp.eq.s32.totalorder %v968, 1
      %v971 = vsel %vm969, %v961, 0.0
      %v972 = vsel %vm970, %v962, 0.0
      %v973 = vld [vmem:[%s406] sm:$0xff]
      %v974 = vld [vmem:[%s406 + $0x8] sm:$0xff]
      %v975 = vld [vmem:[%s5] sm:$0xff]
      %v976 = vld [vmem:[%s5 + $0x8] sm:$0xff]
      %v977 = vld [vmem:[%s5 + $0x10] sm:$0xff]
      %v978 = vld [vmem:[%s5 + $0x18] sm:$0xff]
      %s979 = scalar_lea.vmem %s5, 32
      %v980 = vld [vmem:[%s979] sm:$0xff]
      %v981 = vld [vmem:[%s979 + $0x8] sm:$0xff]
      %v982 = vld [vmem:[%s979 + $0x10] sm:$0xff]
      %v983 = vld [vmem:[%s979 + $0x18] sm:$0xff]
      %v985 = vsel %vm436, %v973, 0
      %v988 = vsel %vm436, %v974, 0
      %990 = vmatprep.subr.mxu0 0.0
      %991 = vmatpush1.msra.mxu0 %v980
      %992 = vmatprep.subr.mxu0 0.0
      %993 = vmatpush1.msra.mxu0 %v981
      %994 = vmatprep.subr.mxu0 0.0
      %995 = vmatpush1.msra.mxu0 %v982
      %996 = vmatprep.subr.mxu0 0.0
      %997 = vmatpush1.msra.mxu0 %v983
      %998 = vmatprep.subr.mxu0 0.0
      %999 = vmatpush1.msra.mxu0 0.0
      %1000 = vmatprep.subr.mxu0 0.0
      %1001 = vmatpush1.msra.mxu0 0.0
      %1002 = vmatprep.subr.mxu0 0.0
      %1003 = vmatpush1.msra.mxu0 0.0
      %1004 = vmatprep.subr.mxu0 0.0
      %1005 = vmatpush1.msra.mxu0 0.0
      %1006 = vmatprep.subr.mxu0 0.0
      %1007 = vmatpush1.msra.mxu0 0.0
      %1008 = vmatprep.subr.mxu0 0.0
      %1009 = vmatpush1.msra.mxu0 0.0
      %1010 = vmatprep.subr.mxu0 0.0
      %1011 = vmatpush1.msra.mxu0 0.0
      %1012 = vmatprep.subr.mxu0 0.0
      %1013 = vmatpush1.msra.mxu0 0.0
      %1014 = vmatprep.subr.mxu0 0.0
      %1015 = vmatpush1.msra.mxu0 0.0
      %1016 = vmatprep.subr.mxu0 0.0
      %1017 = vmatpush1.msra.mxu0 0.0
      %1018 = vmatprep.subr.mxu0 0.0
      %1019 = vmatpush1.msra.mxu0 0.0
      %1020 = vmatprep.subr.mxu0 0.0
      %1021 = vmatpush1.msra.mxu0 0.0
      %1022 = vmatprep.subr.mxu0 0.0
      %1023 = vmatpush1.msra.mxu0 0.0
      %1024 = vmatprep.subr.mxu0 0.0
      %1025 = vmatpush1.msra.mxu0 0.0
      %1026 = vmatprep.subr.mxu0 0.0
      %1027 = vmatpush1.msra.mxu0 0.0
      %1028 = vmatprep.subr.mxu0 0.0
      %1029 = vmatpush1.msra.mxu0 0.0
      %1030 = vmatprep.subr.mxu0 0.0
      %1031 = vmatpush1.msra.mxu0 0.0
      %1032 = vmatprep.subr.mxu0 0.0
      %1033 = vmatpush1.msra.mxu0 0.0
      %1034 = vmatprep.subr.mxu0 0.0
      %1035 = vmatpush1.msra.mxu0 0.0
      %1036 = vmatprep.subr.mxu0 0.0
      %1037 = vmatpush1.msra.mxu0 0.0
      %1038 = vmatprep.subr.mxu0 0.0
      %1039 = vmatpush1.msra.mxu0 0.0
      %1040 = vmatprep.subr.mxu0 0.0
      %1041 = vmatpush1.msra.mxu0 0.0
      %1042 = vmatprep.subr.mxu0 0.0
      %1043 = vmatpush1.msra.mxu0 0.0
      %1044 = vmatprep.subr.mxu0 0.0
      %1045 = vmatpush1.msra.mxu0 0.0
      %1046 = vmatprep.subr.mxu0 0.0
      %1047 = vmatpush1.msra.mxu0 0.0
      %1048 = vmatprep.subr.mxu0 0.0
      %1049 = vmatpush1.msra.mxu0 0.0
      %1050 = vmatprep.subr.mxu0 0.0
      %1051 = vmatpush1.msra.mxu0 0.0
      %1052 = vmatprep.subr.mxu0 0.0
      %1053 = vmatpush1.msra.mxu0 0.0
      %1054 = vmatprep.mubr.f32.mxu0 0.0
      %1055 = vmatmul.mubr.f32.gmra.mrb[0].mxu0 %v985
      %v1056 = vpop.f32.mrb[0].mxu0
      %v1057 = vadd.f32 0.0, %v1056
      %v1058 = vpop.f32.mrb[0].mxu0
      %1059 = vmatprep.mubr.f32.mxu0 0.0
      %1060 = vmatmul.mubr.f32.gmra.mrb[0].mxu0 %v988
      %v1061 = vpop.f32.mrb[0].mxu0
      %v1062 = vadd.f32 0.0, %v1061
      %v1063 = vpop.f32.mrb[0].mxu0
      %1064 = vdwg.mxu0
      %v1066 = vsel %vm436, %v959, 0
      %v1069 = vsel %vm436, %v960, 0
      %1071 = vmatprep.subr.mxu0 0.0
      %1072 = vmatpush1.msra.mxu0 %v975
      %1073 = vmatprep.subr.mxu0 0.0
      %1074 = vmatpush1.msra.mxu0 %v976
      %1075 = vmatprep.subr.mxu0 0.0
      %1076 = vmatpush1.msra.mxu0 %v977
      %1077 = vmatprep.subr.mxu0 0.0
      %1078 = vmatpush1.msra.mxu0 %v978
      %1079 = vmatprep.subr.mxu0 0.0
      %1080 = vmatpush1.msra.mxu0 0.0
      %1081 = vmatprep.subr.mxu0 0.0
      %1082 = vmatpush1.msra.mxu0 0.0
      %1083 = vmatprep.subr.mxu0 0.0
      %1084 = vmatpush1.msra.mxu0 0.0
      %1085 = vmatprep.subr.mxu0 0.0
      %1086 = vmatpush1.msra.mxu0 0.0
      %1087 = vmatprep.subr.mxu0 0.0
      %1088 = vmatpush1.msra.mxu0 0.0
      %1089 = vmatprep.subr.mxu0 0.0
      %1090 = vmatpush1.msra.mxu0 0.0
      %1091 = vmatprep.subr.mxu0 0.0
      %1092 = vmatpush1.msra.mxu0 0.0
      %1093 = vmatprep.subr.mxu0 0.0
      %1094 = vmatpush1.msra.mxu0 0.0
      %1095 = vmatprep.subr.mxu0 0.0
      %1096 = vmatpush1.msra.mxu0 0.0
      %1097 = vmatprep.subr.mxu0 0.0
      %1098 = vmatpush1.msra.mxu0 0.0
      %1099 = vmatprep.subr.mxu0 0.0
      %1100 = vmatpush1.msra.mxu0 0.0
      %1101 = vmatprep.subr.mxu0 0.0
      %1102 = vmatpush1.msra.mxu0 0.0
      %1103 = vmatprep.subr.mxu0 0.0
      %1104 = vmatpush1.msra.mxu0 0.0
      %1105 = vmatprep.subr.mxu0 0.0
      %1106 = vmatpush1.msra.mxu0 0.0
      %1107 = vmatprep.subr.mxu0 0.0
      %1108 = vmatpush1.msra.mxu0 0.0
      %1109 = vmatprep.subr.mxu0 0.0
      %1110 = vmatpush1.msra.mxu0 0.0
      %1111 = vmatprep.subr.mxu0 0.0
      %1112 = vmatpush1.msra.mxu0 0.0
      %1113 = vmatprep.subr.mxu0 0.0
      %1114 = vmatpush1.msra.mxu0 0.0
      %1115 = vmatprep.subr.mxu0 0.0
      %1116 = vmatpush1.msra.mxu0 0.0
      %1117 = vmatprep.subr.mxu0 0.0
      %1118 = vmatpush1.msra.mxu0 0.0
      %1119 = vmatprep.subr.mxu0 0.0
      %1120 = vmatpush1.msra.mxu0 0.0
      %1121 = vmatprep.subr.mxu0 0.0
      %1122 = vmatpush1.msra.mxu0 0.0
      %1123 = vmatprep.subr.mxu0 0.0
      %1124 = vmatpush1.msra.mxu0 0.0
      %1125 = vmatprep.subr.mxu0 0.0
      %1126 = vmatpush1.msra.mxu0 0.0
      %1127 = vmatprep.subr.mxu0 0.0
      %1128 = vmatpush1.msra.mxu0 0.0
      %1129 = vmatprep.subr.mxu0 0.0
      %1130 = vmatpush1.msra.mxu0 0.0
      %1131 = vmatprep.subr.mxu0 0.0
      %1132 = vmatpush1.msra.mxu0 0.0
      %1133 = vmatprep.subr.mxu0 0.0
      %1134 = vmatpush1.msra.mxu0 0.0
      %1135 = vmatprep.mubr.f32.mxu0 0.0
      %1136 = vmatmul.mubr.f32.gmra.mrb[0].mxu0 %v1066
      %v1137 = vpop.f32.mrb[0].mxu0
      %v1138 = vadd.f32 %v1057, %v1137
      %v1139 = vpop.f32.mrb[0].mxu0
      %1140 = vmatprep.mubr.f32.mxu0 0.0
      %1141 = vmatmul.mubr.f32.gmra.mrb[0].mxu0 %v1069
      %v1142 = vpop.f32.mrb[0].mxu0
      %v1143 = vadd.f32 %v1062, %v1142
      %v1144 = vpop.f32.mrb[0].mxu0
      %1145 = vdwg.mxu0
      %v1146 = vlaneseq
      %v1147 = vshrl.u32 %v1146, 7
      %v1148 = vsub.s32 1, %v1147
      %v1149 = vrot.slane %v421, %v1148
      %v1150 = vadd.f32 %v1138, %v1149
      %v1151 = vadd.f32 %v1143, %v1149
      %1152 = vrot.lane.b32.xlu0 %v973, 96
      %v1153 = vpop.permute.xlu0 %1152
      %1154 = vrot.lane.b32.xlu0 %v974, 96
      %v1155 = vpop.permute.xlu0 %1154
      %v1156 = vsel %vm436, %v1153, 0
      %v1158 = vsel %vm436, %v1155, 0
      %1160 = vmatprep.subr.mxu0 0.0
      %1161 = vmatpush1.msra.mxu0 %v980
      %1162 = vmatprep.subr.mxu0 0.0
      %1163 = vmatpush1.msra.mxu0 %v981
      %1164 = vmatprep.subr.mxu0 0.0
      %1165 = vmatpush1.msra.mxu0 %v982
      %1166 = vmatprep.subr.mxu0 0.0
      %1167 = vmatpush1.msra.mxu0 %v983
      %1168 = vmatprep.subr.mxu0 0.0
      %1169 = vmatpush1.msra.mxu0 0.0
      %1170 = vmatprep.subr.mxu0 0.0
      %1171 = vmatpush1.msra.mxu0 0.0
      %1172 = vmatprep.subr.mxu0 0.0
      %1173 = vmatpush1.msra.mxu0 0.0
      %1174 = vmatprep.subr.mxu0 0.0
      %1175 = vmatpush1.msra.mxu0 0.0
      %1176 = vmatprep.subr.mxu0 0.0
      %1177 = vmatpush1.msra.mxu0 0.0
      %1178 = vmatprep.subr.mxu0 0.0
      %1179 = vmatpush1.msra.mxu0 0.0
      %1180 = vmatprep.subr.mxu0 0.0
      %1181 = vmatpush1.msra.mxu0 0.0
      %1182 = vmatprep.subr.mxu0 0.0
      %1183 = vmatpush1.msra.mxu0 0.0
      %1184 = vmatprep.subr.mxu0 0.0
      %1185 = vmatpush1.msra.mxu0 0.0
      %1186 = vmatprep.subr.mxu0 0.0
      %1187 = vmatpush1.msra.mxu0 0.0
      %1188 = vmatprep.subr.mxu0 0.0
      %1189 = vmatpush1.msra.mxu0 0.0
      %1190 = vmatprep.subr.mxu0 0.0
      %1191 = vmatpush1.msra.mxu0 0.0
      %1192 = vmatprep.subr.mxu0 0.0
      %1193 = vmatpush1.msra.mxu0 0.0
      %1194 = vmatprep.subr.mxu0 0.0
      %1195 = vmatpush1.msra.mxu0 0.0
      %1196 = vmatprep.subr.mxu0 0.0
      %1197 = vmatpush1.msra.mxu0 0.0
      %1198 = vmatprep.subr.mxu0 0.0
      %1199 = vmatpush1.msra.mxu0 0.0
      %1200 = vmatprep.subr.mxu0 0.0
      %1201 = vmatpush1.msra.mxu0 0.0
      %1202 = vmatprep.subr.mxu0 0.0
      %1203 = vmatpush1.msra.mxu0 0.0
      %1204 = vmatprep.subr.mxu0 0.0
      %1205 = vmatpush1.msra.mxu0 0.0
      %1206 = vmatprep.subr.mxu0 0.0
      %1207 = vmatpush1.msra.mxu0 0.0
      %1208 = vmatprep.subr.mxu0 0.0
      %1209 = vmatpush1.msra.mxu0 0.0
      %1210 = vmatprep.subr.mxu0 0.0
      %1211 = vmatpush1.msra.mxu0 0.0
      %1212 = vmatprep.subr.mxu0 0.0
      %1213 = vmatpush1.msra.mxu0 0.0
      %1214 = vmatprep.subr.mxu0 0.0
      %1215 = vmatpush1.msra.mxu0 0.0
      %1216 = vmatprep.subr.mxu0 0.0
      %1217 = vmatpush1.msra.mxu0 0.0
      %1218 = vmatprep.subr.mxu0 0.0
      %1219 = vmatpush1.msra.mxu0 0.0
      %1220 = vmatprep.subr.mxu0 0.0
      %1221 = vmatpush1.msra.mxu0 0.0
      %1222 = vmatprep.subr.mxu0 0.0
      %1223 = vmatpush1.msra.mxu0 0.0
      %1224 = vmatprep.mubr.f32.mxu0 0.0
      %1225 = vmatmul.mubr.f32.gmra.mrb[0].mxu0 %v1156
      %v1226 = vpop.f32.mrb[0].mxu0
      %v1227 = vadd.f32 0.0, %v1226
      %v1228 = vpop.f32.mrb[0].mxu0
      %1229 = vmatprep.mubr.f32.mxu0 0.0
      %1230 = vmatmul.mubr.f32.gmra.mrb[0].mxu0 %v1158
      %v1231 = vpop.f32.mrb[0].mxu0
      %v1232 = vadd.f32 0.0, %v1231
      %v1233 = vpop.f32.mrb[0].mxu0
      %1234 = vdwg.mxu0
      %v1236 = vsel %vm436, %v971, 0
      %v1239 = vsel %vm436, %v972, 0
      %1241 = vmatprep.subr.mxu0 0.0
      %1242 = vmatpush1.msra.mxu0 %v975
      %1243 = vmatprep.subr.mxu0 0.0
      %1244 = vmatpush1.msra.mxu0 %v976
      %1245 = vmatprep.subr.mxu0 0.0
      %1246 = vmatpush1.msra.mxu0 %v977
      %1247 = vmatprep.subr.mxu0 0.0
      %1248 = vmatpush1.msra.mxu0 %v978
      %1249 = vmatprep.subr.mxu0 0.0
      %1250 = vmatpush1.msra.mxu0 0.0
      %1251 = vmatprep.subr.mxu0 0.0
      %1252 = vmatpush1.msra.mxu0 0.0
      %1253 = vmatprep.subr.mxu0 0.0
      %1254 = vmatpush1.msra.mxu0 0.0
      %1255 = vmatprep.subr.mxu0 0.0
      %1256 = vmatpush1.msra.mxu0 0.0
      %1257 = vmatprep.subr.mxu0 0.0
      %1258 = vmatpush1.msra.mxu0 0.0
      %1259 = vmatprep.subr.mxu0 0.0
      %1260 = vmatpush1.msra.mxu0 0.0
      %1261 = vmatprep.subr.mxu0 0.0
      %1262 = vmatpush1.msra.mxu0 0.0
      %1263 = vmatprep.subr.mxu0 0.0
      %1264 = vmatpush1.msra.mxu0 0.0
      %1265 = vmatprep.subr.mxu0 0.0
      %1266 = vmatpush1.msra.mxu0 0.0
      %1267 = vmatprep.subr.mxu0 0.0
      %1268 = vmatpush1.msra.mxu0 0.0
      %1269 = vmatprep.subr.mxu0 0.0
      %1270 = vmatpush1.msra.mxu0 0.0
      %1271 = vmatprep.subr.mxu0 0.0
      %1272 = vmatpush1.msra.mxu0 0.0
      %1273 = vmatprep.subr.mxu0 0.0
      %1274 = vmatpush1.msra.mxu0 0.0
      %1275 = vmatprep.subr.mxu0 0.0
      %1276 = vmatpush1.msra.mxu0 0.0
      %1277 = vmatprep.subr.mxu0 0.0
      %1278 = vmatpush1.msra.mxu0 0.0
      %1279 = vmatprep.subr.mxu0 0.0
      %1280 = vmatpush1.msra.mxu0 0.0
      %1281 = vmatprep.subr.mxu0 0.0
      %1282 = vmatpush1.msra.mxu0 0.0
      %1283 = vmatprep.subr.mxu0 0.0
      %1284 = vmatpush1.msra.mxu0 0.0
      %1285 = vmatprep.subr.mxu0 0.0
      %1286 = vmatpush1.msra.mxu0 0.0
      %1287 = vmatprep.subr.mxu0 0.0
      %1288 = vmatpush1.msra.mxu0 0.0
      %1289 = vmatprep.subr.mxu0 0.0
      %1290 = vmatpush1.msra.mxu0 0.0
      %1291 = vmatprep.subr.mxu0 0.0
      %1292 = vmatpush1.msra.mxu0 0.0
      %1293 = vmatprep.subr.mxu0 0.0
      %1294 = vmatpush1.msra.mxu0 0.0
      %1295 = vmatprep.subr.mxu0 0.0
      %1296 = vmatpush1.msra.mxu0 0.0
      %1297 = vmatprep.subr.mxu0 0.0
      %1298 = vmatpush1.msra.mxu0 0.0
      %1299 = vmatprep.subr.mxu0 0.0
      %1300 = vmatpush1.msra.mxu0 0.0
      %1301 = vmatprep.subr.mxu0 0.0
      %1302 = vmatpush1.msra.mxu0 0.0
      %1303 = vmatprep.subr.mxu0 0.0
      %1304 = vmatpush1.msra.mxu0 0.0
      %1305 = vmatprep.mubr.f32.mxu0 0.0
      %1306 = vmatmul.mubr.f32.gmra.mrb[0].mxu0 %v1236
      %v1307 = vpop.f32.mrb[0].mxu0
      %v1308 = vadd.f32 %v1227, %v1307
      %v1309 = vpop.f32.mrb[0].mxu0
      %1310 = vmatprep.mubr.f32.mxu0 0.0
      %1311 = vmatmul.mubr.f32.gmra.mrb[0].mxu0 %v1239
      %v1312 = vpop.f32.mrb[0].mxu0
      %v1313 = vadd.f32 %v1232, %v1312
      %v1314 = vpop.f32.mrb[0].mxu0
      %1315 = vdwg.mxu0
      %v1316 = vadd.f32 %v1308, %v1149
      %v1317 = vadd.f32 %v1313, %v1149
      %1318 = vst.msk [vmem:[%s416] sm:$0xff] %vm436, %v1150
      %1319 = vst.msk [vmem:[%s416 + $0x8] sm:$0xff] %vm436, %v1151
      %1322 = vrot.lane.b32.xlu0 %v1316, 32
      %v1323 = vpop.permute.xlu0 %1322
      %1324 = vrot.lane.b32.xlu0 %v1317, 32
      %v1325 = vpop.permute.xlu0 %1324
      %vm1328 = vcmask 523520
      %1329 = vst.msk [vmem:[%s416] sm:$0xff] %vm1328, %v1323
      %1330 = vst.msk [vmem:[%s416 + $0x8] sm:$0xff] %vm1328, %v1325
      %s1331 = smul.u32 2, %s23
      %p1332 = scmp.lt.s32.totalorder %s22, 1
      %s1333 = scalar_select %p1332, %s22, 1
      %p1334 = scmp.lt.s32.totalorder %s1331, 1
      %s1335 = scalar_select %p1334, %s1331, 1
      %s1336 = smul.addr %s1333, 2
      %s1337 = sadd.s32 %s1335, %s1336
      %s1338 = smul.addr %s1337, 8
      %s1339 = scalar_lea.vmem %s7, %s1338
      // Predicated region
      $region49: #{upsample_forward.4} parent=47 // pred_check
        %p1340 = pneg %p225
      $region50: #{upsample_forward.4} parent=47 // pred_check_branch
        %1342 = sbr.rel (%p1340) target = $region52
      $region51: #{upsample_forward.4} parent=47 // pred_region
        %s1343 = smul.u32 2, %s23
      $region52: #{upsample_forward.4} parent=47 // pred_fallthru
        _
    $region48: #{upsample_forward.4} parent=5 // pred_fallthru
      _
    %p1344 = scmp.le.s32.totalorder 2, %s13
    // Predicated region
    $region53: #{upsample_forward.4} parent=5 // pred_check
      %p1345 = pneg %p1344
    $region54: #{upsample_forward.4} parent=5 // pred_check_branch
      %1347 = sbr.rel (%p1345) target = $region56
    $region55: #{upsample_forward.4} parent=5 // pred_region
      %s1348 = ssub.s32 %s13, 2
      // Predicated region
      $region57: #{upsample_forward.4} parent=55 // pred_check
        %p1349 = pneg %p231
      $region58: #{upsample_forward.4} parent=55 // pred_check_branch
        %1351 = sbr.rel (%p1349) target = $region60
      $region59: #{upsample_forward.4} parent=55 // pred_region
        %s1352 = smul.u32 2, %s25
        %p1353 = scmp.lt.s32.totalorder %s24, 1
        %s1354 = scalar_select %p1353, %s24, 1
        %p1355 = scmp.lt.s32.totalorder %s1352, 1
        %s1356 = scalar_select %p1355, %s1352, 1
        %s1357 = smul.addr %s1354, 2
        %s1358 = sadd.s32 %s1356, %s1357
        %s1359 = smul.addr %s1358, 8
        %s1360 = scalar_lea.vmem %s7, %s1359
      $region60: #{upsample_forward.4} parent=55 // pred_fallthru
        _
    $region56: #{upsample_forward.4} parent=5 // pred_fallthru
      _
  $region6: #{upsample_forward.4} parent=0 // loop_footer
    %s17 = sadd.s32 1, %s13
  $region7: #{upsample_forward.4} parent=0 // loop_footer_branch
    %12 = sbr.rel target = $region3
  $region8: #{upsample_forward.4} parent=0 // loop_exit
    _

// kernel: upsample_forward.5
$region0: #{upsample_forward.5}
  #allocation0 [shape = 'u32[]', space=smem, size = 0x4, offset = 0x4, fixed_abs, tag = 'smem constant byte address 0x4 - core index']
  #allocation1 [shape = 'u32[144,128]{1,0:T(1,128)}', space=vmem, size = 0x12000, scoped, tag = 'internal scratch']
  %s0 = inlined_call_operand.vmem [shape: f32[2,32,32], index: 0, kind: input, shape index: {}]
  %s1 = inlined_call_operand.vmem [shape: f32[2,1,2,32], index: 1, kind: input, shape index: {}]
  %s2 = inlined_call_operand.vmem [shape: s8[2,32,2], index: 2, kind: input, shape index: {}]
  %s3 = inlined_call_operand.vmem [shape: f32[2,32,64], index: 3, kind: input, shape index: {}]
  %s4 = inlined_call_operand.vmem [shape: f32[4,32,32], index: 4, kind: input, shape index: {}]
  %s5 = inlined_call_operand.vmem [shape: f32[2,32,32], index: 5, kind: input, shape index: {}]
  %s6 = inlined_call_operand.vmem [shape: f32[2,32], index: 6, kind: input, shape index: {}]
  %s7 = inlined_call_operand.vmem [shape: f32[2,32,64], index: 7, kind: output, shape index: {}]
  %s8 = sld [smem:[#allocation0]]
  $region61: #{upsample_forward.5} parent=0
    _
  %s10 = ssub.s32 1, %s8
  %s11 = scalar_select 0, %s10, %s8
  loop: start=0, step=1, limit=4
  $region2: #{upsample_forward.5} parent=0 // loop_pre_header
    _
  $region3: #{upsample_forward.5} parent=0 // loop_header
    %s13 = sphi 0, %s17
    %p14 = scmp.ge.s32.totalorder %s13, 4
    %s20 = sphi 0, %s32
    %s21 = sphi 0, %s28
    %s22 = sphi 0, %s20
    %s23 = sphi 0, %s21
    %s24 = sphi 0, %s22
    %s25 = sphi 0, %s23
    %s37 = sphi 0, %s39
    %s40 = sphi 0, %s37
    %s41 = sphi 0, %s40
    %s57 = sphi 0, %s41
    %s65 = sphi 0, %s67
    %s68 = sphi 0, %s65
    %s69 = sphi 0, %s68
    %s85 = sphi 0, %s69
    %s93 = sphi 0, %s95
    %s96 = sphi 0, %s93
    %s97 = sphi 0, %s96
    %s113 = sphi 0, %s97
    %s121 = sphi 0, %s123
    %s124 = sphi 0, %s121
    %s125 = sphi 0, %s124
    %s141 = sphi 0, %s125
    %s145 = sphi 0, %s145
    %s147 = sphi 0, %s145
    %s148 = sphi 0, %s147
    %s162 = sphi 0, %s148
    %s166 = sphi 0, %s166
    %s168 = sphi 0, %s166
    %s169 = sphi 0, %s168
    %s183 = sphi 0, %s169
    %s187 = sphi 0, %s187
    %s189 = sphi 0, %s187
    %s190 = sphi 0, %s189
    %s204 = sphi 0, %s190
    %s212 = sphi 0, %s214
    %s215 = sphi 0, %s212
    %s216 = sphi 0, %s215
    %s232 = sphi 0, %s216
  $region4: #{upsample_forward.5} parent=0 // loop_header_branch
    %16 = sbr.rel (%p14) target = $region8
  $region5: #{upsample_forward.5} parent=0 // loop_body
    %s18 = ssub.s32 %s13, 1
    %s19 = ssub.s32 %s13, 2
    %s26 = sadd.s32 1, %s21
    %p27 = scmp.ge.s32.totalorder %s26, 1
    %s28 = scalar_select %p27, 0, %s26
    %s29 = sadd.s32 1, %s20
    %s30 = scalar_select %p27, %s29, %s20
    %p31 = scmp.ge.s32.totalorder %s30, 2
    %s32 = scalar_select %p31, 0, %s30
    %s33 = ssub.s32 %s20, %s32
    %s34 = ssub.s32 %s21, %s28
    %s35 = sor.u32 %s33, %s34
    %p36 = scmp.eq.s32.totalorder %s35, 0
    %s38 = sadd.s32 %s37, 1
    %s39 = scalar_select %p36, %s37, %s38
    %p42 = pneg %p36
    %p43 = scmp.eq.s32.totalorder %s13, 1
    %p44 = por %p42, %p43
    %p45 = scmp.ne.s32.totalorder %s37, %s40
    %p46 = scmp.eq.s32.totalorder %s13, 0
    %p47 = por %p45, %p46
    %p48 = scmp.ne.s32.totalorder %s37, %s40
    %p49 = scmp.eq.s32.totalorder %s18, 1
    %p50 = por %p48, %p49
    %p51 = scmp.ne.s32.totalorder %s40, %s41
    %p52 = scmp.eq.s32.totalorder %s18, 0
    %p53 = por %p51, %p52
    %p54 = scmp.ne.s32.totalorder %s40, %s41
    %p55 = scmp.eq.s32.totalorder %s19, 1
    %p56 = por %p54, %p55
    %p58 = scmp.ne.s32.totalorder %s41, %s57
    %p59 = scmp.eq.s32.totalorder %s19, 0
    %p60 = por %p58, %p59
    %s61 = ssub.s32 %s20, %s32
    %s62 = ssub.s32 %s21, %s28
    %s63 = sor.u32 %s61, %s62
    %p64 = scmp.eq.s32.totalorder %s63, 0
    %s66 = sadd.s32 %s65, 1
    %s67 = scalar_select %p64, %s65, %s66
    %p70 = pneg %p64
    %p71 = scmp.eq.s32.totalorder %s13, 1
    %p72 = por %p70, %p71
    %p73 = scmp.ne.s32.totalorder %s65, %s68
    %p74 = scmp.eq.s32.totalorder %s13, 0
    %p75 = por %p73, %p74
    %p76 = scmp.ne.s32.totalorder %s65, %s68
    %p77 = scmp.eq.s32.totalorder %s18, 1
    %p78 = por %p76, %p77
    %p79 = scmp.ne.s32.totalorder %s68, %s69
    %p80 = scmp.eq.s32.totalorder %s18, 0
    %p81 = por %p79, %p80
    %p82 = scmp.ne.s32.totalorder %s68, %s69
    %p83 = scmp.eq.s32.totalorder %s19, 1
    %p84 = por %p82, %p83
    %p86 = scmp.ne.s32.totalorder %s69, %s85
    %p87 = scmp.eq.s32.totalorder %s19, 0
    %p88 = por %p86, %p87
    %s89 = ssub.s32 %s20, %s32
    %s90 = ssub.s32 %s21, %s28
    %s91 = sor.u32 %s89, %s90
    %p92 = scmp.eq.s32.totalorder %s91, 0
    %s94 = sadd.s32 %s93, 1
    %s95 = scalar_select %p92, %s93, %s94
    %p98 = pneg %p92
    %p99 = scmp.eq.s32.totalorder %s13, 1
    %p100 = por %p98, %p99
    %p101 = scmp.ne.s32.totalorder %s93, %s96
    %p102 = scmp.eq.s32.totalorder %s13, 0
    %p103 = por %p101, %p102
    %p104 = scmp.ne.s32.totalorder %s93, %s96
    %p105 = scmp.eq.s32.totalorder %s18, 1
    %p106 = por %p104, %p105
    %p107 = scmp.ne.s32.totalorder %s96, %s97
    %p108 = scmp.eq.s32.totalorder %s18, 0
    %p109 = por %p107, %p108
    %p110 = scmp.ne.s32.totalorder %s96, %s97
    %p111 = scmp.eq.s32.totalorder %s19, 1
    %p112 = por %p110, %p111
    %p114 = scmp.ne.s32.totalorder %s97, %s113
    %p115 = scmp.eq.s32.totalorder %s19, 0
    %p116 = por %p114, %p115
    %s117 = ssub.s32 %s20, %s32
    %s118 = ssub.s32 %s21, %s28
    %s119 = sor.u32 %s117, %s118
    %p120 = scmp.eq.s32.totalorder %s119, 0
    %s122 = sadd.s32 %s121, 1
    %s123 = scalar_select %p120, %s121, %s122
    %p126 = pneg %p120
    %p127 = scmp.eq.s32.totalorder %s13, 1
    %p128 = por %p126, %p127
    %p129 = scmp.ne.s32.totalorder %s121, %s124
    %p130 = scmp.eq.s32.totalorder %s13, 0
    %p131 = por %p129, %p130
    %p132 = scmp.ne.s32.totalorder %s121, %s124
    %p133 = scmp.eq.s32.totalorder %s18, 1
    %p134 = por %p132, %p133
    %p135 = scmp.ne.s32.totalorder %s124, %s125
    %p136 = scmp.eq.s32.totalorder %s18, 0
    %p137 = por %p135, %p136
    %p138 = scmp.ne.s32.totalorder %s124, %s125
    %p139 = scmp.eq.s32.totalorder %s19, 1
    %p140 = por %p138, %p139
    %p142 = scmp.ne.s32.totalorder %s125, %s141
    %p143 = scmp.eq.s32.totalorder %s19, 0
    %p144 = por %p142, %p143
    %s146 = sadd.s32 %s145, 1
    %p149 = scmp.eq.s32.totalorder %s13, 1
    %p150 = scmp.ne.s32.totalorder %s145, %s147
    %p151 = scmp.eq.s32.totalorder %s13, 0
    %p152 = por %p150, %p151
    %p153 = scmp.ne.s32.totalorder %s145, %s147
    %p154 = scmp.eq.s32.totalorder %s18, 1
    %p155 = por %p153, %p154
    %p156 = scmp.ne.s32.totalorder %s147, %s148
    %p157 = scmp.eq.s32.totalorder %s18, 0
    %p158 = por %p156, %p157
    %p159 = scmp.ne.s32.totalorder %s147, %s148
    %p160 = scmp.eq.s32.totalorder %s19, 1
    %p161 = por %p159, %p160
    %p163 = scmp.ne.s32.totalorder %s148, %s162
    %p164 = scmp.eq.s32.totalorder %s19, 0
    %p165 = por %p163, %p164
    %s167 = sadd.s32 %s166, 1
    %p170 = scmp.eq.s32.totalorder %s13, 1
    %p171 = scmp.ne.s32.totalorder %s166, %s168
    %p172 = scmp.eq.s32.totalorder %s13, 0
    %p173 = por %p171, %p172
    %p174 = scmp.ne.s32.totalorder %s166, %s168
    %p175 = scmp.eq.s32.totalorder %s18, 1
    %p176 = por %p174, %p175
    %p177 = scmp.ne.s32.totalorder %s168, %s169
    %p178 = scmp.eq.s32.totalorder %s18, 0
    %p179 = por %p177, %p178
    %p180 = scmp.ne.s32.totalorder %s168, %s169
    %p181 = scmp.eq.s32.totalorder %s19, 1
    %p182 = por %p180, %p181
    %p184 = scmp.ne.s32.totalorder %s169, %s183
    %p185 = scmp.eq.s32.totalorder %s19, 0
    %p186 = por %p184, %p185
    %s188 = sadd.s32 %s187, 1
    %p191 = scmp.eq.s32.totalorder %s13, 1
    %p192 = scmp.ne.s32.totalorder %s187, %s189
    %p193 = scmp.eq.s32.totalorder %s13, 0
    %p194 = por %p192, %p193
    %p195 = scmp.ne.s32.totalorder %s187, %s189
    %p196 = scmp.eq.s32.totalorder %s18, 1
    %p197 = por %p195, %p196
    %p198 = scmp.ne.s32.totalorder %s189, %s190
    %p199 = scmp.eq.s32.totalorder %s18, 0
    %p200 = por %p198, %p199
    %p201 = scmp.ne.s32.totalorder %s189, %s190
    %p202 = scmp.eq.s32.totalorder %s19, 1
    %p203 = por %p201, %p202
    %p205 = scmp.ne.s32.totalorder %s190, %s204
    %p206 = scmp.eq.s32.totalorder %s19, 0
    %p207 = por %p205, %p206
    %s208 = ssub.s32 %s20, %s32
    %s209 = ssub.s32 %s21, %s28
    %s210 = sor.u32 %s208, %s209
    %p211 = scmp.eq.s32.totalorder %s210, 0
    %s213 = sadd.s32 %s212, 1
    %s214 = scalar_select %p211, %s212, %s213
    %p217 = pneg %p211
    %p218 = scmp.eq.s32.totalorder %s13, 1
    %p219 = por %p217, %p218
    %p220 = scmp.ne.s32.totalorder %s212, %s215
    %p221 = scmp.eq.s32.totalorder %s13, 0
    %p222 = por %p220, %p221
    %p223 = scmp.ne.s32.totalorder %s212, %s215
    %p224 = scmp.eq.s32.totalorder %s18, 1
    %p225 = por %p223, %p224
    %p226 = scmp.ne.s32.totalorder %s215, %s216
    %p227 = scmp.eq.s32.totalorder %s18, 0
    %p228 = por %p226, %p227
    %p229 = scmp.ne.s32.totalorder %s215, %s216
    %p230 = scmp.eq.s32.totalorder %s19, 1
    %p231 = por %p229, %p230
    %p233 = scmp.ne.s32.totalorder %s216, %s232
    %p234 = scmp.eq.s32.totalorder %s19, 0
    %p235 = por %p233, %p234
    %p236 = scmp.le.s32.totalorder 1, %s13
    %p237 = scmp.lt.s32.totalorder %s13, 3
    %p238 = pnand %p236, %p237
    %p239 = pneg %p238
    // Predicated region
    $region9: #{upsample_forward.5} parent=5 // pred_check
      _
    $region10: #{upsample_forward.5} parent=5 // pred_check_branch
      %241 = sbr.rel (%p238) target = $region12
    $region11: #{upsample_forward.5} parent=5 // pred_region
      %s242 = ssub.s32 %s13, 1
      // Predicated region
      $region13: #{upsample_forward.5} parent=11 // pred_check
        %p243 = pneg %p158
      $region14: #{upsample_forward.5} parent=11 // pred_check_branch
        %245 = sbr.rel (%p243) target = $region16
      $region15: #{upsample_forward.5} parent=11 // pred_region
        _
      $region16: #{upsample_forward.5} parent=11 // pred_fallthru
        _
      // Predicated region
      $region17: #{upsample_forward.5} parent=11 // pred_check
        %p246 = pneg %p179
      $region18: #{upsample_forward.5} parent=11 // pred_check_branch
        %248 = sbr.rel (%p246) target = $region20
      $region19: #{upsample_forward.5} parent=11 // pred_region
        _
      $region20: #{upsample_forward.5} parent=11 // pred_fallthru
        _
      // Predicated region
      $region21: #{upsample_forward.5} parent=11 // pred_check
        %p249 = pneg %p200
      $region22: #{upsample_forward.5} parent=11 // pred_check_branch
        %251 = sbr.rel (%p249) target = $region24
      $region23: #{upsample_forward.5} parent=11 // pred_region
        _
      $region24: #{upsample_forward.5} parent=11 // pred_fallthru
        _
    $region12: #{upsample_forward.5} parent=5 // pred_fallthru
      _
    %p252 = scmp.lt.s32.totalorder %s13, 2
    // Predicated region
    $region25: #{upsample_forward.5} parent=5 // pred_check
      %p253 = pneg %p252
    $region26: #{upsample_forward.5} parent=5 // pred_check_branch
      %255 = sbr.rel (%p253) target = $region28
    $region27: #{upsample_forward.5} parent=5 // pred_region
      // Predicated region
      $region29: #{upsample_forward.5} parent=27 // pred_check
        %p256 = pneg %p47
      $region30: #{upsample_forward.5} parent=27 // pred_check_branch
        %258 = sbr.rel (%p256) target = $region32
      $region31: #{upsample_forward.5} parent=27 // pred_region
        %s259 = smul.u32 4, %s21
        %p260 = scmp.lt.s32.totalorder %s20, 1
        %s261 = scalar_select %p260, %s20, 1
        %p262 = scmp.lt.s32.totalorder %s259, 3
        %s263 = scalar_select %p262, %s259, 3
        %s264 = smul.addr %s261, 4
        %s265 = sadd.s32 %s263, %s264
        %s266 = smul.addr %s265, 8
        %s267 = scalar_lea.vmem %s0, %s266
        %s268 = smul.u32 4, %s21
      $region32: #{upsample_forward.5} parent=27 // pred_fallthru
        _
      // Predicated region
      $region33: #{upsample_forward.5} parent=27 // pred_check
        %p269 = pneg %p75
      $region34: #{upsample_forward.5} parent=27 // pred_check_branch
        %271 = sbr.rel (%p269) target = $region36
      $region35: #{upsample_forward.5} parent=27 // pred_region
        %p272 = scmp.lt.s32.totalorder %s20, 1
        %s273 = scalar_select %p272, %s20, 1
        %p274 = scmp.lt.s32.totalorder %s21, 0
        %s275 = scalar_select %p274, %s21, 0
        %s276 = sadd.s32 %s275, %s273
        %s277 = smul.addr %s276, 2
        %s278 = scalar_lea.vmem %s1, %s277
      $region36: #{upsample_forward.5} parent=27 // pred_fallthru
        _
      // Predicated region
      $region37: #{upsample_forward.5} parent=27 // pred_check
        %p279 = pneg %p103
      $region38: #{upsample_forward.5} parent=27 // pred_check_branch
        %281 = sbr.rel (%p279) target = $region40
      $region39: #{upsample_forward.5} parent=27 // pred_region
        %p282 = scmp.lt.s32.totalorder %s20, 1
        %s283 = scalar_select %p282, %s20, 1
        %p284 = scmp.lt.s32.totalorder %s21, 0
        %s285 = scalar_select %p284, %s21, 0
        %s286 = sadd.s32 %s285, %s283
        %s287 = smul.addr %s286, 8
        %s288 = scalar_lea.vmem %s2, %s287
      $region40: #{upsample_forward.5} parent=27 // pred_fallthru
        _
      // Predicated region
      $region41: #{upsample_forward.5} parent=27 // pred_check
        %p289 = pneg %p131
      $region42: #{upsample_forward.5} parent=27 // pred_check_branch
        %291 = sbr.rel (%p289) target = $region44
      $region43: #{upsample_forward.5} parent=27 // pred_region
        %s292 = smul.u32 4, %s21
        %p293 = scmp.lt.s32.totalorder %s20, 1
        %s294 = scalar_select %p293, %s20, 1
        %p295 = scmp.lt.s32.totalorder %s292, 3
        %s296 = scalar_select %p295, %s292, 3
        %s297 = smul.addr %s294, 4
        %s298 = sadd.s32 %s296, %s297
        %s299 = smul.addr %s298, 8
        %s300 = scalar_lea.vmem %s3, %s299
        %s301 = smul.u32 4, %s21
      $region44: #{upsample_forward.5} parent=27 // pred_fallthru
        _
    $region28: #{upsample_forward.5} parent=5 // pred_fallthru
      _
    %p302 = scmp.le.s32.totalorder 1, %s13
    %p303 = scmp.lt.s32.totalorder %s13, 3
    %p304 = pnand %p302, %p303
    %p305 = pneg %p304
    // Predicated region
    $region45: #{upsample_forward.5} parent=5 // pred_check
      _
    $region46: #{upsample_forward.5} parent=5 // pred_check_branch
      %307 = sbr.rel (%p304) target = $region48
    $region47: #{upsample_forward.5} parent=5 // pred_region
      %s308 = ssub.s32 %s13, 1
      %s309 = smul.u32 4, %s23
      %p310 = scmp.lt.s32.totalorder %s22, 1
      %s311 = scalar_select %p310, %s22, 1
      %p312 = scmp.lt.s32.totalorder %s309, 3
      %s313 = scalar_select %p312, %s309, 3
      %s314 = smul.addr %s311, 4
      %s315 = sadd.s32 %s313, %s314
      %s316 = smul.addr %s315, 8
      %s317 = scalar_lea.vmem %s0, %s316
      %p318 = pneg %p53
      %p319 = pneg %p50
      %p320 = scmp.lt.s32.totalorder %s22, 1
      %s321 = scalar_select %p320, %s22, 1
      %p322 = scmp.lt.s32.totalorder %s23, 0
      %s323 = scalar_select %p322, %s23, 0
      %s324 = sadd.s32 %s323, %s321
      %s325 = smul.addr %s324, 2
      %s326 = scalar_lea.vmem %s1, %s325
      %p327 = pneg %p81
      %p328 = pneg %p78
      %p329 = scmp.lt.s32.totalorder %s22, 1
      %s330 = scalar_select %p329, %s22, 1
      %p331 = scmp.lt.s32.totalorder %s23, 0
      %s332 = scalar_select %p331, %s23, 0
      %s333 = sadd.s32 %s332, %s330
      %s334 = smul.addr %s333, 8
      %s335 = scalar_lea.vmem %s2, %s334
      %p336 = pneg %p109
      %p337 = pneg %p106
      %s338 = smul.u32 4, %s23
      %p339 = scmp.lt.s32.totalorder %s22, 1
      %s340 = scalar_select %p339, %s22, 1
      %p341 = scmp.lt.s32.totalorder %s338, 3
      %s342 = scalar_select %p341, %s338, 3
      %s343 = smul.addr %s340, 4
      %s344 = sadd.s32 %s342, %s343
      %s345 = smul.addr %s344, 8
      %s346 = scalar_lea.vmem %s3, %s345
      %p347 = pneg %p137
      %p348 = pneg %p134
      %p349 = pneg %p158
      %p350 = pneg %p155
      %p351 = pneg %p179
      %p352 = pneg %p176
      %p353 = pneg %p200
      %p354 = pneg %p197
      %p355 = pneg %p228
      %p356 = pneg %p225
      %s357 = smul.u32 4, %s23
      %p358 = scmp.lt.s32.totalorder %s22, 1
      %s359 = scalar_select %p358, %s22, 1
      %p360 = scmp.lt.s32.totalorder %s357, 3
      %s361 = scalar_select %p360, %s357, 3
      %s362 = smul.addr %s359, 4
      %s363 = sadd.s32 %s361, %s362
      %s364 = smul.addr %s363, 8
      %s365 = scalar_lea.vmem %s7, %s364
      %s366 = smul.u32 4, %s23
      %p367 = scmp.lt.s32.totalorder %s22, 1
      %s368 = scalar_select %p367, %s22, 1
      %p369 = scmp.lt.s32.totalorder %s366, 3
      %s370 = scalar_select %p369, %s366, 3
      %s371 = smul.addr %s368, 4
      %s372 = sadd.s32 %s370, %s371
      %s373 = smul.addr %s372, 8
      %s374 = scalar_lea.vmem %s0, %s373
      %s375 = smul.u32 4, %s23
      %p376 = scmp.lt.s32.totalorder %s22, 1
      %s377 = scalar_select %p376, %s22, 1
      %p378 = scmp.lt.s32.totalorder %s23, 0
      %s379 = scalar_select %p378, %s23, 0
      %s380 = sadd.s32 %s379, %s377
      %s381 = smul.addr %s380, 2
      %s382 = scalar_lea.vmem %s1, %s381
      %p383 = scmp.lt.s32.totalorder %s22, 1
      %s384 = scalar_select %p383, %s22, 1
      %p385 = scmp.lt.s32.totalorder %s23, 0
      %s386 = scalar_select %p385, %s23, 0
      %s387 = sadd.s32 %s386, %s384
      %s388 = smul.addr %s387, 8
      %s389 = scalar_lea.vmem %s2, %s388
      %s390 = smul.u32 4, %s23
      %p391 = scmp.lt.s32.totalorder %s22, 1
      %s392 = scalar_select %p391, %s22, 1
      %p393 = scmp.lt.s32.totalorder %s390, 3
      %s394 = scalar_select %p393, %s390, 3
      %s395 = smul.addr %s392, 4
      %s396 = sadd.s32 %s394, %s395
      %s397 = smul.addr %s396, 8
      %s398 = scalar_lea.vmem %s3, %s397
      %s399 = smul.u32 4, %s23
      %s400 = smul.u32 4, %s23
      %p401 = scmp.lt.s32.totalorder %s22, 1
      %s402 = scalar_select %p401, %s22, 1
      %p403 = scmp.lt.s32.totalorder %s400, 3
      %s404 = scalar_select %p403, %s400, 3
      %s405 = smul.addr %s402, 4
      %s406 = sadd.s32 %s404, %s405
      %s407 = smul.addr %s406, 8
      %s408 = scalar_lea.vmem %s7, %s407
      %s409 = smul.u32 4, %s23
      %v410 = vld [vmem:[%s374] sm:$0xff]
      %v411 = vld [vmem:[%s374 + $0x8] sm:$0xff]
      %v412 = vld [vmem:[%s374 + $0x10] sm:$0xff]
      %v413 = vld [vmem:[%s374 + $0x18] sm:$0xff]
      %v414 = vld [vmem:[%s382] sm:$0x3]
      %v415 = vld [vmem:[%s6] sm:$0x3]
      %v416 = vld [vmem:[%s4] sm:$0xff]
      %v417 = vld [vmem:[%s4 + $0x8] sm:$0xff]
      %v418 = vld [vmem:[%s4 + $0x10] sm:$0xff]
      %v419 = vld [vmem:[%s4 + $0x18] sm:$0xff]
      %s420 = scalar_lea.vmem %s4, 64
      %v421 = vld [vmem:[%s420] sm:$0xff]
      %v422 = vld [vmem:[%s420 + $0x8] sm:$0xff]
      %v423 = vld [vmem:[%s420 + $0x10] sm:$0xff]
      %v424 = vld [vmem:[%s420 + $0x18] sm:$0xff]
      %s425 = scalar_lea.vmem %s4, 32
      %v426 = vld [vmem:[%s425] sm:$0xff]
      %v427 = vld [vmem:[%s425 + $0x8] sm:$0xff]
      %v428 = vld [vmem:[%s425 + $0x10] sm:$0xff]
      %v429 = vld [vmem:[%s425 + $0x18] sm:$0xff]
      %vm430 = vcmask 261120
      %v432 = vsel %vm430, %v410, 0
      %v435 = vsel %vm430, %v411, 0
      %v438 = vsel %vm430, %v412, 0
      %v441 = vsel %vm430, %v413, 0
      %443 = vmatprep.subr.mxu0 0.0
      %444 = vmatpush1.msra.mxu0 %v426
      %445 = vmatprep.subr.mxu0 0.0
      %446 = vmatpush1.msra.mxu0 %v427
      %447 = vmatprep.subr.mxu0 0.0
      %448 = vmatpush1.msra.mxu0 %v428
      %449 = vmatprep.subr.mxu0 0.0
      %450 = vmatpush1.msra.mxu0 %v429
      %451 = vmatprep.subr.mxu0 0.0
      %452 = vmatpush1.msra.mxu0 0.0
      %453 = vmatprep.subr.mxu0 0.0
      %454 = vmatpush1.msra.mxu0 0.0
      %455 = vmatprep.subr.mxu0 0.0
      %456 = vmatpush1.msra.mxu0 0.0
      %457 = vmatprep.subr.mxu0 0.0
      %458 = vmatpush1.msra.mxu0 0.0
      %459 = vmatprep.subr.mxu0 0.0
      %460 = vmatpush1.msra.mxu0 0.0
      %461 = vmatprep.subr.mxu0 0.0
      %462 = vmatpush1.msra.mxu0 0.0
      %463 = vmatprep.subr.mxu0 0.0
      %464 = vmatpush1.msra.mxu0 0.0
      %465 = vmatprep.subr.mxu0 0.0
      %466 = vmatpush1.msra.mxu0 0.0
      %467 = vmatprep.subr.mxu0 0.0
      %468 = vmatpush1.msra.mxu0 0.0
      %469 = vmatprep.subr.mxu0 0.0
      %470 = vmatpush1.msra.mxu0 0.0
      %471 = vmatprep.subr.mxu0 0.0
      %472 = vmatpush1.msra.mxu0 0.0
      %473 = vmatprep.subr.mxu0 0.0
      %474 = vmatpush1.msra.mxu0 0.0
      %475 = vmatprep.subr.mxu0 0.0
      %476 = vmatpush1.msra.mxu0 0.0
      %477 = vmatprep.subr.mxu0 0.0
      %478 = vmatpush1.msra.mxu0 0.0
      %479 = vmatprep.subr.mxu0 0.0
      %480 = vmatpush1.msra.mxu0 0.0
      %481 = vmatprep.subr.mxu0 0.0
      %482 = vmatpush1.msra.mxu0 0.0
      %483 = vmatprep.subr.mxu0 0.0
      %484 = vmatpush1.msra.mxu0 0.0
      %485 = vmatprep.subr.mxu0 0.0
      %486 = vmatpush1.msra.mxu0 0.0
      %487 = vmatprep.subr.mxu0 0.0
      %488 = vmatpush1.msra.mxu0 0.0
      %489 = vmatprep.subr.mxu0 0.0
      %490 = vmatpush1.msra.mxu0 0.0
      %491 = vmatprep.subr.mxu0 0.0
      %492 = vmatpush1.msra.mxu0 0.0
      %493 = vmatprep.subr.mxu0 0.0
      %494 = vmatpush1.msra.mxu0 0.0
      %495 = vmatprep.subr.mxu0 0.0
      %496 = vmatpush1.msra.mxu0 0.0
      %497 = vmatprep.subr.mxu0 0.0
      %498 = vmatpush1.msra.mxu0 0.0
      %499 = vmatprep.subr.mxu0 0.0
      %500 = vmatpush1.msra.mxu0 0.0
      %501 = vmatprep.subr.mxu0 0.0
      %502 = vmatpush1.msra.mxu0 0.0
      %503 = vmatprep.subr.mxu0 0.0
      %504 = vmatpush1.msra.mxu0 0.0
      %505 = vmatprep.subr.mxu0 0.0
      %506 = vmatpush1.msra.mxu0 0.0
      %507 = vmatprep.mubr.f32.mxu0 0.0
      %508 = vmatmul.mubr.f32.gmra.mrb[0].mxu0 %v432
      %v509 = vpop.f32.mrb[0].mxu0
      %v510 = vadd.f32 0.0, %v509
      %v511 = vpop.f32.mrb[0].mxu0
      %512 = vmatprep.mubr.f32.mxu0 0.0
      %513 = vmatmul.mubr.f32.gmra.mrb[0].mxu0 %v435
      %v514 = vpop.f32.mrb[0].mxu0
      %v515 = vadd.f32 0.0, %v514
      %v516 = vpop.f32.mrb[0].mxu0
      %517 = vmatprep.mubr.f32.mxu0 0.0
      %518 = vmatmul.mubr.f32.gmra.mrb[0].mxu0 %v438
      %v519 = vpop.f32.mrb[0].mxu0
      %v520 = vadd.f32 0.0, %v519
      %v521 = vpop.f32.mrb[0].mxu0
      %522 = vmatprep.mubr.f32.mxu0 0.0
      %523 = vmatmul.mubr.f32.gmra.mrb[0].mxu0 %v441
      %v524 = vpop.f32.mrb[0].mxu0
      %v525 = vadd.f32 0.0, %v524
      %v526 = vpop.f32.mrb[0].mxu0
      %527 = vdwg.mxu0
      %s528 = scalar_lea.vmem %s4, 96
      %v529 = vld [vmem:[%s528] sm:$0xff]
      %v530 = vld [vmem:[%s528 + $0x8] sm:$0xff]
      %v531 = vld [vmem:[%s528 + $0x10] sm:$0xff]
      %v532 = vld [vmem:[%s528 + $0x18] sm:$0xff]
      %533 = vmatprep.subr.mxu0 0.0
      %534 = vmatpush1.msra.mxu0 %v529
      %535 = vmatprep.subr.mxu0 0.0
      %536 = vmatpush1.msra.mxu0 %v530
      %537 = vmatprep.subr.mxu0 0.0
      %538 = vmatpush1.msra.mxu0 %v531
      %539 = vmatprep.subr.mxu0 0.0
      %540 = vmatpush1.msra.mxu0 %v532
      %541 = vmatprep.subr.mxu0 0.0
      %542 = vmatpush1.msra.mxu0 0.0
      %543 = vmatprep.subr.mxu0 0.0
      %544 = vmatpush1.msra.mxu0 0.0
      %545 = vmatprep.subr.mxu0 0.0
      %546 = vmatpush1.msra.mxu0 0.0
      %547 = vmatprep.subr.mxu0 0.0
      %548 = vmatpush1.msra.mxu0 0.0
      %549 = vmatprep.subr.mxu0 0.0
      %550 = vmatpush1.msra.mxu0 0.0
      %551 = vmatprep.subr.mxu0 0.0
      %552 = vmatpush1.msra.mxu0 0.0
      %553 = vmatprep.subr.mxu0 0.0
      %554 = vmatpush1.msra.mxu0 0.0
      %555 = vmatprep.subr.mxu0 0.0
      %556 = vmatpush1.msra.mxu0 0.0
      %557 = vmatprep.subr.mxu0 0.0
      %558 = vmatpush1.msra.mxu0 0.0
      %559 = vmatprep.subr.mxu0 0.0
      %560 = vmatpush1.msra.mxu0 0.0
      %561 = vmatprep.subr.mxu0 0.0
      %562 = vmatpush1.msra.mxu0 0.0
      %563 = vmatprep.subr.mxu0 0.0
      %564 = vmatpush1.msra.mxu0 0.0
      %565 = vmatprep.subr.mxu0 0.0
      %566 = vmatpush1.msra.mxu0 0.0
      %567 = vmatprep.subr.mxu0 0.0
      %568 = vmatpush1.msra.mxu0 0.0
      %569 = vmatprep.subr.mxu0 0.0
      %570 = vmatpush1.msra.mxu0 0.0
      %571 = vmatprep.subr.mxu0 0.0
      %572 = vmatpush1.msra.mxu0 0.0
      %573 = vmatprep.subr.mxu0 0.0
      %574 = vmatpush1.msra.mxu0 0.0
      %575 = vmatprep.subr.mxu0 0.0
      %576 = vmatpush1.msra.mxu0 0.0
      %577 = vmatprep.subr.mxu0 0.0
      %578 = vmatpush1.msra.mxu0 0.0
      %579 = vmatprep.subr.mxu0 0.0
      %580 = vmatpush1.msra.mxu0 0.0
      %581 = vmatprep.subr.mxu0 0.0
      %582 = vmatpush1.msra.mxu0 0.0
      %583 = vmatprep.subr.mxu0 0.0
      %584 = vmatpush1.msra.mxu0 0.0
      %585 = vmatprep.subr.mxu0 0.0
      %586 = vmatpush1.msra.mxu0 0.0
      %587 = vmatprep.subr.mxu0 0.0
      %588 = vmatpush1.msra.mxu0 0.0
      %589 = vmatprep.subr.mxu0 0.0
      %590 = vmatpush1.msra.mxu0 0.0
      %591 = vmatprep.subr.mxu0 0.0
      %592 = vmatpush1.msra.mxu0 0.0
      %593 = vmatprep.subr.mxu0 0.0
      %594 = vmatpush1.msra.mxu0 0.0
      %595 = vmatprep.subr.mxu0 0.0
      %596 = vmatpush1.msra.mxu0 0.0
      %597 = vmatprep.mubr.f32.mxu0 0.0
      %598 = vmatmul.mubr.f32.gmra.mrb[0].mxu0 %v432
      %v599 = vpop.f32.mrb[0].mxu0
      %v600 = vadd.f32 0.0, %v599
      %v601 = vpop.f32.mrb[0].mxu0
      %602 = vmatprep.mubr.f32.mxu0 0.0
      %603 = vmatmul.mubr.f32.gmra.mrb[0].mxu0 %v435
      %v604 = vpop.f32.mrb[0].mxu0
      %v605 = vadd.f32 0.0, %v604
      %v606 = vpop.f32.mrb[0].mxu0
      %607 = vmatprep.mubr.f32.mxu0 0.0
      %608 = vmatmul.mubr.f32.gmra.mrb[0].mxu0 %v438
      %v609 = vpop.f32.mrb[0].mxu0
      %v610 = vadd.f32 0.0, %v609
      %v611 = vpop.f32.mrb[0].mxu0
      %612 = vmatprep.mubr.f32.mxu0 0.0
      %613 = vmatmul.mubr.f32.gmra.mrb[0].mxu0 %v441
      %v614 = vpop.f32.mrb[0].mxu0
      %v615 = vadd.f32 0.0, %v614
      %v616 = vpop.f32.mrb[0].mxu0
      %617 = vdwg.mxu0
      %v619 = vsel %vm430, %v414, 0
      %621 = vmatprep.subr.mxu0 0.0
      %622 = vmatpush1.msra.mxu0 %v426
      %623 = vmatprep.subr.mxu0 0.0
      %624 = vmatpush1.msra.mxu0 %v427
      %625 = vmatprep.subr.mxu0 0.0
      %626 = vmatpush1.msra.mxu0 %v428
      %627 = vmatprep.subr.mxu0 0.0
      %628 = vmatpush1.msra.mxu0 %v429
      %629 = vmatprep.subr.mxu0 0.0
      %630 = vmatpush1.msra.mxu0 0.0
      %631 = vmatprep.subr.mxu0 0.0
      %632 = vmatpush1.msra.mxu0 0.0
      %633 = vmatprep.subr.mxu0 0.0
      %634 = vmatpush1.msra.mxu0 0.0
      %635 = vmatprep.subr.mxu0 0.0
      %636 = vmatpush1.msra.mxu0 0.0
      %637 = vmatprep.subr.mxu0 0.0
      %638 = vmatpush1.msra.mxu0 0.0
      %639 = vmatprep.subr.mxu0 0.0
      %640 = vmatpush1.msra.mxu0 0.0
      %641 = vmatprep.subr.mxu0 0.0
      %642 = vmatpush1.msra.mxu0 0.0
      %643 = vmatprep.subr.mxu0 0.0
      %644 = vmatpush1.msra.mxu0 0.0
      %645 = vmatprep.subr.mxu0 0.0
      %646 = vmatpush1.msra.mxu0 0.0
      %647 = vmatprep.subr.mxu0 0.0
      %648 = vmatpush1.msra.mxu0 0.0
      %649 = vmatprep.subr.mxu0 0.0
      %650 = vmatpush1.msra.mxu0 0.0
      %651 = vmatprep.subr.mxu0 0.0
      %652 = vmatpush1.msra.mxu0 0.0
      %653 = vmatprep.subr.mxu0 0.0
      %654 = vmatpush1.msra.mxu0 0.0
      %655 = vmatprep.subr.mxu0 0.0
      %656 = vmatpush1.msra.mxu0 0.0
      %657 = vmatprep.subr.mxu0 0.0
      %658 = vmatpush1.msra.mxu0 0.0
      %659 = vmatprep.subr.mxu0 0.0
      %660 = vmatpush1.msra.mxu0 0.0
      %661 = vmatprep.subr.mxu0 0.0
      %662 = vmatpush1.msra.mxu0 0.0
      %663 = vmatprep.subr.mxu0 0.0
      %664 = vmatpush1.msra.mxu0 0.0
      %665 = vmatprep.subr.mxu0 0.0
      %666 = vmatpush1.msra.mxu0 0.0
      %667 = vmatprep.subr.mxu0 0.0
      %668 = vmatpush1.msra.mxu0 0.0
      %669 = vmatprep.subr.mxu0 0.0
      %670 = vmatpush1.msra.mxu0 0.0
      %671 = vmatprep.subr.mxu0 0.0
      %672 = vmatpush1.msra.mxu0 0.0
      %673 = vmatprep.subr.mxu0 0.0
      %674 = vmatpush1.msra.mxu0 0.0
      %675 = vmatprep.subr.mxu0 0.0
      %676 = vmatpush1.msra.mxu0 0.0
      %677 = vmatprep.subr.mxu0 0.0
      %678 = vmatpush1.msra.mxu0 0.0
      %679 = vmatprep.subr.mxu0 0.0
      %680 = vmatpush1.msra.mxu0 0.0
      %681 = vmatprep.subr.mxu0 0.0
      %682 = vmatpush1.msra.mxu0 0.0
      %683 = vmatprep.subr.mxu0 0.0
      %684 = vmatpush1.msra.mxu0 0.0
      %685 = vmatprep.mubr.f32.mxu0 0.0
      %686 = vmatmul.mubr.f32.gmra.mrb[0].mxu0 %v619
      %v687 = vpop.f32.mrb[0].mxu0
      %v688 = vadd.f32 0.0, %v687
      %v689 = vpop.f32.mrb[0].mxu0
      %690 = vdwg.mxu0
      %v691 = vrot.slane %v414, 1
      %v692 = vsel %vm430, %v691, 0
      %694 = vmatprep.subr.mxu0 0.0
      %695 = vmatpush1.msra.mxu0 %v529
      %696 = vmatprep.subr.mxu0 0.0
      %697 = vmatpush1.msra.mxu0 %v530
      %698 = vmatprep.subr.mxu0 0.0
      %699 = vmatpush1.msra.mxu0 %v531
      %700 = vmatprep.subr.mxu0 0.0
      %701 = vmatpush1.msra.mxu0 %v532
      %702 = vmatprep.subr.mxu0 0.0
      %703 = vmatpush1.msra.mxu0 0.0
      %704 = vmatprep.subr.mxu0 0.0
      %705 = vmatpush1.msra.mxu0 0.0
      %706 = vmatprep.subr.mxu0 0.0
      %707 = vmatpush1.msra.mxu0 0.0
      %708 = vmatprep.subr.mxu0 0.0
      %709 = vmatpush1.msra.mxu0 0.0
      %710 = vmatprep.subr.mxu0 0.0
      %711 = vmatpush1.msra.mxu0 0.0
      %712 = vmatprep.subr.mxu0 0.0
      %713 = vmatpush1.msra.mxu0 0.0
      %714 = vmatprep.subr.mxu0 0.0
      %715 = vmatpush1.msra.mxu0 0.0
      %716 = vmatprep.subr.mxu0 0.0
      %717 = vmatpush1.msra.mxu0 0.0
      %718 = vmatprep.subr.mxu0 0.0
      %719 = vmatpush1.msra.mxu0 0.0
      %720 = vmatprep.subr.mxu0 0.0
      %721 = vmatpush1.msra.mxu0 0.0
      %722 = vmatprep.subr.mxu0 0.0
      %723 = vmatpush1.msra.mxu0 0.0
      %724 = vmatprep.subr.mxu0 0.0
      %725 = vmatpush1.msra.mxu0 0.0
      %726 = vmatprep.subr.mxu0 0.0
      %727 = vmatpush1.msra.mxu0 0.0
      %728 = vmatprep.subr.mxu0 0.0
      %729 = vmatpush1.msra.mxu0 0.0
      %730 = vmatprep.subr.mxu0 0.0
      %731 = vmatpush1.msra.mxu0 0.0
      %732 = vmatprep.subr.mxu0 0.0
      %733 = vmatpush1.msra.mxu0 0.0
      %734 = vmatprep.subr.mxu0 0.0
      %735 = vmatpush1.msra.mxu0 0.0
      %736 = vmatprep.subr.mxu0 0.0
      %737 = vmatpush1.msra.mxu0 0.0
      %738 = vmatprep.subr.mxu0 0.0
      %739 = vmatpush1.msra.mxu0 0.0
      %740 = vmatprep.subr.mxu0 0.0
      %741 = vmatpush1.msra.mxu0 0.0
      %742 = vmatprep.subr.mxu0 0.0
      %743 = vmatpush1.msra.mxu0 0.0
      %744 = vmatprep.subr.mxu0 0.0
      %745 = vmatpush1.msra.mxu0 0.0
      %746 = vmatprep.subr.mxu0 0.0
      %747 = vmatpush1.msra.mxu0 0.0
      %748 = vmatprep.subr.mxu0 0.0
      %749 = vmatpush1.msra.mxu0 0.0
      %750 = vmatprep.subr.mxu0 0.0
      %751 = vmatpush1.msra.mxu0 0.0
      %752 = vmatprep.subr.mxu0 0.0
      %753 = vmatpush1.msra.mxu0 0.0
      %754 = vmatprep.subr.mxu0 0.0
      %755 = vmatpush1.msra.mxu0 0.0
      %756 = vmatprep.subr.mxu0 0.0
      %757 = vmatpush1.msra.mxu0 0.0
      %758 = vmatprep.mubr.f32.mxu0 0.0
      %759 = vmatmul.mubr.f32.gmra.mrb[0].mxu0 %v692
      %v760 = vpop.f32.mrb[0].mxu0
      %v761 = vadd.f32 0.0, %v760
      %v762 = vpop.f32.mrb[0].mxu0
      %763 = vdwg.mxu0
      %v764 = vlaneseq
      %v765 = vshrl.u32 %v764, 7
      %v766 = vadd.s32 %v765, 8
      %v767 = vadd.s32 %v765, 16
      %v768 = vadd.s32 %v765, 24
      %vm769 = vcmp.eq.s32.totalorder %v765, 0
      %vm770 = vcmp.eq.s32.totalorder %v766, 0
      %vm771 = vcmp.eq.s32.totalorder %v767, 0
      %vm772 = vcmp.eq.s32.totalorder %v768, 0
      %v773 = vlaneseq
      %v774 = vshrl.u32 %v773, 7
      %v775 = vsub.s32 0, %v774
      %v776 = vrot.slane %v688, %v775
      %v777 = vrot.slane %v510, 7
      %v778 = vrot.slane %v515, 7
      %v779 = vrot.slane %v520, 7
      %v780 = vrot.slane %v525, 7
      %vm781 = vcmp.lt.s32.totalorder %v765, 1
      %v782 = vsel %vm781, %v779, %v780
      %v783 = vsel %vm781, %v778, %v779
      %v784 = vsel %vm781, %v777, %v778
      %v785 = vsel %vm781, %v780, %v777
      %v786 = vsel %vm769, 1, 0
      %v787 = vsel %vm770, 1, 0
      %v788 = vsel %vm771, 1, 0
      %v789 = vsel %vm772, 1, 0
      %vm790 = vcmp.eq.s32.totalorder %v786, 1
      %vm791 = vcmp.eq.s32.totalorder %v787, 1
      %vm792 = vcmp.eq.s32.totalorder %v788, 1
      %vm793 = vcmp.eq.s32.totalorder %v789, 1
      %v794 = vsel %vm790, %v776, %v785
      %v795 = vsel %vm791, %v776, %v784
      %v796 = vsel %vm792, %v776, %v783
      %v797 = vsel %vm793, %v776, %v782
      %vm798 = vcmp.eq.s32.totalorder %v765, 31
      %vm799 = vcmp.eq.s32.totalorder %v766, 31
      %vm800 = vcmp.eq.s32.totalorder %v767, 31
      %vm801 = vcmp.eq.s32.totalorder %v768, 31
      %v802 = vlaneseq
      %v803 = vshrl.u32 %v802, 7
      %v804 = vsub.s32 0, %v803
      %v805 = vrot.slane %v761, %v804
      %v806 = vrot.slane %v600, 1
      %v807 = vrot.slane %v605, 1
      %v808 = vrot.slane %v610, 1
      %v809 = vrot.slane %v615, 1
      %vm810 = vcmp.lt.s32.totalorder %v765, 7
      %v811 = vsel %vm810, %v808, %v809
      %v812 = vsel %vm810, %v807, %v808
      %v813 = vsel %vm810, %v806, %v807
      %v814 = vsel %vm810, %v809, %v806
      %v815 = vsel %vm798, 1, 0
      %v816 = vsel %vm799, 1, 0
      %v817 = vsel %vm800, 1, 0
      %v818 = vsel %vm801, 1, 0
      %vm819 = vcmp.eq.s32.totalorder %v815, 1
      %vm820 = vcmp.eq.s32.totalorder %v816, 1
      %vm821 = vcmp.eq.s32.totalorder %v817, 1
      %vm822 = vcmp.eq.s32.totalorder %v818, 1
      %v823 = vsel %vm819, %v805, %v813
      %v824 = vsel %vm820, %v805, %v812
      %v825 = vsel %vm821, %v805, %v811
      %v826 = vsel %vm822, %v805, %v814
      %827 = vmatprep.subr.mxu0 0.0
      %828 = vmatpush1.msra.mxu0 %v416
      %829 = vmatprep.subr.mxu0 0.0
      %830 = vmatpush1.msra.mxu0 %v417
      %831 = vmatprep.subr.mxu0 0.0
      %832 = vmatpush1.msra.mxu0 %v418
      %833 = vmatprep.subr.mxu0 0.0
      %834 = vmatpush1.msra.mxu0 %v419
      %835 = vmatprep.subr.mxu0 0.0
      %836 = vmatpush1.msra.mxu0 0.0
      %837 = vmatprep.subr.mxu0 0.0
      %838 = vmatpush1.msra.mxu0 0.0
      %839 = vmatprep.subr.mxu0 0.0
      %840 = vmatpush1.msra.mxu0 0.0
      %841 = vmatprep.subr.mxu0 0.0
      %842 = vmatpush1.msra.mxu0 0.0
      %843 = vmatprep.subr.mxu0 0.0
      %844 = vmatpush1.msra.mxu0 0.0
      %845 = vmatprep.subr.mxu0 0.0
      %846 = vmatpush1.msra.mxu0 0.0
      %847 = vmatprep.subr.mxu0 0.0
      %848 = vmatpush1.msra.mxu0 0.0
      %849 = vmatprep.subr.mxu0 0.0
      %850 = vmatpush1.msra.mxu0 0.0
      %851 = vmatprep.subr.mxu0 0.0
      %852 = vmatpush1.msra.mxu0 0.0
      %853 = vmatprep.subr.mxu0 0.0
      %854 = vmatpush1.msra.mxu0 0.0
      %855 = vmatprep.subr.mxu0 0.0
      %856 = vmatpush1.msra.mxu0 0.0
      %857 = vmatprep.subr.mxu0 0.0
      %858 = vmatpush1.msra.mxu0 0.0
      %859 = vmatprep.subr.mxu0 0.0
      %860 = vmatpush1.msra.mxu0 0.0
      %861 = vmatprep.subr.mxu0 0.0
      %862 = vmatpush1.msra.mxu0 0.0
      %863 = vmatprep.subr.mxu0 0.0
      %864 = vmatpush1.msra.mxu0 0.0
      %865 = vmatprep.subr.mxu0 0.0
      %866 = vmatpush1.msra.mxu0 0.0
      %867 = vmatprep.subr.mxu0 0.0
      %868 = vmatpush1.msra.mxu0 0.0
      %869 = vmatprep.subr.mxu0 0.0
      %870 = vmatpush1.msra.mxu0 0.0
      %871 = vmatprep.subr.mxu0 0.0
      %872 = vmatpush1.msra.mxu0 0.0
      %873 = vmatprep.subr.mxu0 0.0
      %874 = vmatpush1.msra.mxu0 0.0
      %875 = vmatprep.subr.mxu0 0.0
      %876 = vmatpush1.msra.mxu0 0.0
      %877 = vmatprep.subr.mxu0 0.0
      %878 = vmatpush1.msra.mxu0 0.0
      %879 = vmatprep.subr.mxu0 0.0
      %880 = vmatpush1.msra.mxu0 0.0
      %881 = vmatprep.subr.mxu0 0.0
      %882 = vmatpush1.msra.mxu0 0.0
      %883 = vmatprep.subr.mxu0 0.0
      %884 = vmatpush1.msra.mxu0 0.0
      %885 = vmatprep.subr.mxu0 0.0
      %886 = vmatpush1.msra.mxu0 0.0
      %887 = vmatprep.subr.mxu0 0.0
      %888 = vmatpush1.msra.mxu0 0.0
      %889 = vmatprep.subr.mxu0 0.0
      %890 = vmatpush1.msra.mxu0 0.0
      %891 = vmatprep.mubr.f32.mxu0 0.0
      %892 = vmatmul.mubr.f32.gmra.mrb[0].mxu0 %v432
      %v893 = vpop.f32.mrb[0].mxu0
      %v894 = vadd.f32 %v794, %v893
      %v895 = vpop.f32.mrb[0].mxu0
      %896 = vmatprep.mubr.f32.mxu0 0.0
      %897 = vmatmul.mubr.f32.gmra.mrb[0].mxu0 %v435
      %v898 = vpop.f32.mrb[0].mxu0
      %v899 = vadd.f32 %v795, %v898
      %v900 = vpop.f32.mrb[0].mxu0
      %901 = vmatprep.mubr.f32.mxu0 0.0
      %902 = vmatmul.mubr.f32.gmra.mrb[0].mxu0 %v438
      %v903 = vpop.f32.mrb[0].mxu0
      %v904 = vadd.f32 %v796, %v903
      %v905 = vpop.f32.mrb[0].mxu0
      %906 = vmatprep.mubr.f32.mxu0 0.0
      %907 = vmatmul.mubr.f32.gmra.mrb[0].mxu0 %v441
      %v908 = vpop.f32.mrb[0].mxu0
      %v909 = vadd.f32 %v797, %v908
      %v910 = vpop.f32.mrb[0].mxu0
      %911 = vdwg.mxu0
      %v912 = vlaneseq
      %v913 = vshrl.u32 %v912, 7
      %v914 = vsub.s32 0, %v913
      %v915 = vrot.slane %v415, %v914
      %v916 = vadd.f32 %v894, %v915
      %v917 = vadd.f32 %v899, %v915
      %v918 = vadd.f32 %v904, %v915
      %v919 = vadd.f32 %v909, %v915
      %920 = vmatprep.subr.mxu0 0.0
      %921 = vmatpush1.msra.mxu0 %v421
      %922 = vmatprep.subr.mxu0 0.0
      %923 = vmatpush1.msra.mxu0 %v422
      %924 = vmatprep.subr.mxu0 0.0
      %925 = vmatpush1.msra.mxu0 %v423
      %926 = vmatprep.subr.mxu0 0.0
      %927 = vmatpush1.msra.mxu0 %v424
      %928 = vmatprep.subr.mxu0 0.0
      %929 = vmatpush1.msra.mxu0 0.0
      %930 = vmatprep.subr.mxu0 0.0
      %931 = vmatpush1.msra.mxu0 0.0
      %932 = vmatprep.subr.mxu0 0.0
      %933 = vmatpush1.msra.mxu0 0.0
      %934 = vmatprep.subr.mxu0 0.0
      %935 = vmatpush1.msra.mxu0 0.0
      %936 = vmatprep.subr.mxu0 0.0
      %937 = vmatpush1.msra.mxu0 0.0
      %938 = vmatprep.subr.mxu0 0.0
      %939 = vmatpush1.msra.mxu0 0.0
      %940 = vmatprep.subr.mxu0 0.0
      %941 = vmatpush1.msra.mxu0 0.0
      %942 = vmatprep.subr.mxu0 0.0
      %943 = vmatpush1.msra.mxu0 0.0
      %944 = vmatprep.subr.mxu0 0.0
      %945 = vmatpush1.msra.mxu0 0.0
      %946 = vmatprep.subr.mxu0 0.0
      %947 = vmatpush1.msra.mxu0 0.0
      %948 = vmatprep.subr.mxu0 0.0
      %949 = vmatpush1.msra.mxu0 0.0
      %950 = vmatprep.subr.mxu0 0.0
      %951 = vmatpush1.msra.mxu0 0.0
      %952 = vmatprep.subr.mxu0 0.0
      %953 = vmatpush1.msra.mxu0 0.0
      %954 = vmatprep.subr.mxu0 0.0
      %955 = vmatpush1.msra.mxu0 0.0
      %956 = vmatprep.subr.mxu0 0.0
      %957 = vmatpush1.msra.mxu0 0.0
      %958 = vmatprep.subr.mxu0 0.0
      %959 = vmatpush1.msra.mxu0 0.0
      %960 = vmatprep.subr.mxu0 0.0
      %961 = vmatpush1.msra.mxu0 0.0
      %962 = vmatprep.subr.mxu0 0.0
      %963 = vmatpush1.msra.mxu0 0.0
      %964 = vmatprep.subr.mxu0 0.0
      %965 = vmatpush1.msra.mxu0 0.0
      %966 = vmatprep.subr.mxu0 0.0
      %967 = vmatpush1.msra.mxu0 0.0
      %968 = vmatprep.subr.mxu0 0.0
      %969 = vmatpush1.msra.mxu0 0.0
      %970 = vmatprep.subr.mxu0 0.0
      %971 = vmatpush1.msra.mxu0 0.0
      %972 = vmatprep.subr.mxu0 0.0
      %973 = vmatpush1.msra.mxu0 0.0
      %974 = vmatprep.subr.mxu0 0.0
      %975 = vmatpush1.msra.mxu0 0.0
      %976 = vmatprep.subr.mxu0 0.0
      %977 = vmatpush1.msra.mxu0 0.0
      %978 = vmatprep.subr.mxu0 0.0
      %979 = vmatpush1.msra.mxu0 0.0
      %980 = vmatprep.subr.mxu0 0.0
      %981 = vmatpush1.msra.mxu0 0.0
      %982 = vmatprep.subr.mxu0 0.0
      %983 = vmatpush1.msra.mxu0 0.0
      %984 = vmatprep.mubr.f32.mxu0 0.0
      %985 = vmatmul.mubr.f32.gmra.mrb[0].mxu0 %v432
      %v986 = vpop.f32.mrb[0].mxu0
      %v987 = vadd.f32 %v823, %v986
      %v988 = vpop.f32.mrb[0].mxu0
      %989 = vmatprep.mubr.f32.mxu0 0.0
      %990 = vmatmul.mubr.f32.gmra.mrb[0].mxu0 %v435
      %v991 = vpop.f32.mrb[0].mxu0
      %v992 = vadd.f32 %v824, %v991
      %v993 = vpop.f32.mrb[0].mxu0
      %994 = vmatprep.mubr.f32.mxu0 0.0
      %995 = vmatmul.mubr.f32.gmra.mrb[0].mxu0 %v438
      %v996 = vpop.f32.mrb[0].mxu0
      %v997 = vadd.f32 %v825, %v996
      %v998 = vpop.f32.mrb[0].mxu0
      %999 = vmatprep.mubr.f32.mxu0 0.0
      %1000 = vmatmul.mubr.f32.gmra.mrb[0].mxu0 %v441
      %v1001 = vpop.f32.mrb[0].mxu0
      %v1002 = vadd.f32 %v826, %v1001
      %v1003 = vpop.f32.mrb[0].mxu0
      %1004 = vdwg.mxu0
      %v1005 = vadd.f32 %v987, %v915
      %v1006 = vadd.f32 %v992, %v915
      %v1007 = vadd.f32 %v997, %v915
      %v1008 = vadd.f32 %v1002, %v915
      %v1009 = vld [vmem:[%s389] sm:$0xff]
      %v1010 = vunpack.c.0.s8 %v1009
      %v1011 = vunpack.c.1.s8 %v1009
      %v1012 = vunpack.c.2.s8 %v1009
      %v1013 = vunpack.c.3.s8 %v1009
      %v1014 = vcvt.s32.f32 %v1010
      %v1015 = vcvt.s32.f32 %v1011
      %v1016 = vcvt.s32.f32 %v1012
      %v1017 = vcvt.s32.f32 %v1013
      %vm1018 = vcmp.lt.f32.partialorder %v1014, 0.5
      %vm1019 = vcmp.lt.f32.partialorder %v1015, 0.5
      %vm1020 = vcmp.lt.f32.partialorder %v1016, 0.5
      %vm1021 = vcmp.lt.f32.partialorder %v1017, 0.5
      %v1022 = vmax.f32 %v916, 0.0
      %v1023 = vmax.f32 %v917, 0.0
      %v1024 = vmax.f32 %v918, 0.0
      %v1025 = vmax.f32 %v919, 0.0
      %v1026 = vsel %vm1018, 1, 0
      %v1027 = vsel %vm1019, 1, 0
      %v1028 = vsel %vm1020, 1, 0
      %v1029 = vsel %vm1021, 1, 0
      %1030 = vset.pattern.permute.xlu0 0
      %1031 = vperm.xlu0 %1030, %v1026
      %v1032 = vpop.permute.xlu0 %1031
      %1033 = vset.pattern.permute.xlu0 0
      %1034 = vperm.xlu0 %1033, %v1027
      %v1035 = vpop.permute.xlu0 %1034
      %1036 = vset.pattern.permute.xlu0 0
      %1037 = vperm.xlu0 %1036, %v1028
      %v1038 = vpop.permute.xlu0 %1037
      %1039 = vset.pattern.permute.xlu0 0
      %1040 = vperm.xlu0 %1039, %v1029
      %v1041 = vpop.permute.xlu0 %1040
      %vm1042 = vcmp.eq.s32.totalorder %v1032, 1
      %vm1043 = vcmp.eq.s32.totalorder %v1035, 1
      %vm1044 = vcmp.eq.s32.totalorder %v1038, 1
      %vm1045 = vcmp.eq.s32.totalorder %v1041, 1
      %v1046 = vsel %vm1042, %v1022, 0.0
      %v1047 = vsel %vm1043, %v1023, 0.0
      %v1048 = vsel %vm1044, %v1024, 0.0
      %v1049 = vsel %vm1045, %v1025, 0.0
      %v1050 = vmax.f32 %v1005, 0.0
      %v1051 = vmax.f32 %v1006, 0.0
      %v1052 = vmax.f32 %v1007, 0.0
      %v1053 = vmax.f32 %v1008, 0.0
      %1054 = vset.pattern.permute.xlu0 1
      %1055 = vperm.xlu0 %1054, %v1026
      %v1056 = vpop.permute.xlu0 %1055
      %1057 = vset.pattern.permute.xlu0 1
      %1058 = vperm.xlu0 %1057, %v1027
      %v1059 = vpop.permute.xlu0 %1058
      %1060 = vset.pattern.permute.xlu0 1
      %1061 = vperm.xlu0 %1060, %v1028
      %v1062 = vpop.permute.xlu0 %1061
      %1063 = vset.pattern.permute.xlu0 1
      %1064 = vperm.xlu0 %1063, %v1029
      %v1065 = vpop.permute.xlu0 %1064
      %vm1066 = vcmp.eq.s32.totalorder %v1056, 1
      %vm1067 = vcmp.eq.s32.totalorder %v1059, 1
      %vm1068 = vcmp.eq.s32.totalorder %v1062, 1
      %vm1069 = vcmp.eq.s32.totalorder %v1065, 1
      %v1070 = vsel %vm1066, %v1050, 0.0
      %v1071 = vsel %vm1067, %v1051, 0.0
      %v1072 = vsel %vm1068, %v1052, 0.0
      %v1073 = vsel %vm1069, %v1053, 0.0
      %v1074 = vld [vmem:[%s398] sm:$0xff]
      %v1075 = vld [vmem:[%s398 + $0x8] sm:$0xff]
      %v1076 = vld [vmem:[%s398 + $0x10] sm:$0xff]
      %v1077 = vld [vmem:[%s398 + $0x18] sm:$0xff]
      %v1078 = vld [vmem:[%s5] sm:$0xff]
      %v1079 = vld [vmem:[%s5 + $0x8] sm:$0xff]
      %v1080 = vld [vmem:[%s5 + $0x10] sm:$0xff]
      %v1081 = vld [vmem:[%s5 + $0x18] sm:$0xff]
      %s1082 = scalar_lea.vmem %s5, 32
      %v1083 = vld [vmem:[%s1082] sm:$0xff]
      %v1084 = vld [vmem:[%s1082 + $0x8] sm:$0xff]
      %v1085 = vld [vmem:[%s1082 + $0x10] sm:$0xff]
      %v1086 = vld [vmem:[%s1082 + $0x18] sm:$0xff]
      %v1088 = vsel %vm430, %v1074, 0
      %v1091 = vsel %vm430, %v1075, 0
      %v1094 = vsel %vm430, %v1076, 0
      %v1097 = vsel %vm430, %v1077, 0
      %1099 = vmatprep.subr.mxu0 0.0
      %1100 = vmatpush1.msra.mxu0 %v1083
      %1101 = vmatprep.subr.mxu0 0.0
      %1102 = vmatpush1.msra.mxu0 %v1084
      %1103 = vmatprep.subr.mxu0 0.0
      %1104 = vmatpush1.msra.mxu0 %v1085
      %1105 = vmatprep.subr.mxu0 0.0
      %1106 = vmatpush1.msra.mxu0 %v1086
      %1107 = vmatprep.subr.mxu0 0.0
      %1108 = vmatpush1.msra.mxu0 0.0
      %1109 = vmatprep.subr.mxu0 0.0
      %1110 = vmatpush1.msra.mxu0 0.0
      %1111 = vmatprep.subr.mxu0 0.0
      %1112 = vmatpush1.msra.mxu0 0.0
      %1113 = vmatprep.subr.mxu0 0.0
      %1114 = vmatpush1.msra.mxu0 0.0
      %1115 = vmatprep.subr.mxu0 0.0
      %1116 = vmatpush1.msra.mxu0 0.0
      %1117 = vmatprep.subr.mxu0 0.0
      %1118 = vmatpush1.msra.mxu0 0.0
      %1119 = vmatprep.subr.mxu0 0.0
      %1120 = vmatpush1.msra.mxu0 0.0
      %1121 = vmatprep.subr.mxu0 0.0
      %1122 = vmatpush1.msra.mxu0 0.0
      %1123 = vmatprep.subr.mxu0 0.0
      %1124 = vmatpush1.msra.mxu0 0.0
      %1125 = vmatprep.subr.mxu0 0.0
      %1126 = vmatpush1.msra.mxu0 0.0
      %1127 = vmatprep.subr.mxu0 0.0
      %1128 = vmatpush1.msra.mxu0 0.0
      %1129 = vmatprep.subr.mxu0 0.0
      %1130 = vmatpush1.msra.mxu0 0.0
      %1131 = vmatprep.subr.mxu0 0.0
      %1132 = vmatpush1.msra.mxu0 0.0
      %1133 = vmatprep.subr.mxu0 0.0
      %1134 = vmatpush1.msra.mxu0 0.0
      %1135 = vmatprep.subr.mxu0 0.0
      %1136 = vmatpush1.msra.mxu0 0.0
      %1137 = vmatprep.subr.mxu0 0.0
      %1138 = vmatpush1.msra.mxu0 0.0
      %1139 = vmatprep.subr.mxu0 0.0
      %1140 = vmatpush1.msra.mxu0 0.0
      %1141 = vmatprep.subr.mxu0 0.0
      %1142 = vmatpush1.msra.mxu0 0.0
      %1143 = vmatprep.subr.mxu0 0.0
      %1144 = vmatpush1.msra.mxu0 0.0
      %1145 = vmatprep.subr.mxu0 0.0
      %1146 = vmatpush1.msra.mxu0 0.0
      %1147 = vmatprep.subr.mxu0 0.0
      %1148 = vmatpush1.msra.mxu0 0.0
      %1149 = vmatprep.subr.mxu0 0.0
      %1150 = vmatpush1.msra.mxu0 0.0
      %1151 = vmatprep.subr.mxu0 0.0
      %1152 = vmatpush1.msra.mxu0 0.0
      %1153 = vmatprep.subr.mxu0 0.0
      %1154 = vmatpush1.msra.mxu0 0.0
      %1155 = vmatprep.subr.mxu0 0.0
      %1156 = vmatpush1.msra.mxu0 0.0
      %1157 = vmatprep.subr.mxu0 0.0
      %1158 = vmatpush1.msra.mxu0 0.0
      %1159 = vmatprep.subr.mxu0 0.0
      %1160 = vmatpush1.msra.mxu0 0.0
      %1161 = vmatprep.subr.mxu0 0.0
      %1162 = vmatpush1.msra.mxu0 0.0
      %1163 = vmatprep.mubr.f32.mxu0 0.0
      %1164 = vmatmul.mubr.f32.gmra.mrb[0].mxu0 %v1088
      %v1165 = vpop.f32.mrb[0].mxu0
      %v1166 = vadd.f32 0.0, %v1165
      %v1167 = vpop.f32.mrb[0].mxu0
      %1168 = vmatprep.mubr.f32.mxu0 0.0
      %1169 = vmatmul.mubr.f32.gmra.mrb[0].mxu0 %v1091
      %v1170 = vpop.f32.mrb[0].mxu0
      %v1171 = vadd.f32 0.0, %v1170
      %v1172 = vpop.f32.mrb[0].mxu0
      %1173 = vmatprep.mubr.f32.mxu0 0.0
      %1174 = vmatmul.mubr.f32.gmra.mrb[0].mxu0 %v1094
      %v1175 = vpop.f32.mrb[0].mxu0
      %v1176 = vadd.f32 0.0, %v1175
      %v1177 = vpop.f32.mrb[0].mxu0
      %1178 = vmatprep.mubr.f32.mxu0 0.0
      %1179 = vmatmul.mubr.f32.gmra.mrb[0].mxu0 %v1097
      %v1180 = vpop.f32.mrb[0].mxu0
      %v1181 = vadd.f32 0.0, %v1180
      %v1182 = vpop.f32.mrb[0].mxu0
      %1183 = vdwg.mxu0
      %v1185 = vsel %vm430, %v1046, 0
      %v1188 = vsel %vm430, %v1047, 0
      %v1191 = vsel %vm430, %v1048, 0
      %v1194 = vsel %vm430, %v1049, 0
      %1196 = vmatprep.subr.mxu0 0.0
      %1197 = vmatpush1.msra.mxu0 %v1078
      %1198 = vmatprep.subr.mxu0 0.0
      %1199 = vmatpush1.msra.mxu0 %v1079
      %1200 = vmatprep.subr.mxu0 0.0
      %1201 = vmatpush1.msra.mxu0 %v1080
      %1202 = vmatprep.subr.mxu0 0.0
      %1203 = vmatpush1.msra.mxu0 %v1081
      %1204 = vmatprep.subr.mxu0 0.0
      %1205 = vmatpush1.msra.mxu0 0.0
      %1206 = vmatprep.subr.mxu0 0.0
      %1207 = vmatpush1.msra.mxu0 0.0
      %1208 = vmatprep.subr.mxu0 0.0
      %1209 = vmatpush1.msra.mxu0 0.0
      %1210 = vmatprep.subr.mxu0 0.0
      %1211 = vmatpush1.msra.mxu0 0.0
      %1212 = vmatprep.subr.mxu0 0.0
      %1213 = vmatpush1.msra.mxu0 0.0
      %1214 = vmatprep.subr.mxu0 0.0
      %1215 = vmatpush1.msra.mxu0 0.0
      %1216 = vmatprep.subr.mxu0 0.0
      %1217 = vmatpush1.msra.mxu0 0.0
      %1218 = vmatprep.subr.mxu0 0.0
      %1219 = vmatpush1.msra.mxu0 0.0
      %1220 = vmatprep.subr.mxu0 0.0
      %1221 = vmatpush1.msra.mxu0 0.0
      %1222 = vmatprep.subr.mxu0 0.0
      %1223 = vmatpush1.msra.mxu0 0.0
      %1224 = vmatprep.subr.mxu0 0.0
      %1225 = vmatpush1.msra.mxu0 0.0
      %1226 = vmatprep.subr.mxu0 0.0
      %1227 = vmatpush1.msra.mxu0 0.0
      %1228 = vmatprep.subr.mxu0 0.0
      %1229 = vmatpush1.msra.mxu0 0.0
      %1230 = vmatprep.subr.mxu0 0.0
      %1231 = vmatpush1.msra.mxu0 0.0
      %1232 = vmatprep.subr.mxu0 0.0
      %1233 = vmatpush1.msra.mxu0 0.0
      %1234 = vmatprep.subr.mxu0 0.0
      %1235 = vmatpush1.msra.mxu0 0.0
      %1236 = vmatprep.subr.mxu0 0.0
      %1237 = vmatpush1.msra.mxu0 0.0
      %1238 = vmatprep.subr.mxu0 0.0
      %1239 = vmatpush1.msra.mxu0 0.0
      %1240 = vmatprep.subr.mxu0 0.0
      %1241 = vmatpush1.msra.mxu0 0.0
      %1242 = vmatprep.subr.mxu0 0.0
      %1243 = vmatpush1.msra.mxu0 0.0
      %1244 = vmatprep.subr.mxu0 0.0
      %1245 = vmatpush1.msra.mxu0 0.0
      %1246 = vmatprep.subr.mxu0 0.0
      %1247 = vmatpush1.msra.mxu0 0.0
      %1248 = vmatprep.subr.mxu0 0.0
      %1249 = vmatpush1.msra.mxu0 0.0
      %1250 = vmatprep.subr.mxu0 0.0
      %1251 = vmatpush1.msra.mxu0 0.0
      %1252 = vmatprep.subr.mxu0 0.0
      %1253 = vmatpush1.msra.mxu0 0.0
      %1254 = vmatprep.subr.mxu0 0.0
      %1255 = vmatpush1.msra.mxu0 0.0
      %1256 = vmatprep.subr.mxu0 0.0
      %1257 = vmatpush1.msra.mxu0 0.0
      %1258 = vmatprep.subr.mxu0 0.0
      %1259 = vmatpush1.msra.mxu0 0.0
      %1260 = vmatprep.mubr.f32.mxu0 0.0
      %1261 = vmatmul.mubr.f32.gmra.mrb[0].mxu0 %v1185
      %v1262 = vpop.f32.mrb[0].mxu0
      %v1263 = vadd.f32 %v1166, %v1262
      %v1264 = vpop.f32.mrb[0].mxu0
      %1265 = vmatprep.mubr.f32.mxu0 0.0
      %1266 = vmatmul.mubr.f32.gmra.mrb[0].mxu0 %v1188
      %v1267 = vpop.f32.mrb[0].mxu0
      %v1268 = vadd.f32 %v1171, %v1267
      %v1269 = vpop.f32.mrb[0].mxu0
      %1270 = vmatprep.mubr.f32.mxu0 0.0
      %1271 = vmatmul.mubr.f32.gmra.mrb[0].mxu0 %v1191
      %v1272 = vpop.f32.mrb[0].mxu0
      %v1273 = vadd.f32 %v1176, %v1272
      %v1274 = vpop.f32.mrb[0].mxu0
      %1275 = vmatprep.mubr.f32.mxu0 0.0
      %1276 = vmatmul.mubr.f32.gmra.mrb[0].mxu0 %v1194
      %v1277 = vpop.f32.mrb[0].mxu0
      %v1278 = vadd.f32 %v1181, %v1277
      %v1279 = vpop.f32.mrb[0].mxu0
      %1280 = vdwg.mxu0
      %v1281 = vlaneseq
      %v1282 = vshrl.u32 %v1281, 7
      %v1283 = vsub.s32 1, %v1282
      %v1284 = vrot.slane %v415, %v1283
      %v1285 = vadd.f32 %v1263, %v1284
      %v1286 = vadd.f32 %v1268, %v1284
      %v1287 = vadd.f32 %v1273, %v1284
      %v1288 = vadd.f32 %v1278, %v1284
      %1289 = vrot.lane.b32.xlu0 %v1074, 96
      %v1290 = vpop.permute.xlu0 %1289
      %1291 = vrot.lane.b32.xlu0 %v1075, 96
      %v1292 = vpop.permute.xlu0 %1291
      %1293 = vrot.lane.b32.xlu0 %v1076, 96
      %v1294 = vpop.permute.xlu0 %1293
      %1295 = vrot.lane.b32.xlu0 %v1077, 96
      %v1296 = vpop.permute.xlu0 %1295
      %v1297 = vsel %vm430, %v1290, 0
      %v1299 = vsel %vm430, %v1292, 0
      %v1301 = vsel %vm430, %v1294, 0
      %v1303 = vsel %vm430, %v1296, 0
      %1305 = vmatprep.subr.mxu0 0.0
      %1306 = vmatpush1.msra.mxu0 %v1083
      %1307 = vmatprep.subr.mxu0 0.0
      %1308 = vmatpush1.msra.mxu0 %v1084
      %1309 = vmatprep.subr.mxu0 0.0
      %1310 = vmatpush1.msra.mxu0 %v1085
      %1311 = vmatprep.subr.mxu0 0.0
      %1312 = vmatpush1.msra.mxu0 %v1086
      %1313 = vmatprep.subr.mxu0 0.0
      %1314 = vmatpush1.msra.mxu0 0.0
      %1315 = vmatprep.subr.mxu0 0.0
      %1316 = vmatpush1.msra.mxu0 0.0
      %1317 = vmatprep.subr.mxu0 0.0
      %1318 = vmatpush1.msra.mxu0 0.0
      %1319 = vmatprep.subr.mxu0 0.0
      %1320 = vmatpush1.msra.mxu0 0.0
      %1321 = vmatprep.subr.mxu0 0.0
      %1322 = vmatpush1.msra.mxu0 0.0
      %1323 = vmatprep.subr.mxu0 0.0
      %1324 = vmatpush1.msra.mxu0 0.0
      %1325 = vmatprep.subr.mxu0 0.0
      %1326 = vmatpush1.msra.mxu0 0.0
      %1327 = vmatprep.subr.mxu0 0.0
      %1328 = vmatpush1.msra.mxu0 0.0
      %1329 = vmatprep.subr.mxu0 0.0
      %1330 = vmatpush1.msra.mxu0 0.0
      %1331 = vmatprep.subr.mxu0 0.0
      %1332 = vmatpush1.msra.mxu0 0.0
      %1333 = vmatprep.subr.mxu0 0.0
      %1334 = vmatpush1.msra.mxu0 0.0
      %1335 = vmatprep.subr.mxu0 0.0
      %1336 = vmatpush1.msra.mxu0 0.0
      %1337 = vmatprep.subr.mxu0 0.0
      %1338 = vmatpush1.msra.mxu0 0.0
      %1339 = vmatprep.subr.mxu0 0.0
      %1340 = vmatpush1.msra.mxu0 0.0
      %1341 = vmatprep.subr.mxu0 0.0
      %1342 = vmatpush1.msra.mxu0 0.0
      %1343 = vmatprep.subr.mxu0 0.0
      %1344 = vmatpush1.msra.mxu0 0.0
      %1345 = vmatprep.subr.mxu0 0.0
      %1346 = vmatpush1.msra.mxu0 0.0
      %1347 = vmatprep.subr.mxu0 0.0
      %1348 = vmatpush1.msra.mxu0 0.0
      %1349 = vmatprep.subr.mxu0 0.0
      %1350 = vmatpush1.msra.mxu0 0.0
      %1351 = vmatprep.subr.mxu0 0.0
      %1352 = vmatpush1.msra.mxu0 0.0
      %1353 = vmatprep.subr.mxu0 0.0
      %1354 = vmatpush1.msra.mxu0 0.0
      %1355 = vmatprep.subr.mxu0 0.0
      %1356 = vmatpush1.msra.mxu0 0.0
      %1357 = vmatprep.subr.mxu0 0.0
      %1358 = vmatpush1.msra.mxu0 0.0
      %1359 = vmatprep.subr.mxu0 0.0
      %1360 = vmatpush1.msra.mxu0 0.0
      %1361 = vmatprep.subr.mxu0 0.0
      %1362 = vmatpush1.msra.mxu0 0.0
      %1363 = vmatprep.subr.mxu0 0.0
      %1364 = vmatpush1.msra.mxu0 0.0
      %1365 = vmatprep.subr.mxu0 0.0
      %1366 = vmatpush1.msra.mxu0 0.0
      %1367 = vmatprep.subr.mxu0 0.0
      %1368 = vmatpush1.msra.mxu0 0.0
      %1369 = vmatprep.mubr.f32.mxu0 0.0
      %1370 = vmatmul.mubr.f32.gmra.mrb[0].mxu0 %v1297
      %v1371 = vpop.f32.mrb[0].mxu0
      %v1372 = vadd.f32 0.0, %v1371
      %v1373 = vpop.f32.mrb[0].mxu0
      %1374 = vmatprep.mubr.f32.mxu0 0.0
      %1375 = vmatmul.mubr.f32.gmra.mrb[0].mxu0 %v1299
      %v1376 = vpop.f32.mrb[0].mxu0
      %v1377 = vadd.f32 0.0, %v1376
      %v1378 = vpop.f32.mrb[0].mxu0
      %1379 = vmatprep.mubr.f32.mxu0 0.0
      %1380 = vmatmul.mubr.f32.gmra.mrb[0].mxu0 %v1301
      %v1381 = vpop.f32.mrb[0].mxu0
      %v1382 = vadd.f32 0.0, %v1381
      %v1383 = vpop.f32.mrb[0].mxu0
      %1384 = vmatprep.mubr.f32.mxu0 0.0
      %1385 = vmatmul.mubr.f32.gmra.mrb[0].mxu0 %v1303
      %v1386 = vpop.f32.mrb[0].mxu0
      %v1387 = vadd.f32 0.0, %v1386
      %v1388 = vpop.f32.mrb[0].mxu0
      %1389 = vdwg.mxu0
      %v1391 = vsel %vm430, %v1070, 0
      %v1394 = vsel %vm430, %v1071, 0
      %v1397 = vsel %vm430, %v1072, 0
      %v1400 = vsel %vm430, %v1073, 0
      %1402 = vmatprep.subr.mxu0 0.0
      %1403 = vmatpush1.msra.mxu0 %v1078
      %1404 = vmatprep.subr.mxu0 0.0
      %1405 = vmatpush1.msra.mxu0 %v1079
      %1406 = vmatprep.subr.mxu0 0.0
      %1407 = vmatpush1.msra.mxu0 %v1080
      %1408 = vmatprep.subr.mxu0 0.0
      %1409 = vmatpush1.msra.mxu0 %v1081
      %1410 = vmatprep.subr.mxu0 0.0
      %1411 = vmatpush1.msra.mxu0 0.0
      %1412 = vmatprep.subr.mxu0 0.0
      %1413 = vmatpush1.msra.mxu0 0.0
      %1414 = vmatprep.subr.mxu0 0.0
      %1415 = vmatpush1.msra.mxu0 0.0
      %1416 = vmatprep.subr.mxu0 0.0
      %1417 = vmatpush1.msra.mxu0 0.0
      %1418 = vmatprep.subr.mxu0 0.0
      %1419 = vmatpush1.msra.mxu0 0.0
      %1420 = vmatprep.subr.mxu0 0.0
      %1421 = vmatpush1.msra.mxu0 0.0
      %1422 = vmatprep.subr.mxu0 0.0
      %1423 = vmatpush1.msra.mxu0 0.0
      %1424 = vmatprep.subr.mxu0 0.0
      %1425 = vmatpush1.msra.mxu0 0.0
      %1426 = vmatprep.subr.mxu0 0.0
      %1427 = vmatpush1.msra.mxu0 0.0
      %1428 = vmatprep.subr.mxu0 0.0
      %1429 = vmatpush1.msra.mxu0 0.0
      %1430 = vmatprep.subr.mxu0 0.0
      %1431 = vmatpush1.msra.mxu0 0.0
      %1432 = vmatprep.subr.mxu0 0.0
      %1433 = vmatpush1.msra.mxu0 0.0
      %1434 = vmatprep.subr.mxu0 0.0
      %1435 = vmatpush1.msra.mxu0 0.0
      %1436 = vmatprep.subr.mxu0 0.0
      %1437 = vmatpush1.msra.mxu0 0.0
      %1438 = vmatprep.subr.mxu0 0.0
      %1439 = vmatpush1.msra.mxu0 0.0
      %1440 = vmatprep.subr.mxu0 0.0
      %1441 = vmatpush1.msra.mxu0 0.0
      %1442 = vmatprep.subr.mxu0 0.0
      %1443 = vmatpush1.msra.mxu0 0.0
      %1444 = vmatprep.subr.mxu0 0.0
      %1445 = vmatpush1.msra.mxu0 0.0
      %1446 = vmatprep.subr.mxu0 0.0
      %1447 = vmatpush1.msra.mxu0 0.0
      %1448 = vmatprep.subr.mxu0 0.0
      %1449 = vmatpush1.msra.mxu0 0.0
      %1450 = vmatprep.subr.mxu0 0.0
      %1451 = vmatpush1.msra.mxu0 0.0
      %1452 = vmatprep.subr.mxu0 0.0
      %1453 = vmatpush1.msra.mxu0 0.0
      %1454 = vmatprep.subr.mxu0 0.0
      %1455 = vmatpush1.msra.mxu0 0.0
      %1456 = vmatprep.subr.mxu0 0.0
      %1457 = vmatpush1.msra.mxu0 0.0
      %1458 = vmatprep.subr.mxu0 0.0
      %1459 = vmatpush1.msra.mxu0 0.0
      %1460 = vmatprep.subr.mxu0 0.0
      %1461 = vmatpush1.msra.mxu0 0.0
      %1462 = vmatprep.subr.mxu0 0.0
      %1463 = vmatpush1.msra.mxu0 0.0
      %1464 = vmatprep.subr.mxu0 0.0
      %1465 = vmatpush1.msra.mxu0 0.0
      %1466 = vmatprep.mubr.f32.mxu0 0.0
      %1467 = vmatmul.mubr.f32.gmra.mrb[0].mxu0 %v1391
      %v1468 = vpop.f32.mrb[0].mxu0
      %v1469 = vadd.f32 %v1372, %v1468
      %v1470 = vpop.f32.mrb[0].mxu0
      %1471 = vmatprep.mubr.f32.mxu0 0.0
      %1472 = vmatmul.mubr.f32.gmra.mrb[0].mxu0 %v1394
      %v1473 = vpop.f32.mrb[0].mxu0
      %v1474 = vadd.f32 %v1377, %v1473
      %v1475 = vpop.f32.mrb[0].mxu0
      %1476 = vmatprep.mubr.f32.mxu0 0.0
      %1477 = vmatmul.mubr.f32.gmra.mrb[0].mxu0 %v1397
      %v1478 = vpop.f32.mrb[0].mxu0
      %v1479 = vadd.f32 %v1382, %v1478
      %v1480 = vpop.f32.mrb[0].mxu0
      %1481 = vmatprep.mubr.f32.mxu0 0.0
      %1482 = vmatmul.mubr.f32.gmra.mrb[0].mxu0 %v1400
      %v1483 = vpop.f32.mrb[0].mxu0
      %v1484 = vadd.f32 %v1387, %v1483
      %v1485 = vpop.f32.mrb[0].mxu0
      %1486 = vdwg.mxu0
      %v1487 = vadd.f32 %v1469, %v1284
      %v1488 = vadd.f32 %v1474, %v1284
      %v1489 = vadd.f32 %v1479, %v1284
      %v1490 = vadd.f32 %v1484, %v1284
      %1491 = vst.msk [vmem:[%s408] sm:$0xff] %vm430, %v1285
      %1492 = vst.msk [vmem:[%s408 + $0x8] sm:$0xff] %vm430, %v1286
      %1493 = vst.msk [vmem:[%s408 + $0x10] sm:$0xff] %vm430, %v1287
      %1494 = vst.msk [vmem:[%s408 + $0x18] sm:$0xff] %vm430, %v1288
      %1499 = vrot.lane.b32.xlu0 %v1487, 32
      %v1500 = vpop.permute.xlu0 %1499
      %1501 = vrot.lane.b32.xlu0 %v1488, 32
      %v1502 = vpop.permute.xlu0 %1501
      %1503 = vrot.lane.b32.xlu0 %v1489, 32
      %v1504 = vpop.permute.xlu0 %1503
      %1505 = vrot.lane.b32.xlu0 %v1490, 32
      %v1506 = vpop.permute.xlu0 %1505
      %vm1511 = vcmask 523520
      %1512 = vst.msk [vmem:[%s408] sm:$0xff] %vm1511, %v1500
      %1513 = vst.msk [vmem:[%s408 + $0x8] sm:$0xff] %vm1511, %v1502
      %1514 = vst.msk [vmem:[%s408 + $0x10] sm:$0xff] %vm1511, %v1504
      %1515 = vst.msk [vmem:[%s408 + $0x18] sm:$0xff] %vm1511, %v1506
      %s1516 = smul.u32 4, %s23
      %p1517 = scmp.lt.s32.totalorder %s22, 1
      %s1518 = scalar_select %p1517, %s22, 1
      %p1519 = scmp.lt.s32.totalorder %s1516, 3
      %s1520 = scalar_select %p1519, %s1516, 3
      %s1521 = smul.addr %s1518, 4
      %s1522 = sadd.s32 %s1520, %s1521
      %s1523 = smul.addr %s1522, 8
      %s1524 = scalar_lea.vmem %s7, %s1523
      // Predicated region
      $region49: #{upsample_forward.5} parent=47 // pred_check
        %p1525 = pneg %p225
      $region50: #{upsample_forward.5} parent=47 // pred_check_branch
        %1527 = sbr.rel (%p1525) target = $region52
      $region51: #{upsample_forward.5} parent=47 // pred_region
        %s1528 = smul.u32 4, %s23
      $region52: #{upsample_forward.5} parent=47 // pred_fallthru
        _
    $region48: #{upsample_forward.5} parent=5 // pred_fallthru
      _
    %p1529 = scmp.le.s32.totalorder 2, %s13
    // Predicated region
    $region53: #{upsample_forward.5} parent=5 // pred_check
      %p1530 = pneg %p1529
    $region54: #{upsample_forward.5} parent=5 // pred_check_branch
      %1532 = sbr.rel (%p1530) target = $region56
    $region55: #{upsample_forward.5} parent=5 // pred_region
      %s1533 = ssub.s32 %s13, 2
      // Predicated region
      $region57: #{upsample_forward.5} parent=55 // pred_check
        %p1534 = pneg %p231
      $region58: #{upsample_forward.5} parent=55 // pred_check_branch
        %1536 = sbr.rel (%p1534) target = $region60
      $region59: #{upsample_forward.5} parent=55 // pred_region
        %s1537 = smul.u32 4, %s25
        %p1538 = scmp.lt.s32.totalorder %s24, 1
        %s1539 = scalar_select %p1538, %s24, 1
        %p1540 = scmp.lt.s32.totalorder %s1537, 3
        %s1541 = scalar_select %p1540, %s1537, 3
        %s1542 = smul.addr %s1539, 4
        %s1543 = sadd.s32 %s1541, %s1542
        %s1544 = smul.addr %s1543, 8
        %s1545 = scalar_lea.vmem %s7, %s1544
      $region60: #{upsample_forward.5} parent=55 // pred_fallthru
        _
    $region56: #{upsample_forward.5} parent=5 // pred_fallthru
      _
  $region6: #{upsample_forward.5} parent=0 // loop_footer
    %s17 = sadd.s32 1, %s13
  $region7: #{upsample_forward.5} parent=0 // loop_footer_branch
    %12 = sbr.rel target = $region3
  $region8: #{upsample_forward.5} parent=0 // loop_exit
    _

</llo_original>
